<compile_context>
chip_gen: v7x
topology: tpu7x:2x2x1
jax: 0.10.0
libtpu: 0.0.40
codegen_flags: <defaults>
</compile_context>

<pallas_src>
import functools

import jax
import jax.numpy as jnp
from jax.experimental import pallas as pl
from jax.experimental.pallas import tpu as pltpu

C1 = 0.01 ** 2
C2 = 0.03 ** 2


def _ssim_from_sums(sx, sy, sxx, syy, sxy):
    """SSIM loss map from 3x3-window *sums* of x, y, x*x, y*y, x*y."""
    inv9 = jnp.float32(1.0 / 9.0)
    mu_x = sx * inv9
    mu_y = sy * inv9
    e_xx = sxx * inv9
    e_yy = syy * inv9
    e_xy = sxy * inv9
    mu_xx = mu_x * mu_x
    mu_yy = mu_y * mu_y
    mu_xy = mu_x * mu_y
    sig_x = e_xx - mu_xx
    sig_y = e_yy - mu_yy
    sig_xy = e_xy - mu_xy
    n = (2.0 * mu_xy + C1) * (2.0 * sig_xy + C2)
    d = (mu_xx + mu_yy + C1) * (sig_x + sig_y + C2)
    # EUP approximate reciprocal + one Newton-Raphson step (rel err ~2^-24,
    # well within the 1e-5 parity band vs an exact divide).
    r = pl.reciprocal(d, approx=True)
    r = r * (2.0 - d * r)
    return jnp.clip((1.0 - n * r) * 0.5, 0.0, 1.0)


def _ssim_kernel(x_ref, y_ref, o_ref, *, w_true):
    # Block: (P, H, W).  W may be lane-padded; w_true is the real image width.
    x = x_ref[...]
    y = y_ref[...]
    P, H, W = x.shape

    # ---- Interior: pure circular pooling (no boundary selects at all). ----
    def pool_circ(z):
        h = z + pltpu.roll(z, shift=1, axis=2) + pltpu.roll(z, shift=W - 1, axis=2)
        return h + pltpu.roll(h, shift=1, axis=1) + pltpu.roll(h, shift=H - 1, axis=1)

    sx = pool_circ(x)
    sy = pool_circ(y)
    sxx = pool_circ(x * x)
    syy = pool_circ(y * y)
    sxy = pool_circ(x * y)
    o_ref[...] = _ssim_from_sums(sx, sy, sxx, syy, sxy).astype(o_ref.dtype)

    # ---- Border fixup: recompute the 2 border rows / 2 border columns with
    # exact reflect(1) pooling on narrow strips and overwrite them with narrow
    # ref stores.  Touches only O(H + W) elements per plane, so the cost is
    # negligible for real image sizes. ----
    col = jax.lax.broadcasted_iota(jnp.int32, (1, 1, W), 2)
    first_col = col == 0
    last_col = col == (w_true - 1)
    row = jax.lax.broadcasted_iota(jnp.int32, (1, H, 1), 1)
    first_row = row == 0
    last_row = row == (H - 1)

    def hr3(w):  # reflect 3-tap along axis 2; w: (P, 1, W)
        wl = pltpu.roll(w, shift=1, axis=2)
        wr = pltpu.roll(w, shift=W - 1, axis=2)
        left = jnp.where(first_col, wr, wl)
        right = jnp.where(last_col, wl, wr)
        return w + left + right

    def vr3(w):  # reflect 3-tap along axis 1; w: (P, H, 1)
        wu = pltpu.roll(w, shift=1, axis=1)
        wd = pltpu.roll(w, shift=H - 1, axis=1)
        up = jnp.where(first_row, wd, wu)
        down = jnp.where(last_row, wu, wd)
        return w + up + down

    def row_strip(r0, r1):
        # Output row r0; reflect(1) makes the vertical window rows (r1, r0, r1),
        # i.e. the vertical sum is 1*row_r0 + 2*row_r1 for every statistic.
        xa = x_ref[:, r0:r0 + 1, :]
        xb = x_ref[:, r1:r1 + 1, :]
        ya = y_ref[:, r0:r0 + 1, :]
        yb = y_ref[:, r1:r1 + 1, :]
        return _ssim_from_sums(
            hr3(xa + 2.0 * xb),
            hr3(ya + 2.0 * yb),
            hr3(xa * xa + 2.0 * (xb * xb)),
            hr3(ya * ya + 2.0 * (yb * yb)),
            hr3(xa * ya + 2.0 * (xb * yb)),
        )

    def col_strip(c0, c1):
        # Output column c0; horizontal window columns are (c1, c0, c1).
        xa = x_ref[:, :, c0:c0 + 1]
        xb = x_ref[:, :, c1:c1 + 1]
        ya = y_ref[:, :, c0:c0 + 1]
        yb = y_ref[:, :, c1:c1 + 1]
        return _ssim_from_sums(
            vr3(xa + 2.0 * xb),
            vr3(ya + 2.0 * yb),
            vr3(xa * xa + 2.0 * (xb * xb)),
            vr3(ya * ya + 2.0 * (yb * yb)),
            vr3(xa * ya + 2.0 * (xb * yb)),
        )

    o_ref[:, 0:1, :] = row_strip(0, 1).astype(o_ref.dtype)
    o_ref[:, H - 1:H, :] = row_strip(H - 1, H - 2).astype(o_ref.dtype)
    o_ref[:, :, 0:1] = col_strip(0, 1).astype(o_ref.dtype)
    o_ref[:, :, w_true - 1:w_true] = col_strip(w_true - 1, w_true - 2).astype(o_ref.dtype)


def _vmem_limit_bytes():
    """Generation-aware VMEM limit: leave headroom for pipeline double-buffers
    and compiler scratch (v7x has only 64 MiB per TensorCore; v5e/v6e have
    128 MiB so the limit is raised well past the default scoped limit)."""
    cap = 64 * 1024 * 1024
    try:
        cap = int(pltpu.get_tpu_info().vmem_capacity_bytes)
    except Exception:
        pass
    limit = min(cap - 16 * 1024 * 1024, 100 * 1024 * 1024)
    return max(limit, 32 * 1024 * 1024)


def _choose_planes_per_step(n_planes, H, W, vmem_limit):
    """Planes per grid step: the biggest block that fits ~2/3 of the VMEM
    limit assuming ~24 live f32 planes per processed plane (double-buffered
    inputs, output, pooled sums and pooling/epilogue temporaries), while
    keeping the grid at >= 4 steps so both v7x TensorCores get pipelined work."""
    plane_bytes = H * W * 4
    budget = (vmem_limit * 2) // 3
    cap = max(1, budget // (24 * plane_bytes))
    target = max(1, -(-n_planes // 4))  # ceil(n/4): aim for >= 4 grid steps
    return max(1, min(cap, target, n_planes))


def ssim(x, y):
    """SSIM loss map, same semantics as the PyTorch SSIM module.

    x, y: (B, C, H, W) float32 with H >= 2 and W >= 2 (ReflectionPad2d(1)
    requires it).  Returns (B, C, H, W) float32 in [0, 1].
    """
    B, C, H, W = x.shape
    n = B * C
    xs = x.reshape(n, H, W).astype(jnp.float32)
    ys = y.reshape(n, H, W).astype(jnp.float32)

    # Lane-dense layout: pad wide, non-128-multiple widths so output stores
    # are full-width unmasked vst; the kernel's boundary logic uses the true W
    # and the pad is cropped afterwards.
    Wp = W
    if W > 128 and W % 128 != 0:
        Wp = ((W + 127) // 128) * 128
        pad = Wp - W
        xs = jnp.pad(xs, ((0, 0), (0, 0), (0, pad)))
        ys = jnp.pad(ys, ((0, 0), (0, 0), (0, pad)))

    vmem_limit = _vmem_limit_bytes()
    P = _choose_planes_per_step(n, H, Wp, vmem_limit)
    grid = (pl.cdiv(n, P),)  # trailing partial block is masked by Pallas

    # TODO(synk): for very large planes (e.g. 1080x1920) where even P=1 blows
    # the VMEM budget on v7x, tile H into row strips with a 1-row halo
    # (element-offset BlockSpec or manual make_async_copy of strip+2 rows).
    # TODO(synk): optional further step on v6e/v7x — offload the separable
    # 3-tap box filter to the MXU as banded matmuls (A_H @ Z @ A_W).

    kernel = functools.partial(_ssim_kernel, w_true=W)
    out = pl.pallas_call(
        kernel,
        out_shape=jax.ShapeDtypeStruct((n, H, Wp), jnp.float32),
        grid_spec=pltpu.PrefetchScalarGridSpec(
            num_scalar_prefetch=0,
            grid=grid,
            in_specs=[
                pl.BlockSpec((P, H, Wp), lambda i: (i, 0, 0)),
                pl.BlockSpec((P, H, Wp), lambda i: (i, 0, 0)),
            ],
            out_specs=pl.BlockSpec((P, H, Wp), lambda i: (i, 0, 0)),
        ),
        compiler_params=pltpu.CompilerParams(
            dimension_semantics=("parallel",),
            vmem_limit_bytes=vmem_limit,
        ),
    )(xs, ys)

    if Wp != W:
        out = out[:, :, :W]
    return out.reshape(B, C, H, W)


def _ssim_ref(x, y):
    """Pure-JAX reference mirroring the PyTorch module, for sanity checking."""
    xp = jnp.pad(x, ((0, 0), (0, 0), (1, 1), (1, 1)), mode="reflect")
    yp = jnp.pad(y, ((0, 0), (0, 0), (1, 1), (1, 1)), mode="reflect")

    def pool(z):
        B, C, Hp, Wp = z.shape
        H, W = Hp - 2, Wp - 2
        acc = jnp.zeros((B, C, H, W), z.dtype)
        for di in range(3):
            for dj in range(3):
                acc = acc + z[:, :, di:di + H, dj:dj + W]
        return acc / 9.0

    mu_x = pool(xp)
    mu_y = pool(yp)
    sigma_x = pool(xp * xp) - mu_x ** 2
    sigma_y = pool(yp * yp) - mu_y ** 2
    sigma_xy = pool(xp * yp) - mu_x * mu_y
    n = (2 * mu_x * mu_y + C1) * (2 * sigma_xy + C2)
    d = (mu_x ** 2 + mu_y ** 2 + C1) * (sigma_x + sigma_y + C2)
    return jnp.clip((1 - n / d) / 2, 0.0, 1.0)


if __name__ == "__main__":
    key = jax.random.PRNGKey(0)
    kx, ky = jax.random.split(key)

    # Primary small shape consistent with the module (NCHW image pairs).
    B, C, H, W = 2, 4, 16, 16
    x = jax.random.uniform(kx, (B, C, H, W), dtype=jnp.float32)
    y = jax.random.uniform(ky, (B, C, H, W), dtype=jnp.float32)
    out = jax.block_until_ready(ssim(x, y))
    ref = jax.block_until_ready(_ssim_ref(x, y))
    assert out.shape == (B, C, H, W)
    assert jnp.allclose(out, ref, atol=1e-5, rtol=1e-5)

    # Second shape exercising the lane-padding path (W > 128, W % 128 != 0)
    # and the cdiv partial trailing block (B*C not divisible by P).
    B2, CH2, H2, W2 = 1, 5, 8, 200
    x2 = jax.random.uniform(kx, (B2, CH2, H2, W2), dtype=jnp.float32)
    y2 = jax.random.uniform(ky, (B2, CH2, H2, W2), dtype=jnp.float32)
    out2 = jax.block_until_ready(ssim(x2, y2))
    ref2 = jax.block_until_ready(_ssim_ref(x2, y2))
    assert out2.shape == (B2, CH2, H2, W2)
    assert jnp.allclose(out2, ref2, atol=1e-5, rtol=1e-5)

    print("KERNEL_OK")
</pallas_src>

<mosaic_0001>
module attributes {stable_mosaic.version = 11 : i64} {
  func.func @_ssim_kernel(%arg0: i32, %arg1: memref<2x16x16xf32, #tpu.memory_space<vmem>>, %arg2: memref<2x16x16xf32, #tpu.memory_space<vmem>>, %arg3: memref<2x16x16xf32, #tpu.memory_space<vmem>>) attributes {dimension_semantics = [#tpu.dimension_semantics<parallel>], iteration_bounds = array<i64: 4>, scalar_prefetch = 0 : i64, scratch_operands = 0 : i64, tpu.core_type = #tpu.core_type<tc>, window_params = [{transform_indices = @transform_0, window_bounds = array<i64: 2, 16, 16>}, {transform_indices = @transform_1, window_bounds = array<i64: 2, 16, 16>}, {transform_indices = @transform_2, window_bounds = array<i64: 2, 16, 16>}]} {
    %c0 = arith.constant 0 : index
    %c0_0 = arith.constant 0 : index
    %c0_1 = arith.constant 0 : index
    %0 = vector.load %arg1[%c0, %c0_0, %c0_1] : memref<2x16x16xf32, #tpu.memory_space<vmem>>, vector<2x16x16xf32>
    %c0_2 = arith.constant 0 : index
    %c0_3 = arith.constant 0 : index
    %c0_4 = arith.constant 0 : index
    %1 = vector.load %arg2[%c0_2, %c0_3, %c0_4] : memref<2x16x16xf32, #tpu.memory_space<vmem>>, vector<2x16x16xf32>
    %c1_i32 = arith.constant 1 : i32
    %2 = tpu.dynamic_rotate %0 by %c1_i32 dim 2 : vector<2x16x16xf32>, i32 -> vector<2x16x16xf32>
    %3 = arith.addf %0, %2 : vector<2x16x16xf32>
    %c15_i32 = arith.constant 15 : i32
    %4 = tpu.dynamic_rotate %0 by %c15_i32 dim 2 : vector<2x16x16xf32>, i32 -> vector<2x16x16xf32>
    %5 = arith.addf %3, %4 : vector<2x16x16xf32>
    %c1_i32_5 = arith.constant 1 : i32
    %6 = tpu.dynamic_rotate %5 by %c1_i32_5 dim 1 : vector<2x16x16xf32>, i32 -> vector<2x16x16xf32>
    %7 = arith.addf %5, %6 : vector<2x16x16xf32>
    %c15_i32_6 = arith.constant 15 : i32
    %8 = tpu.dynamic_rotate %5 by %c15_i32_6 dim 1 : vector<2x16x16xf32>, i32 -> vector<2x16x16xf32>
    %9 = arith.addf %7, %8 : vector<2x16x16xf32>
    %c1_i32_7 = arith.constant 1 : i32
    %10 = tpu.dynamic_rotate %1 by %c1_i32_7 dim 2 : vector<2x16x16xf32>, i32 -> vector<2x16x16xf32>
    %11 = arith.addf %1, %10 : vector<2x16x16xf32>
    %c15_i32_8 = arith.constant 15 : i32
    %12 = tpu.dynamic_rotate %1 by %c15_i32_8 dim 2 : vector<2x16x16xf32>, i32 -> vector<2x16x16xf32>
    %13 = arith.addf %11, %12 : vector<2x16x16xf32>
    %c1_i32_9 = arith.constant 1 : i32
    %14 = tpu.dynamic_rotate %13 by %c1_i32_9 dim 1 : vector<2x16x16xf32>, i32 -> vector<2x16x16xf32>
    %15 = arith.addf %13, %14 : vector<2x16x16xf32>
    %c15_i32_10 = arith.constant 15 : i32
    %16 = tpu.dynamic_rotate %13 by %c15_i32_10 dim 1 : vector<2x16x16xf32>, i32 -> vector<2x16x16xf32>
    %17 = arith.addf %15, %16 : vector<2x16x16xf32>
    %18 = arith.mulf %0, %0 : vector<2x16x16xf32>
    %c1_i32_11 = arith.constant 1 : i32
    %19 = tpu.dynamic_rotate %18 by %c1_i32_11 dim 2 : vector<2x16x16xf32>, i32 -> vector<2x16x16xf32>
    %20 = arith.addf %18, %19 : vector<2x16x16xf32>
    %c15_i32_12 = arith.constant 15 : i32
    %21 = tpu.dynamic_rotate %18 by %c15_i32_12 dim 2 : vector<2x16x16xf32>, i32 -> vector<2x16x16xf32>
    %22 = arith.addf %20, %21 : vector<2x16x16xf32>
    %c1_i32_13 = arith.constant 1 : i32
    %23 = tpu.dynamic_rotate %22 by %c1_i32_13 dim 1 : vector<2x16x16xf32>, i32 -> vector<2x16x16xf32>
    %24 = arith.addf %22, %23 : vector<2x16x16xf32>
    %c15_i32_14 = arith.constant 15 : i32
    %25 = tpu.dynamic_rotate %22 by %c15_i32_14 dim 1 : vector<2x16x16xf32>, i32 -> vector<2x16x16xf32>
    %26 = arith.addf %24, %25 : vector<2x16x16xf32>
    %27 = arith.mulf %1, %1 : vector<2x16x16xf32>
    %c1_i32_15 = arith.constant 1 : i32
    %28 = tpu.dynamic_rotate %27 by %c1_i32_15 dim 2 : vector<2x16x16xf32>, i32 -> vector<2x16x16xf32>
    %29 = arith.addf %27, %28 : vector<2x16x16xf32>
    %c15_i32_16 = arith.constant 15 : i32
    %30 = tpu.dynamic_rotate %27 by %c15_i32_16 dim 2 : vector<2x16x16xf32>, i32 -> vector<2x16x16xf32>
    %31 = arith.addf %29, %30 : vector<2x16x16xf32>
    %c1_i32_17 = arith.constant 1 : i32
    %32 = tpu.dynamic_rotate %31 by %c1_i32_17 dim 1 : vector<2x16x16xf32>, i32 -> vector<2x16x16xf32>
    %33 = arith.addf %31, %32 : vector<2x16x16xf32>
    %c15_i32_18 = arith.constant 15 : i32
    %34 = tpu.dynamic_rotate %31 by %c15_i32_18 dim 1 : vector<2x16x16xf32>, i32 -> vector<2x16x16xf32>
    %35 = arith.addf %33, %34 : vector<2x16x16xf32>
    %36 = arith.mulf %0, %1 : vector<2x16x16xf32>
    %c1_i32_19 = arith.constant 1 : i32
    %37 = tpu.dynamic_rotate %36 by %c1_i32_19 dim 2 : vector<2x16x16xf32>, i32 -> vector<2x16x16xf32>
    %38 = arith.addf %36, %37 : vector<2x16x16xf32>
    %c15_i32_20 = arith.constant 15 : i32
    %39 = tpu.dynamic_rotate %36 by %c15_i32_20 dim 2 : vector<2x16x16xf32>, i32 -> vector<2x16x16xf32>
    %40 = arith.addf %38, %39 : vector<2x16x16xf32>
    %c1_i32_21 = arith.constant 1 : i32
    %41 = tpu.dynamic_rotate %40 by %c1_i32_21 dim 1 : vector<2x16x16xf32>, i32 -> vector<2x16x16xf32>
    %42 = arith.addf %40, %41 : vector<2x16x16xf32>
    %c15_i32_22 = arith.constant 15 : i32
    %43 = tpu.dynamic_rotate %40 by %c15_i32_22 dim 1 : vector<2x16x16xf32>, i32 -> vector<2x16x16xf32>
    %44 = arith.addf %42, %43 : vector<2x16x16xf32>
    %cst = arith.constant 0.111111112 : f32
    %45 = vector.broadcast %cst : f32 to vector<2x16x16xf32>
    %46 = arith.mulf %9, %45 : vector<2x16x16xf32>
    %cst_23 = arith.constant 0.111111112 : f32
    %47 = vector.broadcast %cst_23 : f32 to vector<2x16x16xf32>
    %48 = arith.mulf %17, %47 : vector<2x16x16xf32>
    %cst_24 = arith.constant 0.111111112 : f32
    %49 = vector.broadcast %cst_24 : f32 to vector<2x16x16xf32>
    %50 = arith.mulf %26, %49 : vector<2x16x16xf32>
    %cst_25 = arith.constant 0.111111112 : f32
    %51 = vector.broadcast %cst_25 : f32 to vector<2x16x16xf32>
    %52 = arith.mulf %35, %51 : vector<2x16x16xf32>
    %cst_26 = arith.constant 0.111111112 : f32
    %53 = vector.broadcast %cst_26 : f32 to vector<2x16x16xf32>
    %54 = arith.mulf %44, %53 : vector<2x16x16xf32>
    %55 = arith.mulf %46, %46 : vector<2x16x16xf32>
    %56 = arith.mulf %48, %48 : vector<2x16x16xf32>
    %57 = arith.mulf %46, %48 : vector<2x16x16xf32>
    %58 = arith.subf %50, %55 : vector<2x16x16xf32>
    %59 = arith.subf %52, %56 : vector<2x16x16xf32>
    %60 = arith.subf %54, %57 : vector<2x16x16xf32>
    %cst_27 = arith.constant 2.000000e+00 : f32
    %61 = vector.broadcast %cst_27 : f32 to vector<2x16x16xf32>
    %62 = arith.mulf %61, %57 : vector<2x16x16xf32>
    %cst_28 = arith.constant 9.99999974E-5 : f32
    %63 = vector.broadcast %cst_28 : f32 to vector<2x16x16xf32>
    %64 = arith.addf %62, %63 : vector<2x16x16xf32>
    %cst_29 = arith.constant 2.000000e+00 : f32
    %65 = vector.broadcast %cst_29 : f32 to vector<2x16x16xf32>
    %66 = arith.mulf %65, %60 : vector<2x16x16xf32>
    %cst_30 = arith.constant 8.99999984E-4 : f32
    %67 = vector.broadcast %cst_30 : f32 to vector<2x16x16xf32>
    %68 = arith.addf %66, %67 : vector<2x16x16xf32>
    %69 = arith.mulf %64, %68 : vector<2x16x16xf32>
    %70 = arith.addf %55, %56 : vector<2x16x16xf32>
    %cst_31 = arith.constant 9.99999974E-5 : f32
    %71 = vector.broadcast %cst_31 : f32 to vector<2x16x16xf32>
    %72 = arith.addf %70, %71 : vector<2x16x16xf32>
    %73 = arith.addf %58, %59 : vector<2x16x16xf32>
    %cst_32 = arith.constant 8.99999984E-4 : f32
    %74 = vector.broadcast %cst_32 : f32 to vector<2x16x16xf32>
    %75 = arith.addf %73, %74 : vector<2x16x16xf32>
    %76 = arith.mulf %72, %75 : vector<2x16x16xf32>
    %77 = tpu.reciprocal %76 {approx = true} : vector<2x16x16xf32> -> vector<2x16x16xf32>
    %78 = arith.mulf %76, %77 : vector<2x16x16xf32>
    %cst_33 = arith.constant 2.000000e+00 : f32
    %79 = vector.broadcast %cst_33 : f32 to vector<2x16x16xf32>
    %80 = arith.subf %79, %78 : vector<2x16x16xf32>
    %81 = arith.mulf %77, %80 : vector<2x16x16xf32>
    %82 = arith.mulf %69, %81 : vector<2x16x16xf32>
    %cst_34 = arith.constant 1.000000e+00 : f32
    %83 = vector.broadcast %cst_34 : f32 to vector<2x16x16xf32>
    %84 = arith.subf %83, %82 : vector<2x16x16xf32>
    %cst_35 = arith.constant 5.000000e-01 : f32
    %85 = vector.broadcast %cst_35 : f32 to vector<2x16x16xf32>
    %86 = arith.mulf %84, %85 : vector<2x16x16xf32>
    %cst_36 = arith.constant 0.000000e+00 : f32
    %cst_37 = arith.constant 1.000000e+00 : f32
    %87 = vector.broadcast %cst_36 : f32 to vector<2x16x16xf32>
    %88 = arith.maximumf %87, %86 : vector<2x16x16xf32>
    %89 = vector.broadcast %cst_37 : f32 to vector<2x16x16xf32>
    %90 = arith.minimumf %89, %88 : vector<2x16x16xf32>
    %c0_38 = arith.constant 0 : index
    %c0_39 = arith.constant 0 : index
    %c0_40 = arith.constant 0 : index
    %91 = vector.load %arg3[%c0_38, %c0_39, %c0_40] : memref<2x16x16xf32, #tpu.memory_space<vmem>>, vector<2x16x16xf32>
    tpu.vector_store %arg3[%c0_38, %c0_39, %c0_40], %90 {strides = array<i32>} : memref<2x16x16xf32, #tpu.memory_space<vmem>>, vector<2x16x16xf32>,
    %92 = tpu.iota {dimensions = array<i32: 2>} : vector<1x1x16xi32>
    %c0_i32 = arith.constant 0 : i32
    %93 = vector.broadcast %c0_i32 : i32 to vector<1x1x16xi32>
    %94 = arith.cmpi eq, %92, %93 : vector<1x1x16xi32>
    %c15_i32_41 = arith.constant 15 : i32
    %95 = vector.broadcast %c15_i32_41 : i32 to vector<1x1x16xi32>
    %96 = arith.cmpi eq, %92, %95 : vector<1x1x16xi32>
    %97 = tpu.iota {dimensions = array<i32: 1>} : vector<1x16x1xi32>
    %c0_i32_42 = arith.constant 0 : i32
    %98 = vector.broadcast %c0_i32_42 : i32 to vector<1x16x1xi32>
    %99 = arith.cmpi eq, %97, %98 : vector<1x16x1xi32>
    %c15_i32_43 = arith.constant 15 : i32
    %100 = vector.broadcast %c15_i32_43 : i32 to vector<1x16x1xi32>
    %101 = arith.cmpi eq, %97, %100 : vector<1x16x1xi32>
    %c0_44 = arith.constant 0 : index
    %c0_45 = arith.constant 0 : index
    %c0_46 = arith.constant 0 : index
    %102 = vector.load %arg1[%c0_44, %c0_45, %c0_46] : memref<2x16x16xf32, #tpu.memory_space<vmem>>, vector<2x1x16xf32>
    %c0_47 = arith.constant 0 : index
    %c1 = arith.constant 1 : index
    %c0_48 = arith.constant 0 : index
    %103 = vector.load %arg1[%c0_47, %c1, %c0_48] : memref<2x16x16xf32, #tpu.memory_space<vmem>>, vector<2x1x16xf32>
    %c0_49 = arith.constant 0 : index
    %c0_50 = arith.constant 0 : index
    %c0_51 = arith.constant 0 : index
    %104 = vector.load %arg2[%c0_49, %c0_50, %c0_51] : memref<2x16x16xf32, #tpu.memory_space<vmem>>, vector<2x1x16xf32>
    %c0_52 = arith.constant 0 : index
    %c1_53 = arith.constant 1 : index
    %c0_54 = arith.constant 0 : index
    %105 = vector.load %arg2[%c0_52, %c1_53, %c0_54] : memref<2x16x16xf32, #tpu.memory_space<vmem>>, vector<2x1x16xf32>
    %cst_55 = arith.constant 2.000000e+00 : f32
    %106 = vector.broadcast %cst_55 : f32 to vector<2x1x16xf32>
    %107 = arith.mulf %106, %103 : vector<2x1x16xf32>
    %108 = arith.addf %102, %107 : vector<2x1x16xf32>
    %c1_i32_56 = arith.constant 1 : i32
    %109 = tpu.dynamic_rotate %108 by %c1_i32_56 dim 2 : vector<2x1x16xf32>, i32 -> vector<2x1x16xf32>
    %c15_i32_57 = arith.constant 15 : i32
    %110 = tpu.dynamic_rotate %108 by %c15_i32_57 dim 2 : vector<2x1x16xf32>, i32 -> vector<2x1x16xf32>
    %111 = vector.shape_cast %94 : vector<1x1x16xi1> to vector<1x1x16xi1>
    %112 = vector.broadcast %111 : vector<1x1x16xi1> to vector<2x1x16xi1>
    %113 = arith.select %112, %110, %109 : vector<2x1x16xi1>, vector<2x1x16xf32>
    %114 = vector.shape_cast %96 : vector<1x1x16xi1> to vector<1x1x16xi1>
    %115 = vector.broadcast %114 : vector<1x1x16xi1> to vector<2x1x16xi1>
    %116 = arith.select %115, %109, %110 : vector<2x1x16xi1>, vector<2x1x16xf32>
    %117 = arith.addf %108, %113 : vector<2x1x16xf32>
    %118 = arith.addf %117, %116 : vector<2x1x16xf32>
    %cst_58 = arith.constant 2.000000e+00 : f32
    %119 = vector.broadcast %cst_58 : f32 to vector<2x1x16xf32>
    %120 = arith.mulf %119, %105 : vector<2x1x16xf32>
    %121 = arith.addf %104, %120 : vector<2x1x16xf32>
    %c1_i32_59 = arith.constant 1 : i32
    %122 = tpu.dynamic_rotate %121 by %c1_i32_59 dim 2 : vector<2x1x16xf32>, i32 -> vector<2x1x16xf32>
    %c15_i32_60 = arith.constant 15 : i32
    %123 = tpu.dynamic_rotate %121 by %c15_i32_60 dim 2 : vector<2x1x16xf32>, i32 -> vector<2x1x16xf32>
    %124 = vector.shape_cast %94 : vector<1x1x16xi1> to vector<1x1x16xi1>
    %125 = vector.broadcast %124 : vector<1x1x16xi1> to vector<2x1x16xi1>
    %126 = arith.select %125, %123, %122 : vector<2x1x16xi1>, vector<2x1x16xf32>
    %127 = vector.shape_cast %96 : vector<1x1x16xi1> to vector<1x1x16xi1>
    %128 = vector.broadcast %127 : vector<1x1x16xi1> to vector<2x1x16xi1>
    %129 = arith.select %128, %122, %123 : vector<2x1x16xi1>, vector<2x1x16xf32>
    %130 = arith.addf %121, %126 : vector<2x1x16xf32>
    %131 = arith.addf %130, %129 : vector<2x1x16xf32>
    %132 = arith.mulf %102, %102 : vector<2x1x16xf32>
    %133 = arith.mulf %103, %103 : vector<2x1x16xf32>
    %cst_61 = arith.constant 2.000000e+00 : f32
    %134 = vector.broadcast %cst_61 : f32 to vector<2x1x16xf32>
    %135 = arith.mulf %134, %133 : vector<2x1x16xf32>
    %136 = arith.addf %132, %135 : vector<2x1x16xf32>
    %c1_i32_62 = arith.constant 1 : i32
    %137 = tpu.dynamic_rotate %136 by %c1_i32_62 dim 2 : vector<2x1x16xf32>, i32 -> vector<2x1x16xf32>
    %c15_i32_63 = arith.constant 15 : i32
    %138 = tpu.dynamic_rotate %136 by %c15_i32_63 dim 2 : vector<2x1x16xf32>, i32 -> vector<2x1x16xf32>
    %139 = vector.shape_cast %94 : vector<1x1x16xi1> to vector<1x1x16xi1>
    %140 = vector.broadcast %139 : vector<1x1x16xi1> to vector<2x1x16xi1>
    %141 = arith.select %140, %138, %137 : vector<2x1x16xi1>, vector<2x1x16xf32>
    %142 = vector.shape_cast %96 : vector<1x1x16xi1> to vector<1x1x16xi1>
    %143 = vector.broadcast %142 : vector<1x1x16xi1> to vector<2x1x16xi1>
    %144 = arith.select %143, %137, %138 : vector<2x1x16xi1>, vector<2x1x16xf32>
    %145 = arith.addf %136, %141 : vector<2x1x16xf32>
    %146 = arith.addf %145, %144 : vector<2x1x16xf32>
    %147 = arith.mulf %104, %104 : vector<2x1x16xf32>
    %148 = arith.mulf %105, %105 : vector<2x1x16xf32>
    %cst_64 = arith.constant 2.000000e+00 : f32
    %149 = vector.broadcast %cst_64 : f32 to vector<2x1x16xf32>
    %150 = arith.mulf %149, %148 : vector<2x1x16xf32>
    %151 = arith.addf %147, %150 : vector<2x1x16xf32>
    %c1_i32_65 = arith.constant 1 : i32
    %152 = tpu.dynamic_rotate %151 by %c1_i32_65 dim 2 : vector<2x1x16xf32>, i32 -> vector<2x1x16xf32>
    %c15_i32_66 = arith.constant 15 : i32
    %153 = tpu.dynamic_rotate %151 by %c15_i32_66 dim 2 : vector<2x1x16xf32>, i32 -> vector<2x1x16xf32>
    %154 = vector.shape_cast %94 : vector<1x1x16xi1> to vector<1x1x16xi1>
    %155 = vector.broadcast %154 : vector<1x1x16xi1> to vector<2x1x16xi1>
    %156 = arith.select %155, %153, %152 : vector<2x1x16xi1>, vector<2x1x16xf32>
    %157 = vector.shape_cast %96 : vector<1x1x16xi1> to vector<1x1x16xi1>
    %158 = vector.broadcast %157 : vector<1x1x16xi1> to vector<2x1x16xi1>
    %159 = arith.select %158, %152, %153 : vector<2x1x16xi1>, vector<2x1x16xf32>
    %160 = arith.addf %151, %156 : vector<2x1x16xf32>
    %161 = arith.addf %160, %159 : vector<2x1x16xf32>
    %162 = arith.mulf %102, %104 : vector<2x1x16xf32>
    %163 = arith.mulf %103, %105 : vector<2x1x16xf32>
    %cst_67 = arith.constant 2.000000e+00 : f32
    %164 = vector.broadcast %cst_67 : f32 to vector<2x1x16xf32>
    %165 = arith.mulf %164, %163 : vector<2x1x16xf32>
    %166 = arith.addf %162, %165 : vector<2x1x16xf32>
    %c1_i32_68 = arith.constant 1 : i32
    %167 = tpu.dynamic_rotate %166 by %c1_i32_68 dim 2 : vector<2x1x16xf32>, i32 -> vector<2x1x16xf32>
    %c15_i32_69 = arith.constant 15 : i32
    %168 = tpu.dynamic_rotate %166 by %c15_i32_69 dim 2 : vector<2x1x16xf32>, i32 -> vector<2x1x16xf32>
    %169 = vector.shape_cast %94 : vector<1x1x16xi1> to vector<1x1x16xi1>
    %170 = vector.broadcast %169 : vector<1x1x16xi1> to vector<2x1x16xi1>
    %171 = arith.select %170, %168, %167 : vector<2x1x16xi1>, vector<2x1x16xf32>
    %172 = vector.shape_cast %96 : vector<1x1x16xi1> to vector<1x1x16xi1>
    %173 = vector.broadcast %172 : vector<1x1x16xi1> to vector<2x1x16xi1>
    %174 = arith.select %173, %167, %168 : vector<2x1x16xi1>, vector<2x1x16xf32>
    %175 = arith.addf %166, %171 : vector<2x1x16xf32>
    %176 = arith.addf %175, %174 : vector<2x1x16xf32>
    %cst_70 = arith.constant 0.111111112 : f32
    %177 = vector.broadcast %cst_70 : f32 to vector<2x1x16xf32>
    %178 = arith.mulf %118, %177 : vector<2x1x16xf32>
    %cst_71 = arith.constant 0.111111112 : f32
    %179 = vector.broadcast %cst_71 : f32 to vector<2x1x16xf32>
    %180 = arith.mulf %131, %179 : vector<2x1x16xf32>
    %cst_72 = arith.constant 0.111111112 : f32
    %181 = vector.broadcast %cst_72 : f32 to vector<2x1x16xf32>
    %182 = arith.mulf %146, %181 : vector<2x1x16xf32>
    %cst_73 = arith.constant 0.111111112 : f32
    %183 = vector.broadcast %cst_73 : f32 to vector<2x1x16xf32>
    %184 = arith.mulf %161, %183 : vector<2x1x16xf32>
    %cst_74 = arith.constant 0.111111112 : f32
    %185 = vector.broadcast %cst_74 : f32 to vector<2x1x16xf32>
    %186 = arith.mulf %176, %185 : vector<2x1x16xf32>
    %187 = arith.mulf %178, %178 : vector<2x1x16xf32>
    %188 = arith.mulf %180, %180 : vector<2x1x16xf32>
    %189 = arith.mulf %178, %180 : vector<2x1x16xf32>
    %190 = arith.subf %182, %187 : vector<2x1x16xf32>
    %191 = arith.subf %184, %188 : vector<2x1x16xf32>
    %192 = arith.subf %186, %189 : vector<2x1x16xf32>
    %cst_75 = arith.constant 2.000000e+00 : f32
    %193 = vector.broadcast %cst_75 : f32 to vector<2x1x16xf32>
    %194 = arith.mulf %193, %189 : vector<2x1x16xf32>
    %cst_76 = arith.constant 9.99999974E-5 : f32
    %195 = vector.broadcast %cst_76 : f32 to vector<2x1x16xf32>
    %196 = arith.addf %194, %195 : vector<2x1x16xf32>
    %cst_77 = arith.constant 2.000000e+00 : f32
    %197 = vector.broadcast %cst_77 : f32 to vector<2x1x16xf32>
    %198 = arith.mulf %197, %192 : vector<2x1x16xf32>
    %cst_78 = arith.constant 8.99999984E-4 : f32
    %199 = vector.broadcast %cst_78 : f32 to vector<2x1x16xf32>
    %200 = arith.addf %198, %199 : vector<2x1x16xf32>
    %201 = arith.mulf %196, %200 : vector<2x1x16xf32>
    %202 = arith.addf %187, %188 : vector<2x1x16xf32>
    %cst_79 = arith.constant 9.99999974E-5 : f32
    %203 = vector.broadcast %cst_79 : f32 to vector<2x1x16xf32>
    %204 = arith.addf %202, %203 : vector<2x1x16xf32>
    %205 = arith.addf %190, %191 : vector<2x1x16xf32>
    %cst_80 = arith.constant 8.99999984E-4 : f32
    %206 = vector.broadcast %cst_80 : f32 to vector<2x1x16xf32>
    %207 = arith.addf %205, %206 : vector<2x1x16xf32>
    %208 = arith.mulf %204, %207 : vector<2x1x16xf32>
    %209 = tpu.reciprocal %208 {approx = true} : vector<2x1x16xf32> -> vector<2x1x16xf32>
    %210 = arith.mulf %208, %209 : vector<2x1x16xf32>
    %cst_81 = arith.constant 2.000000e+00 : f32
    %211 = vector.broadcast %cst_81 : f32 to vector<2x1x16xf32>
    %212 = arith.subf %211, %210 : vector<2x1x16xf32>
    %213 = arith.mulf %209, %212 : vector<2x1x16xf32>
    %214 = arith.mulf %201, %213 : vector<2x1x16xf32>
    %cst_82 = arith.constant 1.000000e+00 : f32
    %215 = vector.broadcast %cst_82 : f32 to vector<2x1x16xf32>
    %216 = arith.subf %215, %214 : vector<2x1x16xf32>
    %cst_83 = arith.constant 5.000000e-01 : f32
    %217 = vector.broadcast %cst_83 : f32 to vector<2x1x16xf32>
    %218 = arith.mulf %216, %217 : vector<2x1x16xf32>
    %cst_84 = arith.constant 0.000000e+00 : f32
    %cst_85 = arith.constant 1.000000e+00 : f32
    %219 = vector.broadcast %cst_84 : f32 to vector<2x1x16xf32>
    %220 = arith.maximumf %219, %218 : vector<2x1x16xf32>
    %221 = vector.broadcast %cst_85 : f32 to vector<2x1x16xf32>
    %222 = arith.minimumf %221, %220 : vector<2x1x16xf32>
    %c0_86 = arith.constant 0 : index
    %c0_87 = arith.constant 0 : index
    %c0_88 = arith.constant 0 : index
    %223 = vector.load %arg3[%c0_86, %c0_87, %c0_88] : memref<2x16x16xf32, #tpu.memory_space<vmem>>, vector<2x1x16xf32>
    tpu.vector_store %arg3[%c0_86, %c0_87, %c0_88], %222 {strides = array<i32>} : memref<2x16x16xf32, #tpu.memory_space<vmem>>, vector<2x1x16xf32>,
    %c0_89 = arith.constant 0 : index
    %c15 = arith.constant 15 : index
    %c0_90 = arith.constant 0 : index
    %224 = vector.load %arg1[%c0_89, %c15, %c0_90] : memref<2x16x16xf32, #tpu.memory_space<vmem>>, vector<2x1x16xf32>
    %c0_91 = arith.constant 0 : index
    %c14 = arith.constant 14 : index
    %c0_92 = arith.constant 0 : index
    %225 = vector.load %arg1[%c0_91, %c14, %c0_92] : memref<2x16x16xf32, #tpu.memory_space<vmem>>, vector<2x1x16xf32>
    %c0_93 = arith.constant 0 : index
    %c15_94 = arith.constant 15 : index
    %c0_95 = arith.constant 0 : index
    %226 = vector.load %arg2[%c0_93, %c15_94, %c0_95] : memref<2x16x16xf32, #tpu.memory_space<vmem>>, vector<2x1x16xf32>
    %c0_96 = arith.constant 0 : index
    %c14_97 = arith.constant 14 : index
    %c0_98 = arith.constant 0 : index
    %227 = vector.load %arg2[%c0_96, %c14_97, %c0_98] : memref<2x16x16xf32, #tpu.memory_space<vmem>>, vector<2x1x16xf32>
    %cst_99 = arith.constant 2.000000e+00 : f32
    %228 = vector.broadcast %cst_99 : f32 to vector<2x1x16xf32>
    %229 = arith.mulf %228, %225 : vector<2x1x16xf32>
    %230 = arith.addf %224, %229 : vector<2x1x16xf32>
    %c1_i32_100 = arith.constant 1 : i32
    %231 = tpu.dynamic_rotate %230 by %c1_i32_100 dim 2 : vector<2x1x16xf32>, i32 -> vector<2x1x16xf32>
    %c15_i32_101 = arith.constant 15 : i32
    %232 = tpu.dynamic_rotate %230 by %c15_i32_101 dim 2 : vector<2x1x16xf32>, i32 -> vector<2x1x16xf32>
    %233 = vector.shape_cast %94 : vector<1x1x16xi1> to vector<1x1x16xi1>
    %234 = vector.broadcast %233 : vector<1x1x16xi1> to vector<2x1x16xi1>
    %235 = arith.select %234, %232, %231 : vector<2x1x16xi1>, vector<2x1x16xf32>
    %236 = vector.shape_cast %96 : vector<1x1x16xi1> to vector<1x1x16xi1>
    %237 = vector.broadcast %236 : vector<1x1x16xi1> to vector<2x1x16xi1>
    %238 = arith.select %237, %231, %232 : vector<2x1x16xi1>, vector<2x1x16xf32>
    %239 = arith.addf %230, %235 : vector<2x1x16xf32>
    %240 = arith.addf %239, %238 : vector<2x1x16xf32>
    %cst_102 = arith.constant 2.000000e+00 : f32
    %241 = vector.broadcast %cst_102 : f32 to vector<2x1x16xf32>
    %242 = arith.mulf %241, %227 : vector<2x1x16xf32>
    %243 = arith.addf %226, %242 : vector<2x1x16xf32>
    %c1_i32_103 = arith.constant 1 : i32
    %244 = tpu.dynamic_rotate %243 by %c1_i32_103 dim 2 : vector<2x1x16xf32>, i32 -> vector<2x1x16xf32>
    %c15_i32_104 = arith.constant 15 : i32
    %245 = tpu.dynamic_rotate %243 by %c15_i32_104 dim 2 : vector<2x1x16xf32>, i32 -> vector<2x1x16xf32>
    %246 = vector.shape_cast %94 : vector<1x1x16xi1> to vector<1x1x16xi1>
    %247 = vector.broadcast %246 : vector<1x1x16xi1> to vector<2x1x16xi1>
    %248 = arith.select %247, %245, %244 : vector<2x1x16xi1>, vector<2x1x16xf32>
    %249 = vector.shape_cast %96 : vector<1x1x16xi1> to vector<1x1x16xi1>
    %250 = vector.broadcast %249 : vector<1x1x16xi1> to vector<2x1x16xi1>
    %251 = arith.select %250, %244, %245 : vector<2x1x16xi1>, vector<2x1x16xf32>
    %252 = arith.addf %243, %248 : vector<2x1x16xf32>
    %253 = arith.addf %252, %251 : vector<2x1x16xf32>
    %254 = arith.mulf %224, %224 : vector<2x1x16xf32>
    %255 = arith.mulf %225, %225 : vector<2x1x16xf32>
    %cst_105 = arith.constant 2.000000e+00 : f32
    %256 = vector.broadcast %cst_105 : f32 to vector<2x1x16xf32>
    %257 = arith.mulf %256, %255 : vector<2x1x16xf32>
    %258 = arith.addf %254, %257 : vector<2x1x16xf32>
    %c1_i32_106 = arith.constant 1 : i32
    %259 = tpu.dynamic_rotate %258 by %c1_i32_106 dim 2 : vector<2x1x16xf32>, i32 -> vector<2x1x16xf32>
    %c15_i32_107 = arith.constant 15 : i32
    %260 = tpu.dynamic_rotate %258 by %c15_i32_107 dim 2 : vector<2x1x16xf32>, i32 -> vector<2x1x16xf32>
    %261 = vector.shape_cast %94 : vector<1x1x16xi1> to vector<1x1x16xi1>
    %262 = vector.broadcast %261 : vector<1x1x16xi1> to vector<2x1x16xi1>
    %263 = arith.select %262, %260, %259 : vector<2x1x16xi1>, vector<2x1x16xf32>
    %264 = vector.shape_cast %96 : vector<1x1x16xi1> to vector<1x1x16xi1>
    %265 = vector.broadcast %264 : vector<1x1x16xi1> to vector<2x1x16xi1>
    %266 = arith.select %265, %259, %260 : vector<2x1x16xi1>, vector<2x1x16xf32>
    %267 = arith.addf %258, %263 : vector<2x1x16xf32>
    %268 = arith.addf %267, %266 : vector<2x1x16xf32>
    %269 = arith.mulf %226, %226 : vector<2x1x16xf32>
    %270 = arith.mulf %227, %227 : vector<2x1x16xf32>
    %cst_108 = arith.constant 2.000000e+00 : f32
    %271 = vector.broadcast %cst_108 : f32 to vector<2x1x16xf32>
    %272 = arith.mulf %271, %270 : vector<2x1x16xf32>
    %273 = arith.addf %269, %272 : vector<2x1x16xf32>
    %c1_i32_109 = arith.constant 1 : i32
    %274 = tpu.dynamic_rotate %273 by %c1_i32_109 dim 2 : vector<2x1x16xf32>, i32 -> vector<2x1x16xf32>
    %c15_i32_110 = arith.constant 15 : i32
    %275 = tpu.dynamic_rotate %273 by %c15_i32_110 dim 2 : vector<2x1x16xf32>, i32 -> vector<2x1x16xf32>
    %276 = vector.shape_cast %94 : vector<1x1x16xi1> to vector<1x1x16xi1>
    %277 = vector.broadcast %276 : vector<1x1x16xi1> to vector<2x1x16xi1>
    %278 = arith.select %277, %275, %274 : vector<2x1x16xi1>, vector<2x1x16xf32>
    %279 = vector.shape_cast %96 : vector<1x1x16xi1> to vector<1x1x16xi1>
    %280 = vector.broadcast %279 : vector<1x1x16xi1> to vector<2x1x16xi1>
    %281 = arith.select %280, %274, %275 : vector<2x1x16xi1>, vector<2x1x16xf32>
    %282 = arith.addf %273, %278 : vector<2x1x16xf32>
    %283 = arith.addf %282, %281 : vector<2x1x16xf32>
    %284 = arith.mulf %224, %226 : vector<2x1x16xf32>
    %285 = arith.mulf %225, %227 : vector<2x1x16xf32>
    %cst_111 = arith.constant 2.000000e+00 : f32
    %286 = vector.broadcast %cst_111 : f32 to vector<2x1x16xf32>
    %287 = arith.mulf %286, %285 : vector<2x1x16xf32>
    %288 = arith.addf %284, %287 : vector<2x1x16xf32>
    %c1_i32_112 = arith.constant 1 : i32
    %289 = tpu.dynamic_rotate %288 by %c1_i32_112 dim 2 : vector<2x1x16xf32>, i32 -> vector<2x1x16xf32>
    %c15_i32_113 = arith.constant 15 : i32
    %290 = tpu.dynamic_rotate %288 by %c15_i32_113 dim 2 : vector<2x1x16xf32>, i32 -> vector<2x1x16xf32>
    %291 = vector.shape_cast %94 : vector<1x1x16xi1> to vector<1x1x16xi1>
    %292 = vector.broadcast %291 : vector<1x1x16xi1> to vector<2x1x16xi1>
    %293 = arith.select %292, %290, %289 : vector<2x1x16xi1>, vector<2x1x16xf32>
    %294 = vector.shape_cast %96 : vector<1x1x16xi1> to vector<1x1x16xi1>
    %295 = vector.broadcast %294 : vector<1x1x16xi1> to vector<2x1x16xi1>
    %296 = arith.select %295, %289, %290 : vector<2x1x16xi1>, vector<2x1x16xf32>
    %297 = arith.addf %288, %293 : vector<2x1x16xf32>
    %298 = arith.addf %297, %296 : vector<2x1x16xf32>
    %cst_114 = arith.constant 0.111111112 : f32
    %299 = vector.broadcast %cst_114 : f32 to vector<2x1x16xf32>
    %300 = arith.mulf %240, %299 : vector<2x1x16xf32>
    %cst_115 = arith.constant 0.111111112 : f32
    %301 = vector.broadcast %cst_115 : f32 to vector<2x1x16xf32>
    %302 = arith.mulf %253, %301 : vector<2x1x16xf32>
    %cst_116 = arith.constant 0.111111112 : f32
    %303 = vector.broadcast %cst_116 : f32 to vector<2x1x16xf32>
    %304 = arith.mulf %268, %303 : vector<2x1x16xf32>
    %cst_117 = arith.constant 0.111111112 : f32
    %305 = vector.broadcast %cst_117 : f32 to vector<2x1x16xf32>
    %306 = arith.mulf %283, %305 : vector<2x1x16xf32>
    %cst_118 = arith.constant 0.111111112 : f32
    %307 = vector.broadcast %cst_118 : f32 to vector<2x1x16xf32>
    %308 = arith.mulf %298, %307 : vector<2x1x16xf32>
    %309 = arith.mulf %300, %300 : vector<2x1x16xf32>
    %310 = arith.mulf %302, %302 : vector<2x1x16xf32>
    %311 = arith.mulf %300, %302 : vector<2x1x16xf32>
    %312 = arith.subf %304, %309 : vector<2x1x16xf32>
    %313 = arith.subf %306, %310 : vector<2x1x16xf32>
    %314 = arith.subf %308, %311 : vector<2x1x16xf32>
    %cst_119 = arith.constant 2.000000e+00 : f32
    %315 = vector.broadcast %cst_119 : f32 to vector<2x1x16xf32>
    %316 = arith.mulf %315, %311 : vector<2x1x16xf32>
    %cst_120 = arith.constant 9.99999974E-5 : f32
    %317 = vector.broadcast %cst_120 : f32 to vector<2x1x16xf32>
    %318 = arith.addf %316, %317 : vector<2x1x16xf32>
    %cst_121 = arith.constant 2.000000e+00 : f32
    %319 = vector.broadcast %cst_121 : f32 to vector<2x1x16xf32>
    %320 = arith.mulf %319, %314 : vector<2x1x16xf32>
    %cst_122 = arith.constant 8.99999984E-4 : f32
    %321 = vector.broadcast %cst_122 : f32 to vector<2x1x16xf32>
    %322 = arith.addf %320, %321 : vector<2x1x16xf32>
    %323 = arith.mulf %318, %322 : vector<2x1x16xf32>
    %324 = arith.addf %309, %310 : vector<2x1x16xf32>
    %cst_123 = arith.constant 9.99999974E-5 : f32
    %325 = vector.broadcast %cst_123 : f32 to vector<2x1x16xf32>
    %326 = arith.addf %324, %325 : vector<2x1x16xf32>
    %327 = arith.addf %312, %313 : vector<2x1x16xf32>
    %cst_124 = arith.constant 8.99999984E-4 : f32
    %328 = vector.broadcast %cst_124 : f32 to vector<2x1x16xf32>
    %329 = arith.addf %327, %328 : vector<2x1x16xf32>
    %330 = arith.mulf %326, %329 : vector<2x1x16xf32>
    %331 = tpu.reciprocal %330 {approx = true} : vector<2x1x16xf32> -> vector<2x1x16xf32>
    %332 = arith.mulf %330, %331 : vector<2x1x16xf32>
    %cst_125 = arith.constant 2.000000e+00 : f32
    %333 = vector.broadcast %cst_125 : f32 to vector<2x1x16xf32>
    %334 = arith.subf %333, %332 : vector<2x1x16xf32>
    %335 = arith.mulf %331, %334 : vector<2x1x16xf32>
    %336 = arith.mulf %323, %335 : vector<2x1x16xf32>
    %cst_126 = arith.constant 1.000000e+00 : f32
    %337 = vector.broadcast %cst_126 : f32 to vector<2x1x16xf32>
    %338 = arith.subf %337, %336 : vector<2x1x16xf32>
    %cst_127 = arith.constant 5.000000e-01 : f32
    %339 = vector.broadcast %cst_127 : f32 to vector<2x1x16xf32>
    %340 = arith.mulf %338, %339 : vector<2x1x16xf32>
    %cst_128 = arith.constant 0.000000e+00 : f32
    %cst_129 = arith.constant 1.000000e+00 : f32
    %341 = vector.broadcast %cst_128 : f32 to vector<2x1x16xf32>
    %342 = arith.maximumf %341, %340 : vector<2x1x16xf32>
    %343 = vector.broadcast %cst_129 : f32 to vector<2x1x16xf32>
    %344 = arith.minimumf %343, %342 : vector<2x1x16xf32>
    %c0_130 = arith.constant 0 : index
    %c15_131 = arith.constant 15 : index
    %c0_132 = arith.constant 0 : index
    %345 = vector.load %arg3[%c0_130, %c15_131, %c0_132] : memref<2x16x16xf32, #tpu.memory_space<vmem>>, vector<2x1x16xf32>
    tpu.vector_store %arg3[%c0_130, %c15_131, %c0_132], %344 {strides = array<i32>} : memref<2x16x16xf32, #tpu.memory_space<vmem>>, vector<2x1x16xf32>,
    %c0_133 = arith.constant 0 : index
    %c0_134 = arith.constant 0 : index
    %c0_135 = arith.constant 0 : index
    %346 = vector.load %arg1[%c0_133, %c0_134, %c0_135] : memref<2x16x16xf32, #tpu.memory_space<vmem>>, vector<2x16x1xf32>
    %c0_136 = arith.constant 0 : index
    %c0_137 = arith.constant 0 : index
    %c1_138 = arith.constant 1 : index
    %347 = vector.load %arg1[%c0_136, %c0_137, %c1_138] : memref<2x16x16xf32, #tpu.memory_space<vmem>>, vector<2x16x1xf32>
    %c0_139 = arith.constant 0 : index
    %c0_140 = arith.constant 0 : index
    %c0_141 = arith.constant 0 : index
    %348 = vector.load %arg2[%c0_139, %c0_140, %c0_141] : memref<2x16x16xf32, #tpu.memory_space<vmem>>, vector<2x16x1xf32>
    %c0_142 = arith.constant 0 : index
    %c0_143 = arith.constant 0 : index
    %c1_144 = arith.constant 1 : index
    %349 = vector.load %arg2[%c0_142, %c0_143, %c1_144] : memref<2x16x16xf32, #tpu.memory_space<vmem>>, vector<2x16x1xf32>
    %cst_145 = arith.constant 2.000000e+00 : f32
    %350 = vector.broadcast %cst_145 : f32 to vector<2x16x1xf32>
    %351 = arith.mulf %350, %347 : vector<2x16x1xf32>
    %352 = arith.addf %346, %351 : vector<2x16x1xf32>
    %c1_i32_146 = arith.constant 1 : i32
    %353 = tpu.dynamic_rotate %352 by %c1_i32_146 dim 1 : vector<2x16x1xf32>, i32 -> vector<2x16x1xf32>
    %c15_i32_147 = arith.constant 15 : i32
    %354 = tpu.dynamic_rotate %352 by %c15_i32_147 dim 1 : vector<2x16x1xf32>, i32 -> vector<2x16x1xf32>
    %355 = vector.shape_cast %99 : vector<1x16x1xi1> to vector<1x16x1xi1>
    %356 = vector.broadcast %355 : vector<1x16x1xi1> to vector<2x16x1xi1>
    %357 = arith.select %356, %354, %353 : vector<2x16x1xi1>, vector<2x16x1xf32>
    %358 = vector.shape_cast %101 : vector<1x16x1xi1> to vector<1x16x1xi1>
    %359 = vector.broadcast %358 : vector<1x16x1xi1> to vector<2x16x1xi1>
    %360 = arith.select %359, %353, %354 : vector<2x16x1xi1>, vector<2x16x1xf32>
    %361 = arith.addf %352, %357 : vector<2x16x1xf32>
    %362 = arith.addf %361, %360 : vector<2x16x1xf32>
    %cst_148 = arith.constant 2.000000e+00 : f32
    %363 = vector.broadcast %cst_148 : f32 to vector<2x16x1xf32>
    %364 = arith.mulf %363, %349 : vector<2x16x1xf32>
    %365 = arith.addf %348, %364 : vector<2x16x1xf32>
    %c1_i32_149 = arith.constant 1 : i32
    %366 = tpu.dynamic_rotate %365 by %c1_i32_149 dim 1 : vector<2x16x1xf32>, i32 -> vector<2x16x1xf32>
    %c15_i32_150 = arith.constant 15 : i32
    %367 = tpu.dynamic_rotate %365 by %c15_i32_150 dim 1 : vector<2x16x1xf32>, i32 -> vector<2x16x1xf32>
    %368 = vector.shape_cast %99 : vector<1x16x1xi1> to vector<1x16x1xi1>
    %369 = vector.broadcast %368 : vector<1x16x1xi1> to vector<2x16x1xi1>
    %370 = arith.select %369, %367, %366 : vector<2x16x1xi1>, vector<2x16x1xf32>
    %371 = vector.shape_cast %101 : vector<1x16x1xi1> to vector<1x16x1xi1>
    %372 = vector.broadcast %371 : vector<1x16x1xi1> to vector<2x16x1xi1>
    %373 = arith.select %372, %366, %367 : vector<2x16x1xi1>, vector<2x16x1xf32>
    %374 = arith.addf %365, %370 : vector<2x16x1xf32>
    %375 = arith.addf %374, %373 : vector<2x16x1xf32>
    %376 = arith.mulf %346, %346 : vector<2x16x1xf32>
    %377 = arith.mulf %347, %347 : vector<2x16x1xf32>
    %cst_151 = arith.constant 2.000000e+00 : f32
    %378 = vector.broadcast %cst_151 : f32 to vector<2x16x1xf32>
    %379 = arith.mulf %378, %377 : vector<2x16x1xf32>
    %380 = arith.addf %376, %379 : vector<2x16x1xf32>
    %c1_i32_152 = arith.constant 1 : i32
    %381 = tpu.dynamic_rotate %380 by %c1_i32_152 dim 1 : vector<2x16x1xf32>, i32 -> vector<2x16x1xf32>
    %c15_i32_153 = arith.constant 15 : i32
    %382 = tpu.dynamic_rotate %380 by %c15_i32_153 dim 1 : vector<2x16x1xf32>, i32 -> vector<2x16x1xf32>
    %383 = vector.shape_cast %99 : vector<1x16x1xi1> to vector<1x16x1xi1>
    %384 = vector.broadcast %383 : vector<1x16x1xi1> to vector<2x16x1xi1>
    %385 = arith.select %384, %382, %381 : vector<2x16x1xi1>, vector<2x16x1xf32>
    %386 = vector.shape_cast %101 : vector<1x16x1xi1> to vector<1x16x1xi1>
    %387 = vector.broadcast %386 : vector<1x16x1xi1> to vector<2x16x1xi1>
    %388 = arith.select %387, %381, %382 : vector<2x16x1xi1>, vector<2x16x1xf32>
    %389 = arith.addf %380, %385 : vector<2x16x1xf32>
    %390 = arith.addf %389, %388 : vector<2x16x1xf32>
    %391 = arith.mulf %348, %348 : vector<2x16x1xf32>
    %392 = arith.mulf %349, %349 : vector<2x16x1xf32>
    %cst_154 = arith.constant 2.000000e+00 : f32
    %393 = vector.broadcast %cst_154 : f32 to vector<2x16x1xf32>
    %394 = arith.mulf %393, %392 : vector<2x16x1xf32>
    %395 = arith.addf %391, %394 : vector<2x16x1xf32>
    %c1_i32_155 = arith.constant 1 : i32
    %396 = tpu.dynamic_rotate %395 by %c1_i32_155 dim 1 : vector<2x16x1xf32>, i32 -> vector<2x16x1xf32>
    %c15_i32_156 = arith.constant 15 : i32
    %397 = tpu.dynamic_rotate %395 by %c15_i32_156 dim 1 : vector<2x16x1xf32>, i32 -> vector<2x16x1xf32>
    %398 = vector.shape_cast %99 : vector<1x16x1xi1> to vector<1x16x1xi1>
    %399 = vector.broadcast %398 : vector<1x16x1xi1> to vector<2x16x1xi1>
    %400 = arith.select %399, %397, %396 : vector<2x16x1xi1>, vector<2x16x1xf32>
    %401 = vector.shape_cast %101 : vector<1x16x1xi1> to vector<1x16x1xi1>
    %402 = vector.broadcast %401 : vector<1x16x1xi1> to vector<2x16x1xi1>
    %403 = arith.select %402, %396, %397 : vector<2x16x1xi1>, vector<2x16x1xf32>
    %404 = arith.addf %395, %400 : vector<2x16x1xf32>
    %405 = arith.addf %404, %403 : vector<2x16x1xf32>
    %406 = arith.mulf %346, %348 : vector<2x16x1xf32>
    %407 = arith.mulf %347, %349 : vector<2x16x1xf32>
    %cst_157 = arith.constant 2.000000e+00 : f32
    %408 = vector.broadcast %cst_157 : f32 to vector<2x16x1xf32>
    %409 = arith.mulf %408, %407 : vector<2x16x1xf32>
    %410 = arith.addf %406, %409 : vector<2x16x1xf32>
    %c1_i32_158 = arith.constant 1 : i32
    %411 = tpu.dynamic_rotate %410 by %c1_i32_158 dim 1 : vector<2x16x1xf32>, i32 -> vector<2x16x1xf32>
    %c15_i32_159 = arith.constant 15 : i32
    %412 = tpu.dynamic_rotate %410 by %c15_i32_159 dim 1 : vector<2x16x1xf32>, i32 -> vector<2x16x1xf32>
    %413 = vector.shape_cast %99 : vector<1x16x1xi1> to vector<1x16x1xi1>
    %414 = vector.broadcast %413 : vector<1x16x1xi1> to vector<2x16x1xi1>
    %415 = arith.select %414, %412, %411 : vector<2x16x1xi1>, vector<2x16x1xf32>
    %416 = vector.shape_cast %101 : vector<1x16x1xi1> to vector<1x16x1xi1>
    %417 = vector.broadcast %416 : vector<1x16x1xi1> to vector<2x16x1xi1>
    %418 = arith.select %417, %411, %412 : vector<2x16x1xi1>, vector<2x16x1xf32>
    %419 = arith.addf %410, %415 : vector<2x16x1xf32>
    %420 = arith.addf %419, %418 : vector<2x16x1xf32>
    %cst_160 = arith.constant 0.111111112 : f32
    %421 = vector.broadcast %cst_160 : f32 to vector<2x16x1xf32>
    %422 = arith.mulf %362, %421 : vector<2x16x1xf32>
    %cst_161 = arith.constant 0.111111112 : f32
    %423 = vector.broadcast %cst_161 : f32 to vector<2x16x1xf32>
    %424 = arith.mulf %375, %423 : vector<2x16x1xf32>
    %cst_162 = arith.constant 0.111111112 : f32
    %425 = vector.broadcast %cst_162 : f32 to vector<2x16x1xf32>
    %426 = arith.mulf %390, %425 : vector<2x16x1xf32>
    %cst_163 = arith.constant 0.111111112 : f32
    %427 = vector.broadcast %cst_163 : f32 to vector<2x16x1xf32>
    %428 = arith.mulf %405, %427 : vector<2x16x1xf32>
    %cst_164 = arith.constant 0.111111112 : f32
    %429 = vector.broadcast %cst_164 : f32 to vector<2x16x1xf32>
    %430 = arith.mulf %420, %429 : vector<2x16x1xf32>
    %431 = arith.mulf %422, %422 : vector<2x16x1xf32>
    %432 = arith.mulf %424, %424 : vector<2x16x1xf32>
    %433 = arith.mulf %422, %424 : vector<2x16x1xf32>
    %434 = arith.subf %426, %431 : vector<2x16x1xf32>
    %435 = arith.subf %428, %432 : vector<2x16x1xf32>
    %436 = arith.subf %430, %433 : vector<2x16x1xf32>
    %cst_165 = arith.constant 2.000000e+00 : f32
    %437 = vector.broadcast %cst_165 : f32 to vector<2x16x1xf32>
    %438 = arith.mulf %437, %433 : vector<2x16x1xf32>
    %cst_166 = arith.constant 9.99999974E-5 : f32
    %439 = vector.broadcast %cst_166 : f32 to vector<2x16x1xf32>
    %440 = arith.addf %438, %439 : vector<2x16x1xf32>
    %cst_167 = arith.constant 2.000000e+00 : f32
    %441 = vector.broadcast %cst_167 : f32 to vector<2x16x1xf32>
    %442 = arith.mulf %441, %436 : vector<2x16x1xf32>
    %cst_168 = arith.constant 8.99999984E-4 : f32
    %443 = vector.broadcast %cst_168 : f32 to vector<2x16x1xf32>
    %444 = arith.addf %442, %443 : vector<2x16x1xf32>
    %445 = arith.mulf %440, %444 : vector<2x16x1xf32>
    %446 = arith.addf %431, %432 : vector<2x16x1xf32>
    %cst_169 = arith.constant 9.99999974E-5 : f32
    %447 = vector.broadcast %cst_169 : f32 to vector<2x16x1xf32>
    %448 = arith.addf %446, %447 : vector<2x16x1xf32>
    %449 = arith.addf %434, %435 : vector<2x16x1xf32>
    %cst_170 = arith.constant 8.99999984E-4 : f32
    %450 = vector.broadcast %cst_170 : f32 to vector<2x16x1xf32>
    %451 = arith.addf %449, %450 : vector<2x16x1xf32>
    %452 = arith.mulf %448, %451 : vector<2x16x1xf32>
    %453 = tpu.reciprocal %452 {approx = true} : vector<2x16x1xf32> -> vector<2x16x1xf32>
    %454 = arith.mulf %452, %453 : vector<2x16x1xf32>
    %cst_171 = arith.constant 2.000000e+00 : f32
    %455 = vector.broadcast %cst_171 : f32 to vector<2x16x1xf32>
    %456 = arith.subf %455, %454 : vector<2x16x1xf32>
    %457 = arith.mulf %453, %456 : vector<2x16x1xf32>
    %458 = arith.mulf %445, %457 : vector<2x16x1xf32>
    %cst_172 = arith.constant 1.000000e+00 : f32
    %459 = vector.broadcast %cst_172 : f32 to vector<2x16x1xf32>
    %460 = arith.subf %459, %458 : vector<2x16x1xf32>
    %cst_173 = arith.constant 5.000000e-01 : f32
    %461 = vector.broadcast %cst_173 : f32 to vector<2x16x1xf32>
    %462 = arith.mulf %460, %461 : vector<2x16x1xf32>
    %cst_174 = arith.constant 0.000000e+00 : f32
    %cst_175 = arith.constant 1.000000e+00 : f32
    %463 = vector.broadcast %cst_174 : f32 to vector<2x16x1xf32>
    %464 = arith.maximumf %463, %462 : vector<2x16x1xf32>
    %465 = vector.broadcast %cst_175 : f32 to vector<2x16x1xf32>
    %466 = arith.minimumf %465, %464 : vector<2x16x1xf32>
    %c0_176 = arith.constant 0 : index
    %c0_177 = arith.constant 0 : index
    %c0_178 = arith.constant 0 : index
    %467 = vector.load %arg3[%c0_176, %c0_177, %c0_178] : memref<2x16x16xf32, #tpu.memory_space<vmem>>, vector<2x16x1xf32>
    tpu.vector_store %arg3[%c0_176, %c0_177, %c0_178], %466 {strides = array<i32>} : memref<2x16x16xf32, #tpu.memory_space<vmem>>, vector<2x16x1xf32>,
    %c0_179 = arith.constant 0 : index
    %c0_180 = arith.constant 0 : index
    %c15_181 = arith.constant 15 : index
    %468 = vector.load %arg1[%c0_179, %c0_180, %c15_181] : memref<2x16x16xf32, #tpu.memory_space<vmem>>, vector<2x16x1xf32>
    %c0_182 = arith.constant 0 : index
    %c0_183 = arith.constant 0 : index
    %c14_184 = arith.constant 14 : index
    %469 = vector.load %arg1[%c0_182, %c0_183, %c14_184] : memref<2x16x16xf32, #tpu.memory_space<vmem>>, vector<2x16x1xf32>
    %c0_185 = arith.constant 0 : index
    %c0_186 = arith.constant 0 : index
    %c15_187 = arith.constant 15 : index
    %470 = vector.load %arg2[%c0_185, %c0_186, %c15_187] : memref<2x16x16xf32, #tpu.memory_space<vmem>>, vector<2x16x1xf32>
    %c0_188 = arith.constant 0 : index
    %c0_189 = arith.constant 0 : index
    %c14_190 = arith.constant 14 : index
    %471 = vector.load %arg2[%c0_188, %c0_189, %c14_190] : memref<2x16x16xf32, #tpu.memory_space<vmem>>, vector<2x16x1xf32>
    %cst_191 = arith.constant 2.000000e+00 : f32
    %472 = vector.broadcast %cst_191 : f32 to vector<2x16x1xf32>
    %473 = arith.mulf %472, %469 : vector<2x16x1xf32>
    %474 = arith.addf %468, %473 : vector<2x16x1xf32>
    %c1_i32_192 = arith.constant 1 : i32
    %475 = tpu.dynamic_rotate %474 by %c1_i32_192 dim 1 : vector<2x16x1xf32>, i32 -> vector<2x16x1xf32>
    %c15_i32_193 = arith.constant 15 : i32
    %476 = tpu.dynamic_rotate %474 by %c15_i32_193 dim 1 : vector<2x16x1xf32>, i32 -> vector<2x16x1xf32>
    %477 = vector.shape_cast %99 : vector<1x16x1xi1> to vector<1x16x1xi1>
    %478 = vector.broadcast %477 : vector<1x16x1xi1> to vector<2x16x1xi1>
    %479 = arith.select %478, %476, %475 : vector<2x16x1xi1>, vector<2x16x1xf32>
    %480 = vector.shape_cast %101 : vector<1x16x1xi1> to vector<1x16x1xi1>
    %481 = vector.broadcast %480 : vector<1x16x1xi1> to vector<2x16x1xi1>
    %482 = arith.select %481, %475, %476 : vector<2x16x1xi1>, vector<2x16x1xf32>
    %483 = arith.addf %474, %479 : vector<2x16x1xf32>
    %484 = arith.addf %483, %482 : vector<2x16x1xf32>
    %cst_194 = arith.constant 2.000000e+00 : f32
    %485 = vector.broadcast %cst_194 : f32 to vector<2x16x1xf32>
    %486 = arith.mulf %485, %471 : vector<2x16x1xf32>
    %487 = arith.addf %470, %486 : vector<2x16x1xf32>
    %c1_i32_195 = arith.constant 1 : i32
    %488 = tpu.dynamic_rotate %487 by %c1_i32_195 dim 1 : vector<2x16x1xf32>, i32 -> vector<2x16x1xf32>
    %c15_i32_196 = arith.constant 15 : i32
    %489 = tpu.dynamic_rotate %487 by %c15_i32_196 dim 1 : vector<2x16x1xf32>, i32 -> vector<2x16x1xf32>
    %490 = vector.shape_cast %99 : vector<1x16x1xi1> to vector<1x16x1xi1>
    %491 = vector.broadcast %490 : vector<1x16x1xi1> to vector<2x16x1xi1>
    %492 = arith.select %491, %489, %488 : vector<2x16x1xi1>, vector<2x16x1xf32>
    %493 = vector.shape_cast %101 : vector<1x16x1xi1> to vector<1x16x1xi1>
    %494 = vector.broadcast %493 : vector<1x16x1xi1> to vector<2x16x1xi1>
    %495 = arith.select %494, %488, %489 : vector<2x16x1xi1>, vector<2x16x1xf32>
    %496 = arith.addf %487, %492 : vector<2x16x1xf32>
    %497 = arith.addf %496, %495 : vector<2x16x1xf32>
    %498 = arith.mulf %468, %468 : vector<2x16x1xf32>
    %499 = arith.mulf %469, %469 : vector<2x16x1xf32>
    %cst_197 = arith.constant 2.000000e+00 : f32
    %500 = vector.broadcast %cst_197 : f32 to vector<2x16x1xf32>
    %501 = arith.mulf %500, %499 : vector<2x16x1xf32>
    %502 = arith.addf %498, %501 : vector<2x16x1xf32>
    %c1_i32_198 = arith.constant 1 : i32
    %503 = tpu.dynamic_rotate %502 by %c1_i32_198 dim 1 : vector<2x16x1xf32>, i32 -> vector<2x16x1xf32>
    %c15_i32_199 = arith.constant 15 : i32
    %504 = tpu.dynamic_rotate %502 by %c15_i32_199 dim 1 : vector<2x16x1xf32>, i32 -> vector<2x16x1xf32>
    %505 = vector.shape_cast %99 : vector<1x16x1xi1> to vector<1x16x1xi1>
    %506 = vector.broadcast %505 : vector<1x16x1xi1> to vector<2x16x1xi1>
    %507 = arith.select %506, %504, %503 : vector<2x16x1xi1>, vector<2x16x1xf32>
    %508 = vector.shape_cast %101 : vector<1x16x1xi1> to vector<1x16x1xi1>
    %509 = vector.broadcast %508 : vector<1x16x1xi1> to vector<2x16x1xi1>
    %510 = arith.select %509, %503, %504 : vector<2x16x1xi1>, vector<2x16x1xf32>
    %511 = arith.addf %502, %507 : vector<2x16x1xf32>
    %512 = arith.addf %511, %510 : vector<2x16x1xf32>
    %513 = arith.mulf %470, %470 : vector<2x16x1xf32>
    %514 = arith.mulf %471, %471 : vector<2x16x1xf32>
    %cst_200 = arith.constant 2.000000e+00 : f32
    %515 = vector.broadcast %cst_200 : f32 to vector<2x16x1xf32>
    %516 = arith.mulf %515, %514 : vector<2x16x1xf32>
    %517 = arith.addf %513, %516 : vector<2x16x1xf32>
    %c1_i32_201 = arith.constant 1 : i32
    %518 = tpu.dynamic_rotate %517 by %c1_i32_201 dim 1 : vector<2x16x1xf32>, i32 -> vector<2x16x1xf32>
    %c15_i32_202 = arith.constant 15 : i32
    %519 = tpu.dynamic_rotate %517 by %c15_i32_202 dim 1 : vector<2x16x1xf32>, i32 -> vector<2x16x1xf32>
    %520 = vector.shape_cast %99 : vector<1x16x1xi1> to vector<1x16x1xi1>
    %521 = vector.broadcast %520 : vector<1x16x1xi1> to vector<2x16x1xi1>
    %522 = arith.select %521, %519, %518 : vector<2x16x1xi1>, vector<2x16x1xf32>
    %523 = vector.shape_cast %101 : vector<1x16x1xi1> to vector<1x16x1xi1>
    %524 = vector.broadcast %523 : vector<1x16x1xi1> to vector<2x16x1xi1>
    %525 = arith.select %524, %518, %519 : vector<2x16x1xi1>, vector<2x16x1xf32>
    %526 = arith.addf %517, %522 : vector<2x16x1xf32>
    %527 = arith.addf %526, %525 : vector<2x16x1xf32>
    %528 = arith.mulf %468, %470 : vector<2x16x1xf32>
    %529 = arith.mulf %469, %471 : vector<2x16x1xf32>
    %cst_203 = arith.constant 2.000000e+00 : f32
    %530 = vector.broadcast %cst_203 : f32 to vector<2x16x1xf32>
    %531 = arith.mulf %530, %529 : vector<2x16x1xf32>
    %532 = arith.addf %528, %531 : vector<2x16x1xf32>
    %c1_i32_204 = arith.constant 1 : i32
    %533 = tpu.dynamic_rotate %532 by %c1_i32_204 dim 1 : vector<2x16x1xf32>, i32 -> vector<2x16x1xf32>
    %c15_i32_205 = arith.constant 15 : i32
    %534 = tpu.dynamic_rotate %532 by %c15_i32_205 dim 1 : vector<2x16x1xf32>, i32 -> vector<2x16x1xf32>
    %535 = vector.shape_cast %99 : vector<1x16x1xi1> to vector<1x16x1xi1>
    %536 = vector.broadcast %535 : vector<1x16x1xi1> to vector<2x16x1xi1>
    %537 = arith.select %536, %534, %533 : vector<2x16x1xi1>, vector<2x16x1xf32>
    %538 = vector.shape_cast %101 : vector<1x16x1xi1> to vector<1x16x1xi1>
    %539 = vector.broadcast %538 : vector<1x16x1xi1> to vector<2x16x1xi1>
    %540 = arith.select %539, %533, %534 : vector<2x16x1xi1>, vector<2x16x1xf32>
    %541 = arith.addf %532, %537 : vector<2x16x1xf32>
    %542 = arith.addf %541, %540 : vector<2x16x1xf32>
    %cst_206 = arith.constant 0.111111112 : f32
    %543 = vector.broadcast %cst_206 : f32 to vector<2x16x1xf32>
    %544 = arith.mulf %484, %543 : vector<2x16x1xf32>
    %cst_207 = arith.constant 0.111111112 : f32
    %545 = vector.broadcast %cst_207 : f32 to vector<2x16x1xf32>
    %546 = arith.mulf %497, %545 : vector<2x16x1xf32>
    %cst_208 = arith.constant 0.111111112 : f32
    %547 = vector.broadcast %cst_208 : f32 to vector<2x16x1xf32>
    %548 = arith.mulf %512, %547 : vector<2x16x1xf32>
    %cst_209 = arith.constant 0.111111112 : f32
    %549 = vector.broadcast %cst_209 : f32 to vector<2x16x1xf32>
    %550 = arith.mulf %527, %549 : vector<2x16x1xf32>
    %cst_210 = arith.constant 0.111111112 : f32
    %551 = vector.broadcast %cst_210 : f32 to vector<2x16x1xf32>
    %552 = arith.mulf %542, %551 : vector<2x16x1xf32>
    %553 = arith.mulf %544, %544 : vector<2x16x1xf32>
    %554 = arith.mulf %546, %546 : vector<2x16x1xf32>
    %555 = arith.mulf %544, %546 : vector<2x16x1xf32>
    %556 = arith.subf %548, %553 : vector<2x16x1xf32>
    %557 = arith.subf %550, %554 : vector<2x16x1xf32>
    %558 = arith.subf %552, %555 : vector<2x16x1xf32>
    %cst_211 = arith.constant 2.000000e+00 : f32
    %559 = vector.broadcast %cst_211 : f32 to vector<2x16x1xf32>
    %560 = arith.mulf %559, %555 : vector<2x16x1xf32>
    %cst_212 = arith.constant 9.99999974E-5 : f32
    %561 = vector.broadcast %cst_212 : f32 to vector<2x16x1xf32>
    %562 = arith.addf %560, %561 : vector<2x16x1xf32>
    %cst_213 = arith.constant 2.000000e+00 : f32
    %563 = vector.broadcast %cst_213 : f32 to vector<2x16x1xf32>
    %564 = arith.mulf %563, %558 : vector<2x16x1xf32>
    %cst_214 = arith.constant 8.99999984E-4 : f32
    %565 = vector.broadcast %cst_214 : f32 to vector<2x16x1xf32>
    %566 = arith.addf %564, %565 : vector<2x16x1xf32>
    %567 = arith.mulf %562, %566 : vector<2x16x1xf32>
    %568 = arith.addf %553, %554 : vector<2x16x1xf32>
    %cst_215 = arith.constant 9.99999974E-5 : f32
    %569 = vector.broadcast %cst_215 : f32 to vector<2x16x1xf32>
    %570 = arith.addf %568, %569 : vector<2x16x1xf32>
    %571 = arith.addf %556, %557 : vector<2x16x1xf32>
    %cst_216 = arith.constant 8.99999984E-4 : f32
    %572 = vector.broadcast %cst_216 : f32 to vector<2x16x1xf32>
    %573 = arith.addf %571, %572 : vector<2x16x1xf32>
    %574 = arith.mulf %570, %573 : vector<2x16x1xf32>
    %575 = tpu.reciprocal %574 {approx = true} : vector<2x16x1xf32> -> vector<2x16x1xf32>
    %576 = arith.mulf %574, %575 : vector<2x16x1xf32>
    %cst_217 = arith.constant 2.000000e+00 : f32
    %577 = vector.broadcast %cst_217 : f32 to vector<2x16x1xf32>
    %578 = arith.subf %577, %576 : vector<2x16x1xf32>
    %579 = arith.mulf %575, %578 : vector<2x16x1xf32>
    %580 = arith.mulf %567, %579 : vector<2x16x1xf32>
    %cst_218 = arith.constant 1.000000e+00 : f32
    %581 = vector.broadcast %cst_218 : f32 to vector<2x16x1xf32>
    %582 = arith.subf %581, %580 : vector<2x16x1xf32>
    %cst_219 = arith.constant 5.000000e-01 : f32
    %583 = vector.broadcast %cst_219 : f32 to vector<2x16x1xf32>
    %584 = arith.mulf %582, %583 : vector<2x16x1xf32>
    %cst_220 = arith.constant 0.000000e+00 : f32
    %cst_221 = arith.constant 1.000000e+00 : f32
    %585 = vector.broadcast %cst_220 : f32 to vector<2x16x1xf32>
    %586 = arith.maximumf %585, %584 : vector<2x16x1xf32>
    %587 = vector.broadcast %cst_221 : f32 to vector<2x16x1xf32>
    %588 = arith.minimumf %587, %586 : vector<2x16x1xf32>
    %c0_222 = arith.constant 0 : index
    %c0_223 = arith.constant 0 : index
    %c15_224 = arith.constant 15 : index
    %589 = vector.load %arg3[%c0_222, %c0_223, %c15_224] : memref<2x16x16xf32, #tpu.memory_space<vmem>>, vector<2x16x1xf32>
    tpu.vector_store %arg3[%c0_222, %c0_223, %c15_224], %588 {strides = array<i32>} : memref<2x16x16xf32, #tpu.memory_space<vmem>>, vector<2x16x1xf32>,
    return
  }
  func.func @transform_0(%arg0: i32) -> (i32, i32, i32) {
    %c0_i32 = arith.constant 0 : i32
    %c0_i32_0 = arith.constant 0 : i32
    %c0_i32_1 = arith.constant 0 : i32
    return %arg0, %c0_i32, %c0_i32_0 : i32, i32, i32
  }
  func.func @transform_1(%arg0: i32) -> (i32, i32, i32) {
    %c0_i32 = arith.constant 0 : i32
    %c0_i32_0 = arith.constant 0 : i32
    %c0_i32_1 = arith.constant 0 : i32
    return %arg0, %c0_i32, %c0_i32_0 : i32, i32, i32
  }
  func.func @transform_2(%arg0: i32) -> (i32, i32, i32) {
    %c0_i32 = arith.constant 0 : i32
    %c0_i32_0 = arith.constant 0 : i32
    %c0_i32_1 = arith.constant 0 : i32
    return %arg0, %c0_i32, %c0_i32_0 : i32, i32, i32
  }
}

</mosaic_0001>

<llo_original>
// kernel: tpu_custom_call.1
$region0: #{tpu_custom_call.1}
  #allocation0 [shape = 'u32[]', space=smem, size = 0x4, offset = 0x4, fixed_abs, tag = 'smem constant byte address 0x4 - core index']
  #allocation1 [shape = 'u32[144,128]{1,0:T(1,128)}', space=vmem, size = 0x12000, scoped, tag = 'internal scratch']
  %s0 = inlined_call_operand.hbm [shape: f32[8,16,16], index: 0, kind: input, shape index: {}]
  %s1 = inlined_call_operand.hbm [shape: f32[8,16,16], index: 1, kind: input, shape index: {}]
  %s2 = inlined_call_operand.hbm [shape: f32[8,16,16], index: 2, kind: output, shape index: {}]
  %s3 = sld [smem:[#allocation0]]
  $region49: #{tpu_custom_call.1} parent=0
    _
  %s5 = ssub.s32 1, %s3
  %s6 = scalar_select 0, %s5, %s3
  $region1: #{tpu_custom_call.1} parent=0
    #allocation2 [shape = 'u8[32768]{0}', space=vmem, size = 0x8000, scoped, tag = 'input window, operand 0']
    #allocation3 [shape = 's32[2]{0}', space=sflag, size = 0x8, scoped, tag = 'scoped memory for tpu_custom_call.1']
    #allocation4 [shape = 's32[2]{0}', space=sflag, size = 0x8, scoped, tag = 'scoped memory for tpu_custom_call.1']
    #allocation5 [shape = 'u8[32768]{0}', space=vmem, size = 0x8000, scoped, tag = 'input window, operand 1']
    #allocation6 [shape = 's32[2]{0}', space=sflag, size = 0x8, scoped, tag = 'scoped memory for tpu_custom_call.1']
    #allocation7 [shape = 'u8[32768]{0}', space=vmem, size = 0x8000, scoped, tag = 'output window, operand 0']
    %7 = vsyncpa [#allocation3], 0
    %s8 = scalar_lea.sflag [#allocation3], 1
    %9 = vsyncpa %s8, 0
    %10 = vsyncpa [#allocation6], 0
    %s11 = scalar_lea.sflag [#allocation6], 1
    %12 = vsyncpa %s11, 0
    %13 = vsyncpa [#allocation4], 0
    %s14 = scalar_lea.sflag [#allocation4], 1
    %15 = vsyncpa %s14, 0
    loop: start=0, step=1, limit=6
    $region2: #{tpu_custom_call.1} parent=1 // loop_pre_header
      _
    $region3: #{tpu_custom_call.1} parent=1 // loop_header
      %s17 = sphi 0, %s21
      %p18 = scmp.ge.s32.totalorder %s17, 6
      %s27 = sphi 0, %s29
      %s30 = sphi 0, %s27
      %s31 = sphi 0, %s30
      %s47 = sphi 0, %s31
      %s53 = sphi 0, %s55
      %s56 = sphi 0, %s53
      %s57 = sphi 0, %s56
      %s73 = sphi 0, %s57
      %s79 = sphi 0, %s81
      %s82 = sphi 0, %s79
      %s83 = sphi 0, %s82
      %s99 = sphi 0, %s83
    $region4: #{tpu_custom_call.1} parent=1 // loop_header_branch
      %20 = sbr.rel (%p18) target = $region8
    $region5: #{tpu_custom_call.1} parent=1 // loop_body
      %s22 = ssub.s32 %s17, 1
      %s23 = ssub.s32 %s17, 2
      %s24 = sadd.s32 %s17, 1
      %s25 = ssub.s32 %s17, %s24
      %p26 = scmp.eq.s32.totalorder %s25, 0
      %s28 = sadd.s32 %s27, 1
      %s29 = scalar_select %p26, %s27, %s28
      %p32 = pneg %p26
      %p33 = scmp.eq.s32.totalorder %s17, 3
      %p34 = por %p32, %p33
      %p35 = scmp.ne.s32.totalorder %s27, %s30
      %p36 = scmp.eq.s32.totalorder %s17, 0
      %p37 = por %p35, %p36
      %p38 = scmp.ne.s32.totalorder %s27, %s30
      %p39 = scmp.eq.s32.totalorder %s22, 3
      %p40 = por %p38, %p39
      %p41 = scmp.ne.s32.totalorder %s30, %s31
      %p42 = scmp.eq.s32.totalorder %s22, 0
      %p43 = por %p41, %p42
      %p44 = scmp.ne.s32.totalorder %s30, %s31
      %p45 = scmp.eq.s32.totalorder %s23, 3
      %p46 = por %p44, %p45
      %p48 = scmp.ne.s32.totalorder %s31, %s47
      %p49 = scmp.eq.s32.totalorder %s23, 0
      %p50 = por %p48, %p49
      %s51 = ssub.s32 %s17, %s24
      %p52 = scmp.eq.s32.totalorder %s51, 0
      %s54 = sadd.s32 %s53, 1
      %s55 = scalar_select %p52, %s53, %s54
      %p58 = pneg %p52
      %p59 = scmp.eq.s32.totalorder %s17, 3
      %p60 = por %p58, %p59
      %p61 = scmp.ne.s32.totalorder %s53, %s56
      %p62 = scmp.eq.s32.totalorder %s17, 0
      %p63 = por %p61, %p62
      %p64 = scmp.ne.s32.totalorder %s53, %s56
      %p65 = scmp.eq.s32.totalorder %s22, 3
      %p66 = por %p64, %p65
      %p67 = scmp.ne.s32.totalorder %s56, %s57
      %p68 = scmp.eq.s32.totalorder %s22, 0
      %p69 = por %p67, %p68
      %p70 = scmp.ne.s32.totalorder %s56, %s57
      %p71 = scmp.eq.s32.totalorder %s23, 3
      %p72 = por %p70, %p71
      %p74 = scmp.ne.s32.totalorder %s57, %s73
      %p75 = scmp.eq.s32.totalorder %s23, 0
      %p76 = por %p74, %p75
      %s77 = ssub.s32 %s17, %s24
      %p78 = scmp.eq.s32.totalorder %s77, 0
      %s80 = sadd.s32 %s79, 1
      %s81 = scalar_select %p78, %s79, %s80
      %p84 = pneg %p78
      %p85 = scmp.eq.s32.totalorder %s17, 3
      %p86 = por %p84, %p85
      %p87 = scmp.ne.s32.totalorder %s79, %s82
      %p88 = scmp.eq.s32.totalorder %s17, 0
      %p89 = por %p87, %p88
      %p90 = scmp.ne.s32.totalorder %s79, %s82
      %p91 = scmp.eq.s32.totalorder %s22, 3
      %p92 = por %p90, %p91
      %p93 = scmp.ne.s32.totalorder %s82, %s83
      %p94 = scmp.eq.s32.totalorder %s22, 0
      %p95 = por %p93, %p94
      %p96 = scmp.ne.s32.totalorder %s82, %s83
      %p97 = scmp.eq.s32.totalorder %s23, 3
      %p98 = por %p96, %p97
      %p100 = scmp.ne.s32.totalorder %s83, %s99
      %p101 = scmp.eq.s32.totalorder %s23, 0
      %p102 = por %p100, %p101
      %p103 = scmp.le.s32.totalorder 1, %s17
      %p104 = scmp.lt.s32.totalorder %s17, 5
      %p105 = pnand %p103, %p104
      %p106 = pneg %p105
      // Predicated region
      $region9: #{tpu_custom_call.1} parent=5 // pred_check
        _
      $region10: #{tpu_custom_call.1} parent=5 // pred_check_branch
        %108 = sbr.rel (%p105) target = $region12
      $region11: #{tpu_custom_call.1} parent=5 // pred_region
        %s109 = ssub.s32 %s17, 1
      $region12: #{tpu_custom_call.1} parent=5 // pred_fallthru
        _
      %p110 = scmp.lt.s32.totalorder %s17, 4
      // Predicated region
      $region13: #{tpu_custom_call.1} parent=5 // pred_check
        %p111 = pneg %p110
      $region14: #{tpu_custom_call.1} parent=5 // pred_check_branch
        %113 = sbr.rel (%p111) target = $region16
      $region15: #{tpu_custom_call.1} parent=5 // pred_region
        // Predicated region
        $region17: #{tpu_custom_call.1} parent=15 // pred_check
          %p114 = pneg %p37
        $region18: #{tpu_custom_call.1} parent=15 // pred_check_branch
          %116 = sbr.rel (%p114) target = $region20
        $region19: #{tpu_custom_call.1} parent=15 // pred_region
          %s117 = sand.u32 %s27, 1
          %s118 = scalar_lea.sflag [#allocation3], %s117
          %s119 = sand.u32 %s27, 1
          %s120 = smul.addr %s119, 32
          %s121 = scalar_lea.vmem [#allocation2], %s120
          %s122 = smul.u32 2, %s17
          %s124 = ssub.s32 512, 512
          %125 = vsyncadd %s118, %s124
          %s126 = smul.addr %s122, 2
          %s127 = smul.addr %s126, 128
          %s128 = scalar_lea.hbm %s0, %s127
          %s129 = sshll.u32 %s121, 4
          %s130 = int_to_ptr.vmem [resolvable:$true] %s129
          %135 = dma.hbm_to_vmem [thread:$0]  %s128, 512, %s130, %s118, 128, 128, 8
        $region20: #{tpu_custom_call.1} parent=15 // pred_fallthru
          _
        // Predicated region
        $region21: #{tpu_custom_call.1} parent=15 // pred_check
          %p136 = pneg %p63
        $region22: #{tpu_custom_call.1} parent=15 // pred_check_branch
          %138 = sbr.rel (%p136) target = $region24
        $region23: #{tpu_custom_call.1} parent=15 // pred_region
          %s139 = sand.u32 %s53, 1
          %s140 = scalar_lea.sflag [#allocation6], %s139
          %s141 = sand.u32 %s53, 1
          %s142 = smul.addr %s141, 32
          %s143 = scalar_lea.vmem [#allocation5], %s142
          %s144 = smul.u32 2, %s17
          %s146 = ssub.s32 512, 512
          %147 = vsyncadd %s140, %s146
          %s148 = smul.addr %s144, 2
          %s149 = smul.addr %s148, 128
          %s150 = scalar_lea.hbm %s1, %s149
          %s151 = sshll.u32 %s143, 4
          %s152 = int_to_ptr.vmem [resolvable:$true] %s151
          %157 = dma.hbm_to_vmem [thread:$0]  %s150, 512, %s152, %s140, 128, 128, 8
        $region24: #{tpu_custom_call.1} parent=15 // pred_fallthru
          _
      $region16: #{tpu_custom_call.1} parent=5 // pred_fallthru
        _
      %p158 = scmp.le.s32.totalorder 1, %s17
      %p159 = scmp.lt.s32.totalorder %s17, 5
      %p160 = pnand %p158, %p159
      %p161 = pneg %p160
      // Predicated region
      $region25: #{tpu_custom_call.1} parent=5 // pred_check
        _
      $region26: #{tpu_custom_call.1} parent=5 // pred_check_branch
        %163 = sbr.rel (%p160) target = $region28
      $region27: #{tpu_custom_call.1} parent=5 // pred_region
        %s164 = ssub.s32 %s17, 1
        %s165 = sand.u32 %s30, 1
        %s166 = scalar_lea.sflag [#allocation3], %s165
        %s167 = sand.u32 %s30, 1
        %s168 = smul.addr %s167, 32
        %s169 = scalar_lea.vmem [#allocation2], %s168
        // Predicated region
        $region29: #{tpu_custom_call.1} parent=27 // pred_check
          %p170 = pneg %p43
        $region30: #{tpu_custom_call.1} parent=27 // pred_check_branch
          %172 = sbr.rel (%p170) target = $region32
        $region31: #{tpu_custom_call.1} parent=27 // pred_region
          %173 = dma.done %s166, 512
        $region32: #{tpu_custom_call.1} parent=27 // pred_fallthru
          _
        %s174 = sand.u32 %s56, 1
        %s175 = scalar_lea.sflag [#allocation6], %s174
        %s176 = sand.u32 %s56, 1
        %s177 = smul.addr %s176, 32
        %s178 = scalar_lea.vmem [#allocation5], %s177
        // Predicated region
        $region33: #{tpu_custom_call.1} parent=27 // pred_check
          %p179 = pneg %p69
        $region34: #{tpu_custom_call.1} parent=27 // pred_check_branch
          %181 = sbr.rel (%p179) target = $region36
        $region35: #{tpu_custom_call.1} parent=27 // pred_region
          %182 = dma.done %s175, 512
        $region36: #{tpu_custom_call.1} parent=27 // pred_fallthru
          _
        %s183 = sand.u32 %s30, 1
        %s184 = scalar_lea.sflag [#allocation3], %s183
        %s185 = sand.u32 %s30, 1
        %s186 = smul.addr %s185, 32
        %s187 = scalar_lea.vmem [#allocation2], %s186
        %p188 = pneg %p43
        %p189 = pneg %p40
        %s190 = sand.u32 %s56, 1
        %s191 = scalar_lea.sflag [#allocation6], %s190
        %s192 = sand.u32 %s56, 1
        %s193 = smul.addr %s192, 32
        %s194 = scalar_lea.vmem [#allocation5], %s193
        %p195 = pneg %p69
        %p196 = pneg %p66
        %p197 = pneg %p95
        %p198 = pneg %p92
        %s199 = sand.u32 %s82, 1
        %s200 = scalar_lea.sflag [#allocation4], %s199
        %s201 = sand.u32 %s82, 1
        %s202 = smul.addr %s201, 32
        %s203 = scalar_lea.vmem [#allocation7], %s202
        %s204 = smul.u32 2, %s22
        %s205 = smul.u32 2, %s22
        %s206 = smul.u32 2, %s22
        %v207 = vld [vmem:[%s169] sm:$0xff]
        %v208 = vld [vmem:[%s169 + $0x8] sm:$0xff]
        %v209 = vld [vmem:[%s169 + $0x10] sm:$0xff]
        %v210 = vld [vmem:[%s169 + $0x18] sm:$0xff]
        %v211 = vld [vmem:[%s178] sm:$0xff]
        %v212 = vld [vmem:[%s178 + $0x8] sm:$0xff]
        %v213 = vld [vmem:[%s178 + $0x10] sm:$0xff]
        %v214 = vld [vmem:[%s178 + $0x18] sm:$0xff]
        %vm215 = vcmask 1047680
        %216 = vrot.lane.b32.xlu0 %v207, 16
        %v217 = vpop.permute.xlu0 %216
        %v218 = vsel %vm215, %v217, %v207
        %219 = vrot.lane.b32.xlu0 %v208, 16
        %v220 = vpop.permute.xlu0 %219
        %v221 = vsel %vm215, %v220, %v208
        %222 = vrot.lane.b32.xlu0 %v209, 16
        %v223 = vpop.permute.xlu0 %222
        %v224 = vsel %vm215, %v223, %v209
        %225 = vrot.lane.b32.xlu0 %v210, 16
        %v226 = vpop.permute.xlu0 %225
        %v227 = vsel %vm215, %v226, %v210
        %228 = vrot.lane.b32.xlu0 %v218, 16
        %v229 = vpop.permute.xlu0 %228
        %230 = vrot.lane.b32.xlu0 %v221, 16
        %v231 = vpop.permute.xlu0 %230
        %232 = vrot.lane.b32.xlu0 %v224, 16
        %v233 = vpop.permute.xlu0 %232
        %234 = vrot.lane.b32.xlu0 %v227, 16
        %v235 = vpop.permute.xlu0 %234
        %v236 = vsel %vm215, %v229, %v207
        %v237 = vsel %vm215, %v231, %v208
        %v238 = vsel %vm215, %v233, %v209
        %v239 = vsel %vm215, %v235, %v210
        %244 = vrot.lane.b32.xlu0 %v236, 113
        %v245 = vpop.permute.xlu0 %244
        %246 = vrot.lane.b32.xlu0 %v237, 113
        %v247 = vpop.permute.xlu0 %246
        %248 = vrot.lane.b32.xlu0 %v238, 113
        %v249 = vpop.permute.xlu0 %248
        %250 = vrot.lane.b32.xlu0 %v239, 113
        %v251 = vpop.permute.xlu0 %250
        %v256 = vadd.f32 %v207, %v245
        %v257 = vadd.f32 %v208, %v247
        %v258 = vadd.f32 %v209, %v249
        %v259 = vadd.f32 %v210, %v251
        %260 = vrot.lane.b32.xlu0 %v236, 127
        %v261 = vpop.permute.xlu0 %260
        %262 = vrot.lane.b32.xlu0 %v237, 127
        %v263 = vpop.permute.xlu0 %262
        %264 = vrot.lane.b32.xlu0 %v238, 127
        %v265 = vpop.permute.xlu0 %264
        %266 = vrot.lane.b32.xlu0 %v239, 127
        %v267 = vpop.permute.xlu0 %266
        %v272 = vadd.f32 %v256, %v261
        %v273 = vadd.f32 %v257, %v263
        %v274 = vadd.f32 %v258, %v265
        %v275 = vadd.f32 %v259, %v267
        %v276 = vrot.slane %v272, 7
        %v277 = vrot.slane %v274, 7
        %v278 = vrot.slane %v273, 7
        %v279 = vrot.slane %v275, 7
        %v280 = vlaneseq
        %v281 = vshrl.u32 %v280, 7
        %vm282 = vcmp.lt.s32.totalorder %v281, 1
        %v283 = vsel %vm282, %v276, %v278
        %v284 = vsel %vm282, %v277, %v279
        %v285 = vsel %vm282, %v278, %v276
        %v286 = vsel %vm282, %v279, %v277
        %v287 = vadd.f32 %v272, %v285
        %v288 = vadd.f32 %v273, %v283
        %v289 = vadd.f32 %v274, %v286
        %v290 = vadd.f32 %v275, %v284
        %v291 = vrot.slane %v272, 1
        %v292 = vrot.slane %v274, 1
        %v293 = vrot.slane %v273, 1
        %v294 = vrot.slane %v275, 1
        %vm295 = vcmp.lt.s32.totalorder %v281, 7
        %v296 = vsel %vm295, %v291, %v293
        %v297 = vsel %vm295, %v292, %v294
        %v298 = vsel %vm295, %v293, %v291
        %v299 = vsel %vm295, %v294, %v292
        %v300 = vadd.f32 %v287, %v296
        %v301 = vadd.f32 %v288, %v298
        %v302 = vadd.f32 %v289, %v297
        %v303 = vadd.f32 %v290, %v299
        %304 = vrot.lane.b32.xlu0 %v211, 16
        %v305 = vpop.permute.xlu0 %304
        %v306 = vsel %vm215, %v305, %v211
        %307 = vrot.lane.b32.xlu0 %v212, 16
        %v308 = vpop.permute.xlu0 %307
        %v309 = vsel %vm215, %v308, %v212
        %310 = vrot.lane.b32.xlu0 %v213, 16
        %v311 = vpop.permute.xlu0 %310
        %v312 = vsel %vm215, %v311, %v213
        %313 = vrot.lane.b32.xlu0 %v214, 16
        %v314 = vpop.permute.xlu0 %313
        %v315 = vsel %vm215, %v314, %v214
        %316 = vrot.lane.b32.xlu0 %v306, 16
        %v317 = vpop.permute.xlu0 %316
        %318 = vrot.lane.b32.xlu0 %v309, 16
        %v319 = vpop.permute.xlu0 %318
        %320 = vrot.lane.b32.xlu0 %v312, 16
        %v321 = vpop.permute.xlu0 %320
        %322 = vrot.lane.b32.xlu0 %v315, 16
        %v323 = vpop.permute.xlu0 %322
        %v324 = vsel %vm215, %v317, %v211
        %v325 = vsel %vm215, %v319, %v212
        %v326 = vsel %vm215, %v321, %v213
        %v327 = vsel %vm215, %v323, %v214
        %332 = vrot.lane.b32.xlu0 %v324, 113
        %v333 = vpop.permute.xlu0 %332
        %334 = vrot.lane.b32.xlu0 %v325, 113
        %v335 = vpop.permute.xlu0 %334
        %336 = vrot.lane.b32.xlu0 %v326, 113
        %v337 = vpop.permute.xlu0 %336
        %338 = vrot.lane.b32.xlu0 %v327, 113
        %v339 = vpop.permute.xlu0 %338
        %v344 = vadd.f32 %v211, %v333
        %v345 = vadd.f32 %v212, %v335
        %v346 = vadd.f32 %v213, %v337
        %v347 = vadd.f32 %v214, %v339
        %348 = vrot.lane.b32.xlu0 %v324, 127
        %v349 = vpop.permute.xlu0 %348
        %350 = vrot.lane.b32.xlu0 %v325, 127
        %v351 = vpop.permute.xlu0 %350
        %352 = vrot.lane.b32.xlu0 %v326, 127
        %v353 = vpop.permute.xlu0 %352
        %354 = vrot.lane.b32.xlu0 %v327, 127
        %v355 = vpop.permute.xlu0 %354
        %v360 = vadd.f32 %v344, %v349
        %v361 = vadd.f32 %v345, %v351
        %v362 = vadd.f32 %v346, %v353
        %v363 = vadd.f32 %v347, %v355
        %v364 = vrot.slane %v360, 7
        %v365 = vrot.slane %v362, 7
        %v366 = vrot.slane %v361, 7
        %v367 = vrot.slane %v363, 7
        %v368 = vsel %vm282, %v364, %v366
        %v369 = vsel %vm282, %v365, %v367
        %v370 = vsel %vm282, %v366, %v364
        %v371 = vsel %vm282, %v367, %v365
        %v372 = vadd.f32 %v360, %v370
        %v373 = vadd.f32 %v361, %v368
        %v374 = vadd.f32 %v362, %v371
        %v375 = vadd.f32 %v363, %v369
        %v376 = vrot.slane %v360, 1
        %v377 = vrot.slane %v362, 1
        %v378 = vrot.slane %v361, 1
        %v379 = vrot.slane %v363, 1
        %v380 = vsel %vm295, %v376, %v378
        %v381 = vsel %vm295, %v377, %v379
        %v382 = vsel %vm295, %v378, %v376
        %v383 = vsel %vm295, %v379, %v377
        %v384 = vadd.f32 %v372, %v380
        %v385 = vadd.f32 %v373, %v382
        %v386 = vadd.f32 %v374, %v381
        %v387 = vadd.f32 %v375, %v383
        %v388 = vmul.f32 %v207, %v207
        %v389 = vmul.f32 %v208, %v208
        %v390 = vmul.f32 %v209, %v209
        %v391 = vmul.f32 %v210, %v210
        %392 = vrot.lane.b32.xlu0 %v388, 16
        %v393 = vpop.permute.xlu0 %392
        %v394 = vsel %vm215, %v393, %v388
        %395 = vrot.lane.b32.xlu0 %v389, 16
        %v396 = vpop.permute.xlu0 %395
        %v397 = vsel %vm215, %v396, %v389
        %398 = vrot.lane.b32.xlu0 %v390, 16
        %v399 = vpop.permute.xlu0 %398
        %v400 = vsel %vm215, %v399, %v390
        %401 = vrot.lane.b32.xlu0 %v391, 16
        %v402 = vpop.permute.xlu0 %401
        %v403 = vsel %vm215, %v402, %v391
        %404 = vrot.lane.b32.xlu0 %v394, 16
        %v405 = vpop.permute.xlu0 %404
        %406 = vrot.lane.b32.xlu0 %v397, 16
        %v407 = vpop.permute.xlu0 %406
        %408 = vrot.lane.b32.xlu0 %v400, 16
        %v409 = vpop.permute.xlu0 %408
        %410 = vrot.lane.b32.xlu0 %v403, 16
        %v411 = vpop.permute.xlu0 %410
        %v412 = vsel %vm215, %v405, %v388
        %v413 = vsel %vm215, %v407, %v389
        %v414 = vsel %vm215, %v409, %v390
        %v415 = vsel %vm215, %v411, %v391
        %420 = vrot.lane.b32.xlu0 %v412, 113
        %v421 = vpop.permute.xlu0 %420
        %422 = vrot.lane.b32.xlu0 %v413, 113
        %v423 = vpop.permute.xlu0 %422
        %424 = vrot.lane.b32.xlu0 %v414, 113
        %v425 = vpop.permute.xlu0 %424
        %426 = vrot.lane.b32.xlu0 %v415, 113
        %v427 = vpop.permute.xlu0 %426
        %v432 = vadd.f32 %v388, %v421
        %v433 = vadd.f32 %v389, %v423
        %v434 = vadd.f32 %v390, %v425
        %v435 = vadd.f32 %v391, %v427
        %436 = vrot.lane.b32.xlu0 %v412, 127
        %v437 = vpop.permute.xlu0 %436
        %438 = vrot.lane.b32.xlu0 %v413, 127
        %v439 = vpop.permute.xlu0 %438
        %440 = vrot.lane.b32.xlu0 %v414, 127
        %v441 = vpop.permute.xlu0 %440
        %442 = vrot.lane.b32.xlu0 %v415, 127
        %v443 = vpop.permute.xlu0 %442
        %v448 = vadd.f32 %v432, %v437
        %v449 = vadd.f32 %v433, %v439
        %v450 = vadd.f32 %v434, %v441
        %v451 = vadd.f32 %v435, %v443
        %v452 = vrot.slane %v448, 7
        %v453 = vrot.slane %v450, 7
        %v454 = vrot.slane %v449, 7
        %v455 = vrot.slane %v451, 7
        %v456 = vsel %vm282, %v452, %v454
        %v457 = vsel %vm282, %v453, %v455
        %v458 = vsel %vm282, %v454, %v452
        %v459 = vsel %vm282, %v455, %v453
        %v460 = vadd.f32 %v448, %v458
        %v461 = vadd.f32 %v449, %v456
        %v462 = vadd.f32 %v450, %v459
        %v463 = vadd.f32 %v451, %v457
        %v464 = vrot.slane %v448, 1
        %v465 = vrot.slane %v450, 1
        %v466 = vrot.slane %v449, 1
        %v467 = vrot.slane %v451, 1
        %v468 = vsel %vm295, %v464, %v466
        %v469 = vsel %vm295, %v465, %v467
        %v470 = vsel %vm295, %v466, %v464
        %v471 = vsel %vm295, %v467, %v465
        %v472 = vadd.f32 %v460, %v468
        %v473 = vadd.f32 %v461, %v470
        %v474 = vadd.f32 %v462, %v469
        %v475 = vadd.f32 %v463, %v471
        %v476 = vmul.f32 %v211, %v211
        %v477 = vmul.f32 %v212, %v212
        %v478 = vmul.f32 %v213, %v213
        %v479 = vmul.f32 %v214, %v214
        %480 = vrot.lane.b32.xlu0 %v476, 16
        %v481 = vpop.permute.xlu0 %480
        %v482 = vsel %vm215, %v481, %v476
        %483 = vrot.lane.b32.xlu0 %v477, 16
        %v484 = vpop.permute.xlu0 %483
        %v485 = vsel %vm215, %v484, %v477
        %486 = vrot.lane.b32.xlu0 %v478, 16
        %v487 = vpop.permute.xlu0 %486
        %v488 = vsel %vm215, %v487, %v478
        %489 = vrot.lane.b32.xlu0 %v479, 16
        %v490 = vpop.permute.xlu0 %489
        %v491 = vsel %vm215, %v490, %v479
        %492 = vrot.lane.b32.xlu0 %v482, 16
        %v493 = vpop.permute.xlu0 %492
        %494 = vrot.lane.b32.xlu0 %v485, 16
        %v495 = vpop.permute.xlu0 %494
        %496 = vrot.lane.b32.xlu0 %v488, 16
        %v497 = vpop.permute.xlu0 %496
        %498 = vrot.lane.b32.xlu0 %v491, 16
        %v499 = vpop.permute.xlu0 %498
        %v500 = vsel %vm215, %v493, %v476
        %v501 = vsel %vm215, %v495, %v477
        %v502 = vsel %vm215, %v497, %v478
        %v503 = vsel %vm215, %v499, %v479
        %508 = vrot.lane.b32.xlu0 %v500, 113
        %v509 = vpop.permute.xlu0 %508
        %510 = vrot.lane.b32.xlu0 %v501, 113
        %v511 = vpop.permute.xlu0 %510
        %512 = vrot.lane.b32.xlu0 %v502, 113
        %v513 = vpop.permute.xlu0 %512
        %514 = vrot.lane.b32.xlu0 %v503, 113
        %v515 = vpop.permute.xlu0 %514
        %v520 = vadd.f32 %v476, %v509
        %v521 = vadd.f32 %v477, %v511
        %v522 = vadd.f32 %v478, %v513
        %v523 = vadd.f32 %v479, %v515
        %524 = vrot.lane.b32.xlu0 %v500, 127
        %v525 = vpop.permute.xlu0 %524
        %526 = vrot.lane.b32.xlu0 %v501, 127
        %v527 = vpop.permute.xlu0 %526
        %528 = vrot.lane.b32.xlu0 %v502, 127
        %v529 = vpop.permute.xlu0 %528
        %530 = vrot.lane.b32.xlu0 %v503, 127
        %v531 = vpop.permute.xlu0 %530
        %v536 = vadd.f32 %v520, %v525
        %v537 = vadd.f32 %v521, %v527
        %v538 = vadd.f32 %v522, %v529
        %v539 = vadd.f32 %v523, %v531
        %v540 = vrot.slane %v536, 7
        %v541 = vrot.slane %v538, 7
        %v542 = vrot.slane %v537, 7
        %v543 = vrot.slane %v539, 7
        %v544 = vsel %vm282, %v540, %v542
        %v545 = vsel %vm282, %v541, %v543
        %v546 = vsel %vm282, %v542, %v540
        %v547 = vsel %vm282, %v543, %v541
        %v548 = vadd.f32 %v536, %v546
        %v549 = vadd.f32 %v537, %v544
        %v550 = vadd.f32 %v538, %v547
        %v551 = vadd.f32 %v539, %v545
        %v552 = vrot.slane %v536, 1
        %v553 = vrot.slane %v538, 1
        %v554 = vrot.slane %v537, 1
        %v555 = vrot.slane %v539, 1
        %v556 = vsel %vm295, %v552, %v554
        %v557 = vsel %vm295, %v553, %v555
        %v558 = vsel %vm295, %v554, %v552
        %v559 = vsel %vm295, %v555, %v553
        %v560 = vadd.f32 %v548, %v556
        %v561 = vadd.f32 %v549, %v558
        %v562 = vadd.f32 %v550, %v557
        %v563 = vadd.f32 %v551, %v559
        %v564 = vmul.f32 %v207, %v211
        %v565 = vmul.f32 %v208, %v212
        %v566 = vmul.f32 %v209, %v213
        %v567 = vmul.f32 %v210, %v214
        %568 = vrot.lane.b32.xlu0 %v564, 16
        %v569 = vpop.permute.xlu0 %568
        %v570 = vsel %vm215, %v569, %v564
        %571 = vrot.lane.b32.xlu0 %v565, 16
        %v572 = vpop.permute.xlu0 %571
        %v573 = vsel %vm215, %v572, %v565
        %574 = vrot.lane.b32.xlu0 %v566, 16
        %v575 = vpop.permute.xlu0 %574
        %v576 = vsel %vm215, %v575, %v566
        %577 = vrot.lane.b32.xlu0 %v567, 16
        %v578 = vpop.permute.xlu0 %577
        %v579 = vsel %vm215, %v578, %v567
        %580 = vrot.lane.b32.xlu0 %v570, 16
        %v581 = vpop.permute.xlu0 %580
        %582 = vrot.lane.b32.xlu0 %v573, 16
        %v583 = vpop.permute.xlu0 %582
        %584 = vrot.lane.b32.xlu0 %v576, 16
        %v585 = vpop.permute.xlu0 %584
        %586 = vrot.lane.b32.xlu0 %v579, 16
        %v587 = vpop.permute.xlu0 %586
        %v588 = vsel %vm215, %v581, %v564
        %v589 = vsel %vm215, %v583, %v565
        %v590 = vsel %vm215, %v585, %v566
        %v591 = vsel %vm215, %v587, %v567
        %596 = vrot.lane.b32.xlu0 %v588, 113
        %v597 = vpop.permute.xlu0 %596
        %598 = vrot.lane.b32.xlu0 %v589, 113
        %v599 = vpop.permute.xlu0 %598
        %600 = vrot.lane.b32.xlu0 %v590, 113
        %v601 = vpop.permute.xlu0 %600
        %602 = vrot.lane.b32.xlu0 %v591, 113
        %v603 = vpop.permute.xlu0 %602
        %v608 = vadd.f32 %v564, %v597
        %v609 = vadd.f32 %v565, %v599
        %v610 = vadd.f32 %v566, %v601
        %v611 = vadd.f32 %v567, %v603
        %612 = vrot.lane.b32.xlu0 %v588, 127
        %v613 = vpop.permute.xlu0 %612
        %614 = vrot.lane.b32.xlu0 %v589, 127
        %v615 = vpop.permute.xlu0 %614
        %616 = vrot.lane.b32.xlu0 %v590, 127
        %v617 = vpop.permute.xlu0 %616
        %618 = vrot.lane.b32.xlu0 %v591, 127
        %v619 = vpop.permute.xlu0 %618
        %v624 = vadd.f32 %v608, %v613
        %v625 = vadd.f32 %v609, %v615
        %v626 = vadd.f32 %v610, %v617
        %v627 = vadd.f32 %v611, %v619
        %v628 = vrot.slane %v624, 7
        %v629 = vrot.slane %v626, 7
        %v630 = vrot.slane %v625, 7
        %v631 = vrot.slane %v627, 7
        %v632 = vsel %vm282, %v628, %v630
        %v633 = vsel %vm282, %v629, %v631
        %v634 = vsel %vm282, %v630, %v628
        %v635 = vsel %vm282, %v631, %v629
        %v636 = vadd.f32 %v624, %v634
        %v637 = vadd.f32 %v625, %v632
        %v638 = vadd.f32 %v626, %v635
        %v639 = vadd.f32 %v627, %v633
        %v640 = vrot.slane %v624, 1
        %v641 = vrot.slane %v626, 1
        %v642 = vrot.slane %v625, 1
        %v643 = vrot.slane %v627, 1
        %v644 = vsel %vm295, %v640, %v642
        %v645 = vsel %vm295, %v641, %v643
        %v646 = vsel %vm295, %v642, %v640
        %v647 = vsel %vm295, %v643, %v641
        %v648 = vadd.f32 %v636, %v644
        %v649 = vadd.f32 %v637, %v646
        %v650 = vadd.f32 %v638, %v645
        %v651 = vadd.f32 %v639, %v647
        %v652 = vmul.f32 %v300, 0.11111111
        %v653 = vmul.f32 %v301, 0.11111111
        %v654 = vmul.f32 %v302, 0.11111111
        %v655 = vmul.f32 %v303, 0.11111111
        %v656 = vmul.f32 %v384, 0.11111111
        %v657 = vmul.f32 %v385, 0.11111111
        %v658 = vmul.f32 %v386, 0.11111111
        %v659 = vmul.f32 %v387, 0.11111111
        %v660 = vmul.f32 %v472, 0.11111111
        %v661 = vmul.f32 %v473, 0.11111111
        %v662 = vmul.f32 %v474, 0.11111111
        %v663 = vmul.f32 %v475, 0.11111111
        %v664 = vmul.f32 %v560, 0.11111111
        %v665 = vmul.f32 %v561, 0.11111111
        %v666 = vmul.f32 %v562, 0.11111111
        %v667 = vmul.f32 %v563, 0.11111111
        %v668 = vmul.f32 %v648, 0.11111111
        %v669 = vmul.f32 %v649, 0.11111111
        %v670 = vmul.f32 %v650, 0.11111111
        %v671 = vmul.f32 %v651, 0.11111111
        %v672 = vmul.f32 %v652, %v652
        %v673 = vmul.f32 %v653, %v653
        %v674 = vmul.f32 %v654, %v654
        %v675 = vmul.f32 %v655, %v655
        %v676 = vmul.f32 %v656, %v656
        %v677 = vmul.f32 %v657, %v657
        %v678 = vmul.f32 %v658, %v658
        %v679 = vmul.f32 %v659, %v659
        %v680 = vmul.f32 %v652, %v656
        %v681 = vmul.f32 %v653, %v657
        %v682 = vmul.f32 %v654, %v658
        %v683 = vmul.f32 %v655, %v659
        %v684 = vsub.f32 %v660, %v672
        %v685 = vsub.f32 %v661, %v673
        %v686 = vsub.f32 %v662, %v674
        %v687 = vsub.f32 %v663, %v675
        %v688 = vsub.f32 %v664, %v676
        %v689 = vsub.f32 %v665, %v677
        %v690 = vsub.f32 %v666, %v678
        %v691 = vsub.f32 %v667, %v679
        %v692 = vsub.f32 %v668, %v680
        %v693 = vsub.f32 %v669, %v681
        %v694 = vsub.f32 %v670, %v682
        %v695 = vsub.f32 %v671, %v683
        %v696 = vmul.f32 %v680, 2.0
        %v697 = vmul.f32 %v681, 2.0
        %v698 = vmul.f32 %v682, 2.0
        %v699 = vmul.f32 %v683, 2.0
        %v700 = vadd.f32 %v696, 0.0001
        %v701 = vadd.f32 %v697, 0.0001
        %v702 = vadd.f32 %v698, 0.0001
        %v703 = vadd.f32 %v699, 0.0001
        %v704 = vmul.f32 %v692, 2.0
        %v705 = vmul.f32 %v693, 2.0
        %v706 = vmul.f32 %v694, 2.0
        %v707 = vmul.f32 %v695, 2.0
        %v708 = vadd.f32 %v704, 0.0009
        %v709 = vadd.f32 %v705, 0.0009
        %v710 = vadd.f32 %v706, 0.0009
        %v711 = vadd.f32 %v707, 0.0009
        %v712 = vmul.f32 %v700, %v708
        %v713 = vmul.f32 %v701, %v709
        %v714 = vmul.f32 %v702, %v710
        %v715 = vmul.f32 %v703, %v711
        %v716 = vadd.f32 %v672, %v676
        %v717 = vadd.f32 %v673, %v677
        %v718 = vadd.f32 %v674, %v678
        %v719 = vadd.f32 %v675, %v679
        %v720 = vadd.f32 %v716, 0.0001
        %v721 = vadd.f32 %v717, 0.0001
        %v722 = vadd.f32 %v718, 0.0001
        %v723 = vadd.f32 %v719, 0.0001
        %v724 = vadd.f32 %v684, %v688
        %v725 = vadd.f32 %v685, %v689
        %v726 = vadd.f32 %v686, %v690
        %v727 = vadd.f32 %v687, %v691
        %v728 = vadd.f32 %v724, 0.0009
        %v729 = vadd.f32 %v725, 0.0009
        %v730 = vadd.f32 %v726, 0.0009
        %v731 = vadd.f32 %v727, 0.0009
        %v732 = vmul.f32 %v720, %v728
        %v733 = vmul.f32 %v721, %v729
        %v734 = vmul.f32 %v722, %v730
        %v735 = vmul.f32 %v723, %v731
        %v736 = vrcp.pop %v732
        %v737 = vrcp.pop %v733
        %v738 = vrcp.pop %v734
        %v739 = vrcp.pop %v735
        %v740 = vmul.f32 %v732, %v736
        %v741 = vmul.f32 %v733, %v737
        %v742 = vmul.f32 %v734, %v738
        %v743 = vmul.f32 %v735, %v739
        %v744 = vsub.f32 2.0, %v740
        %v745 = vsub.f32 2.0, %v741
        %v746 = vsub.f32 2.0, %v742
        %v747 = vsub.f32 2.0, %v743
        %v748 = vmul.f32 %v736, %v744
        %v749 = vmul.f32 %v737, %v745
        %v750 = vmul.f32 %v738, %v746
        %v751 = vmul.f32 %v739, %v747
        %v752 = vmul.f32 %v712, %v748
        %v753 = vmul.f32 %v713, %v749
        %v754 = vmul.f32 %v714, %v750
        %v755 = vmul.f32 %v715, %v751
        %v756 = vsub.f32 1.0, %v752
        %v757 = vsub.f32 1.0, %v753
        %v758 = vsub.f32 1.0, %v754
        %v759 = vsub.f32 1.0, %v755
        %v760 = vmul.f32 %v756, 0.5
        %v761 = vmul.f32 %v757, 0.5
        %v762 = vmul.f32 %v758, 0.5
        %v763 = vmul.f32 %v759, 0.5
        %v764 = vmax.f32 %v760, 0.0
        %v765 = vmax.f32 %v761, 0.0
        %v766 = vmax.f32 %v762, 0.0
        %v767 = vmax.f32 %v763, 0.0
        %v768 = vmin.f32 %v764, 1.0
        %v769 = vmin.f32 %v765, 1.0
        %v770 = vmin.f32 %v766, 1.0
        %v771 = vmin.f32 %v767, 1.0
        %vm772 = vcmask 130048
        %773 = vst.msk [vmem:[%s203] sm:$0xff] %vm772, %v768
        %774 = vst.msk [vmem:[%s203 + $0x8] sm:$0xff] %vm772, %v769
        %775 = vst.msk [vmem:[%s203 + $0x10] sm:$0xff] %vm772, %v770
        %776 = vst.msk [vmem:[%s203 + $0x18] sm:$0xff] %vm772, %v771
        %v777 = vlaneseq
        %v778 = vand.u32 %v777, 127
        %vm779 = vcmp.eq.s32.totalorder %v778, 0
        %vm780 = vcmp.eq.s32.totalorder %v778, 15
        %v781 = vadd.s32 %v281, 8
        %vm782 = vcmp.eq.s32.totalorder %v281, 0
        %vm783 = vcmp.eq.s32.totalorder %v781, 0
        %vm784 = vcmp.eq.s32.totalorder %v281, 15
        %vm785 = vcmp.eq.s32.totalorder %v781, 15
        %v786 = vld [vmem:[%s169] sm:$0x1]
        %v787 = vld [vmem:[%s169 + $0x10] sm:$0x1]
        %v788 = vld [vmem:[%s169 + $0x1] sm:$0x1]
        %v789 = vld [vmem:[%s169 + $0x11] sm:$0x1]
        %v790 = vld [vmem:[%s178] sm:$0x1]
        %v791 = vld [vmem:[%s178 + $0x10] sm:$0x1]
        %v792 = vld [vmem:[%s178 + $0x1] sm:$0x1]
        %v793 = vld [vmem:[%s178 + $0x11] sm:$0x1]
        %v794 = vmul.f32 %v788, 2.0
        %v795 = vmul.f32 %v789, 2.0
        %v796 = vadd.f32 %v786, %v794
        %v797 = vadd.f32 %v787, %v795
        %798 = vrot.lane.b32.xlu0 %v796, 16
        %v799 = vpop.permute.xlu0 %798
        %v800 = vsel %vm215, %v799, %v796
        %801 = vrot.lane.b32.xlu0 %v797, 16
        %v802 = vpop.permute.xlu0 %801
        %v803 = vsel %vm215, %v802, %v797
        %804 = vrot.lane.b32.xlu0 %v800, 16
        %v805 = vpop.permute.xlu0 %804
        %806 = vrot.lane.b32.xlu0 %v803, 16
        %v807 = vpop.permute.xlu0 %806
        %v808 = vsel %vm215, %v805, %v796
        %v809 = vsel %vm215, %v807, %v797
        %v810 = vsel %vm779, 1, 0
        %vm811 = vcmp.eq.s32.totalorder %v810, 1
        %814 = vrot.lane.b32.xlu0 %v808, 127
        %v815 = vpop.permute.xlu0 %814
        %816 = vrot.lane.b32.xlu0 %v809, 127
        %v817 = vpop.permute.xlu0 %816
        %820 = vrot.lane.b32.xlu0 %v808, 113
        %v821 = vpop.permute.xlu0 %820
        %822 = vrot.lane.b32.xlu0 %v809, 113
        %v823 = vpop.permute.xlu0 %822
        %v826 = vsel %vm811, %v815, %v821
        %v827 = vsel %vm811, %v817, %v823
        %v828 = vsel %vm780, 1, 0
        %vm829 = vcmp.eq.s32.totalorder %v828, 1
        %v830 = vsel %vm829, %v821, %v815
        %v831 = vsel %vm829, %v823, %v817
        %v832 = vadd.f32 %v796, %v826
        %v833 = vadd.f32 %v797, %v827
        %v834 = vadd.f32 %v832, %v830
        %v835 = vadd.f32 %v833, %v831
        %v836 = vmul.f32 %v792, 2.0
        %v837 = vmul.f32 %v793, 2.0
        %v838 = vadd.f32 %v790, %v836
        %v839 = vadd.f32 %v791, %v837
        %840 = vrot.lane.b32.xlu0 %v838, 16
        %v841 = vpop.permute.xlu0 %840
        %v842 = vsel %vm215, %v841, %v838
        %843 = vrot.lane.b32.xlu0 %v839, 16
        %v844 = vpop.permute.xlu0 %843
        %v845 = vsel %vm215, %v844, %v839
        %846 = vrot.lane.b32.xlu0 %v842, 16
        %v847 = vpop.permute.xlu0 %846
        %848 = vrot.lane.b32.xlu0 %v845, 16
        %v849 = vpop.permute.xlu0 %848
        %v850 = vsel %vm215, %v847, %v838
        %v851 = vsel %vm215, %v849, %v839
        %854 = vrot.lane.b32.xlu0 %v850, 127
        %v855 = vpop.permute.xlu0 %854
        %856 = vrot.lane.b32.xlu0 %v851, 127
        %v857 = vpop.permute.xlu0 %856
        %860 = vrot.lane.b32.xlu0 %v850, 113
        %v861 = vpop.permute.xlu0 %860
        %862 = vrot.lane.b32.xlu0 %v851, 113
        %v863 = vpop.permute.xlu0 %862
        %v866 = vsel %vm811, %v855, %v861
        %v867 = vsel %vm811, %v857, %v863
        %v868 = vsel %vm829, %v861, %v855
        %v869 = vsel %vm829, %v863, %v857
        %v870 = vadd.f32 %v838, %v866
        %v871 = vadd.f32 %v839, %v867
        %v872 = vadd.f32 %v870, %v868
        %v873 = vadd.f32 %v871, %v869
        %v874 = vmul.f32 %v786, %v786
        %v875 = vmul.f32 %v787, %v787
        %v876 = vmul.f32 %v788, %v788
        %v877 = vmul.f32 %v789, %v789
        %v878 = vmul.f32 %v876, 2.0
        %v879 = vmul.f32 %v877, 2.0
        %v880 = vadd.f32 %v874, %v878
        %v881 = vadd.f32 %v875, %v879
        %882 = vrot.lane.b32.xlu0 %v880, 16
        %v883 = vpop.permute.xlu0 %882
        %v884 = vsel %vm215, %v883, %v880
        %885 = vrot.lane.b32.xlu0 %v881, 16
        %v886 = vpop.permute.xlu0 %885
        %v887 = vsel %vm215, %v886, %v881
        %888 = vrot.lane.b32.xlu0 %v884, 16
        %v889 = vpop.permute.xlu0 %888
        %890 = vrot.lane.b32.xlu0 %v887, 16
        %v891 = vpop.permute.xlu0 %890
        %v892 = vsel %vm215, %v889, %v880
        %v893 = vsel %vm215, %v891, %v881
        %896 = vrot.lane.b32.xlu0 %v892, 127
        %v897 = vpop.permute.xlu0 %896
        %898 = vrot.lane.b32.xlu0 %v893, 127
        %v899 = vpop.permute.xlu0 %898
        %902 = vrot.lane.b32.xlu0 %v892, 113
        %v903 = vpop.permute.xlu0 %902
        %904 = vrot.lane.b32.xlu0 %v893, 113
        %v905 = vpop.permute.xlu0 %904
        %v908 = vsel %vm811, %v897, %v903
        %v909 = vsel %vm811, %v899, %v905
        %v910 = vsel %vm829, %v903, %v897
        %v911 = vsel %vm829, %v905, %v899
        %v912 = vadd.f32 %v880, %v908
        %v913 = vadd.f32 %v881, %v909
        %v914 = vadd.f32 %v912, %v910
        %v915 = vadd.f32 %v913, %v911
        %v916 = vmul.f32 %v790, %v790
        %v917 = vmul.f32 %v791, %v791
        %v918 = vmul.f32 %v792, %v792
        %v919 = vmul.f32 %v793, %v793
        %v920 = vmul.f32 %v918, 2.0
        %v921 = vmul.f32 %v919, 2.0
        %v922 = vadd.f32 %v916, %v920
        %v923 = vadd.f32 %v917, %v921
        %924 = vrot.lane.b32.xlu0 %v922, 16
        %v925 = vpop.permute.xlu0 %924
        %v926 = vsel %vm215, %v925, %v922
        %927 = vrot.lane.b32.xlu0 %v923, 16
        %v928 = vpop.permute.xlu0 %927
        %v929 = vsel %vm215, %v928, %v923
        %930 = vrot.lane.b32.xlu0 %v926, 16
        %v931 = vpop.permute.xlu0 %930
        %932 = vrot.lane.b32.xlu0 %v929, 16
        %v933 = vpop.permute.xlu0 %932
        %v934 = vsel %vm215, %v931, %v922
        %v935 = vsel %vm215, %v933, %v923
        %938 = vrot.lane.b32.xlu0 %v934, 127
        %v939 = vpop.permute.xlu0 %938
        %940 = vrot.lane.b32.xlu0 %v935, 127
        %v941 = vpop.permute.xlu0 %940
        %944 = vrot.lane.b32.xlu0 %v934, 113
        %v945 = vpop.permute.xlu0 %944
        %946 = vrot.lane.b32.xlu0 %v935, 113
        %v947 = vpop.permute.xlu0 %946
        %v950 = vsel %vm811, %v939, %v945
        %v951 = vsel %vm811, %v941, %v947
        %v952 = vsel %vm829, %v945, %v939
        %v953 = vsel %vm829, %v947, %v941
        %v954 = vadd.f32 %v922, %v950
        %v955 = vadd.f32 %v923, %v951
        %v956 = vadd.f32 %v954, %v952
        %v957 = vadd.f32 %v955, %v953
        %v958 = vmul.f32 %v786, %v790
        %v959 = vmul.f32 %v787, %v791
        %v960 = vmul.f32 %v788, %v792
        %v961 = vmul.f32 %v789, %v793
        %v962 = vmul.f32 %v960, 2.0
        %v963 = vmul.f32 %v961, 2.0
        %v964 = vadd.f32 %v958, %v962
        %v965 = vadd.f32 %v959, %v963
        %966 = vrot.lane.b32.xlu0 %v964, 16
        %v967 = vpop.permute.xlu0 %966
        %v968 = vsel %vm215, %v967, %v964
        %969 = vrot.lane.b32.xlu0 %v965, 16
        %v970 = vpop.permute.xlu0 %969
        %v971 = vsel %vm215, %v970, %v965
        %972 = vrot.lane.b32.xlu0 %v968, 16
        %v973 = vpop.permute.xlu0 %972
        %974 = vrot.lane.b32.xlu0 %v971, 16
        %v975 = vpop.permute.xlu0 %974
        %v976 = vsel %vm215, %v973, %v964
        %v977 = vsel %vm215, %v975, %v965
        %980 = vrot.lane.b32.xlu0 %v976, 127
        %v981 = vpop.permute.xlu0 %980
        %982 = vrot.lane.b32.xlu0 %v977, 127
        %v983 = vpop.permute.xlu0 %982
        %986 = vrot.lane.b32.xlu0 %v976, 113
        %v987 = vpop.permute.xlu0 %986
        %988 = vrot.lane.b32.xlu0 %v977, 113
        %v989 = vpop.permute.xlu0 %988
        %v992 = vsel %vm811, %v981, %v987
        %v993 = vsel %vm811, %v983, %v989
        %v994 = vsel %vm829, %v987, %v981
        %v995 = vsel %vm829, %v989, %v983
        %v996 = vadd.f32 %v964, %v992
        %v997 = vadd.f32 %v965, %v993
        %v998 = vadd.f32 %v996, %v994
        %v999 = vadd.f32 %v997, %v995
        %v1000 = vmul.f32 %v834, 0.11111111
        %v1001 = vmul.f32 %v835, 0.11111111
        %v1002 = vmul.f32 %v872, 0.11111111
        %v1003 = vmul.f32 %v873, 0.11111111
        %v1004 = vmul.f32 %v914, 0.11111111
        %v1005 = vmul.f32 %v915, 0.11111111
        %v1006 = vmul.f32 %v956, 0.11111111
        %v1007 = vmul.f32 %v957, 0.11111111
        %v1008 = vmul.f32 %v998, 0.11111111
        %v1009 = vmul.f32 %v999, 0.11111111
        %v1010 = vmul.f32 %v1000, %v1000
        %v1011 = vmul.f32 %v1001, %v1001
        %v1012 = vmul.f32 %v1002, %v1002
        %v1013 = vmul.f32 %v1003, %v1003
        %v1014 = vmul.f32 %v1000, %v1002
        %v1015 = vmul.f32 %v1001, %v1003
        %v1016 = vsub.f32 %v1004, %v1010
        %v1017 = vsub.f32 %v1005, %v1011
        %v1018 = vsub.f32 %v1006, %v1012
        %v1019 = vsub.f32 %v1007, %v1013
        %v1020 = vsub.f32 %v1008, %v1014
        %v1021 = vsub.f32 %v1009, %v1015
        %v1022 = vmul.f32 %v1014, 2.0
        %v1023 = vmul.f32 %v1015, 2.0
        %v1024 = vadd.f32 %v1022, 0.0001
        %v1025 = vadd.f32 %v1023, 0.0001
        %v1026 = vmul.f32 %v1020, 2.0
        %v1027 = vmul.f32 %v1021, 2.0
        %v1028 = vadd.f32 %v1026, 0.0009
        %v1029 = vadd.f32 %v1027, 0.0009
        %v1030 = vmul.f32 %v1024, %v1028
        %v1031 = vmul.f32 %v1025, %v1029
        %v1032 = vadd.f32 %v1010, %v1012
        %v1033 = vadd.f32 %v1011, %v1013
        %v1034 = vadd.f32 %v1032, 0.0001
        %v1035 = vadd.f32 %v1033, 0.0001
        %v1036 = vadd.f32 %v1016, %v1018
        %v1037 = vadd.f32 %v1017, %v1019
        %v1038 = vadd.f32 %v1036, 0.0009
        %v1039 = vadd.f32 %v1037, 0.0009
        %v1040 = vmul.f32 %v1034, %v1038
        %v1041 = vmul.f32 %v1035, %v1039
        %v1042 = vrcp.pop %v1040
        %v1043 = vrcp.pop %v1041
        %v1044 = vmul.f32 %v1040, %v1042
        %v1045 = vmul.f32 %v1041, %v1043
        %v1046 = vsub.f32 2.0, %v1044
        %v1047 = vsub.f32 2.0, %v1045
        %v1048 = vmul.f32 %v1042, %v1046
        %v1049 = vmul.f32 %v1043, %v1047
        %v1050 = vmul.f32 %v1030, %v1048
        %v1051 = vmul.f32 %v1031, %v1049
        %v1052 = vsub.f32 1.0, %v1050
        %v1053 = vsub.f32 1.0, %v1051
        %v1054 = vmul.f32 %v1052, 0.5
        %v1055 = vmul.f32 %v1053, 0.5
        %v1056 = vmax.f32 %v1054, 0.0
        %v1057 = vmax.f32 %v1055, 0.0
        %v1058 = vmin.f32 %v1056, 1.0
        %v1059 = vmin.f32 %v1057, 1.0
        %vm1060 = vcmask 122880
        %1061 = vst.msk [vmem:[%s203] sm:$0x1] %vm1060, %v1058
        %1062 = vst.msk [vmem:[%s203 + $0x10] sm:$0x1] %vm1060, %v1059
        %v1063 = vld [vmem:[%s169 + $0xf] sm:$0x1]
        %v1064 = vld [vmem:[%s169 + $0x1f] sm:$0x1]
        %v1065 = vld [vmem:[%s169 + $0xe] sm:$0x1]
        %v1066 = vld [vmem:[%s169 + $0x1e] sm:$0x1]
        %v1067 = vld [vmem:[%s178 + $0xf] sm:$0x1]
        %v1068 = vld [vmem:[%s178 + $0x1f] sm:$0x1]
        %v1069 = vld [vmem:[%s178 + $0xe] sm:$0x1]
        %v1070 = vld [vmem:[%s178 + $0x1e] sm:$0x1]
        %v1071 = vmul.f32 %v1065, 2.0
        %v1072 = vmul.f32 %v1066, 2.0
        %v1073 = vadd.f32 %v1063, %v1071
        %v1074 = vadd.f32 %v1064, %v1072
        %1075 = vrot.lane.b32.xlu0 %v1073, 16
        %v1076 = vpop.permute.xlu0 %1075
        %v1077 = vsel %vm215, %v1076, %v1073
        %1078 = vrot.lane.b32.xlu0 %v1074, 16
        %v1079 = vpop.permute.xlu0 %1078
        %v1080 = vsel %vm215, %v1079, %v1074
        %1081 = vrot.lane.b32.xlu0 %v1077, 16
        %v1082 = vpop.permute.xlu0 %1081
        %1083 = vrot.lane.b32.xlu0 %v1080, 16
        %v1084 = vpop.permute.xlu0 %1083
        %v1085 = vsel %vm215, %v1082, %v1073
        %v1086 = vsel %vm215, %v1084, %v1074
        %1089 = vrot.lane.b32.xlu0 %v1085, 127
        %v1090 = vpop.permute.xlu0 %1089
        %1091 = vrot.lane.b32.xlu0 %v1086, 127
        %v1092 = vpop.permute.xlu0 %1091
        %1095 = vrot.lane.b32.xlu0 %v1085, 113
        %v1096 = vpop.permute.xlu0 %1095
        %1097 = vrot.lane.b32.xlu0 %v1086, 113
        %v1098 = vpop.permute.xlu0 %1097
        %v1101 = vsel %vm811, %v1090, %v1096
        %v1102 = vsel %vm811, %v1092, %v1098
        %v1103 = vsel %vm829, %v1096, %v1090
        %v1104 = vsel %vm829, %v1098, %v1092
        %v1105 = vadd.f32 %v1073, %v1101
        %v1106 = vadd.f32 %v1074, %v1102
        %v1107 = vadd.f32 %v1105, %v1103
        %v1108 = vadd.f32 %v1106, %v1104
        %v1109 = vmul.f32 %v1069, 2.0
        %v1110 = vmul.f32 %v1070, 2.0
        %v1111 = vadd.f32 %v1067, %v1109
        %v1112 = vadd.f32 %v1068, %v1110
        %1113 = vrot.lane.b32.xlu0 %v1111, 16
        %v1114 = vpop.permute.xlu0 %1113
        %v1115 = vsel %vm215, %v1114, %v1111
        %1116 = vrot.lane.b32.xlu0 %v1112, 16
        %v1117 = vpop.permute.xlu0 %1116
        %v1118 = vsel %vm215, %v1117, %v1112
        %1119 = vrot.lane.b32.xlu0 %v1115, 16
        %v1120 = vpop.permute.xlu0 %1119
        %1121 = vrot.lane.b32.xlu0 %v1118, 16
        %v1122 = vpop.permute.xlu0 %1121
        %v1123 = vsel %vm215, %v1120, %v1111
        %v1124 = vsel %vm215, %v1122, %v1112
        %1127 = vrot.lane.b32.xlu0 %v1123, 127
        %v1128 = vpop.permute.xlu0 %1127
        %1129 = vrot.lane.b32.xlu0 %v1124, 127
        %v1130 = vpop.permute.xlu0 %1129
        %1133 = vrot.lane.b32.xlu0 %v1123, 113
        %v1134 = vpop.permute.xlu0 %1133
        %1135 = vrot.lane.b32.xlu0 %v1124, 113
        %v1136 = vpop.permute.xlu0 %1135
        %v1139 = vsel %vm811, %v1128, %v1134
        %v1140 = vsel %vm811, %v1130, %v1136
        %v1141 = vsel %vm829, %v1134, %v1128
        %v1142 = vsel %vm829, %v1136, %v1130
        %v1143 = vadd.f32 %v1111, %v1139
        %v1144 = vadd.f32 %v1112, %v1140
        %v1145 = vadd.f32 %v1143, %v1141
        %v1146 = vadd.f32 %v1144, %v1142
        %v1147 = vmul.f32 %v1063, %v1063
        %v1148 = vmul.f32 %v1064, %v1064
        %v1149 = vmul.f32 %v1065, %v1065
        %v1150 = vmul.f32 %v1066, %v1066
        %v1151 = vmul.f32 %v1149, 2.0
        %v1152 = vmul.f32 %v1150, 2.0
        %v1153 = vadd.f32 %v1147, %v1151
        %v1154 = vadd.f32 %v1148, %v1152
        %1155 = vrot.lane.b32.xlu0 %v1153, 16
        %v1156 = vpop.permute.xlu0 %1155
        %v1157 = vsel %vm215, %v1156, %v1153
        %1158 = vrot.lane.b32.xlu0 %v1154, 16
        %v1159 = vpop.permute.xlu0 %1158
        %v1160 = vsel %vm215, %v1159, %v1154
        %1161 = vrot.lane.b32.xlu0 %v1157, 16
        %v1162 = vpop.permute.xlu0 %1161
        %1163 = vrot.lane.b32.xlu0 %v1160, 16
        %v1164 = vpop.permute.xlu0 %1163
        %v1165 = vsel %vm215, %v1162, %v1153
        %v1166 = vsel %vm215, %v1164, %v1154
        %1169 = vrot.lane.b32.xlu0 %v1165, 127
        %v1170 = vpop.permute.xlu0 %1169
        %1171 = vrot.lane.b32.xlu0 %v1166, 127
        %v1172 = vpop.permute.xlu0 %1171
        %1175 = vrot.lane.b32.xlu0 %v1165, 113
        %v1176 = vpop.permute.xlu0 %1175
        %1177 = vrot.lane.b32.xlu0 %v1166, 113
        %v1178 = vpop.permute.xlu0 %1177
        %v1181 = vsel %vm811, %v1170, %v1176
        %v1182 = vsel %vm811, %v1172, %v1178
        %v1183 = vsel %vm829, %v1176, %v1170
        %v1184 = vsel %vm829, %v1178, %v1172
        %v1185 = vadd.f32 %v1153, %v1181
        %v1186 = vadd.f32 %v1154, %v1182
        %v1187 = vadd.f32 %v1185, %v1183
        %v1188 = vadd.f32 %v1186, %v1184
        %v1189 = vmul.f32 %v1067, %v1067
        %v1190 = vmul.f32 %v1068, %v1068
        %v1191 = vmul.f32 %v1069, %v1069
        %v1192 = vmul.f32 %v1070, %v1070
        %v1193 = vmul.f32 %v1191, 2.0
        %v1194 = vmul.f32 %v1192, 2.0
        %v1195 = vadd.f32 %v1189, %v1193
        %v1196 = vadd.f32 %v1190, %v1194
        %1197 = vrot.lane.b32.xlu0 %v1195, 16
        %v1198 = vpop.permute.xlu0 %1197
        %v1199 = vsel %vm215, %v1198, %v1195
        %1200 = vrot.lane.b32.xlu0 %v1196, 16
        %v1201 = vpop.permute.xlu0 %1200
        %v1202 = vsel %vm215, %v1201, %v1196
        %1203 = vrot.lane.b32.xlu0 %v1199, 16
        %v1204 = vpop.permute.xlu0 %1203
        %1205 = vrot.lane.b32.xlu0 %v1202, 16
        %v1206 = vpop.permute.xlu0 %1205
        %v1207 = vsel %vm215, %v1204, %v1195
        %v1208 = vsel %vm215, %v1206, %v1196
        %1211 = vrot.lane.b32.xlu0 %v1207, 127
        %v1212 = vpop.permute.xlu0 %1211
        %1213 = vrot.lane.b32.xlu0 %v1208, 127
        %v1214 = vpop.permute.xlu0 %1213
        %1217 = vrot.lane.b32.xlu0 %v1207, 113
        %v1218 = vpop.permute.xlu0 %1217
        %1219 = vrot.lane.b32.xlu0 %v1208, 113
        %v1220 = vpop.permute.xlu0 %1219
        %v1223 = vsel %vm811, %v1212, %v1218
        %v1224 = vsel %vm811, %v1214, %v1220
        %v1225 = vsel %vm829, %v1218, %v1212
        %v1226 = vsel %vm829, %v1220, %v1214
        %v1227 = vadd.f32 %v1195, %v1223
        %v1228 = vadd.f32 %v1196, %v1224
        %v1229 = vadd.f32 %v1227, %v1225
        %v1230 = vadd.f32 %v1228, %v1226
        %v1231 = vmul.f32 %v1063, %v1067
        %v1232 = vmul.f32 %v1064, %v1068
        %v1233 = vmul.f32 %v1065, %v1069
        %v1234 = vmul.f32 %v1066, %v1070
        %v1235 = vmul.f32 %v1233, 2.0
        %v1236 = vmul.f32 %v1234, 2.0
        %v1237 = vadd.f32 %v1231, %v1235
        %v1238 = vadd.f32 %v1232, %v1236
        %1239 = vrot.lane.b32.xlu0 %v1237, 16
        %v1240 = vpop.permute.xlu0 %1239
        %v1241 = vsel %vm215, %v1240, %v1237
        %1242 = vrot.lane.b32.xlu0 %v1238, 16
        %v1243 = vpop.permute.xlu0 %1242
        %v1244 = vsel %vm215, %v1243, %v1238
        %1245 = vrot.lane.b32.xlu0 %v1241, 16
        %v1246 = vpop.permute.xlu0 %1245
        %1247 = vrot.lane.b32.xlu0 %v1244, 16
        %v1248 = vpop.permute.xlu0 %1247
        %v1249 = vsel %vm215, %v1246, %v1237
        %v1250 = vsel %vm215, %v1248, %v1238
        %1253 = vrot.lane.b32.xlu0 %v1249, 127
        %v1254 = vpop.permute.xlu0 %1253
        %1255 = vrot.lane.b32.xlu0 %v1250, 127
        %v1256 = vpop.permute.xlu0 %1255
        %1259 = vrot.lane.b32.xlu0 %v1249, 113
        %v1260 = vpop.permute.xlu0 %1259
        %1261 = vrot.lane.b32.xlu0 %v1250, 113
        %v1262 = vpop.permute.xlu0 %1261
        %v1265 = vsel %vm811, %v1254, %v1260
        %v1266 = vsel %vm811, %v1256, %v1262
        %v1267 = vsel %vm829, %v1260, %v1254
        %v1268 = vsel %vm829, %v1262, %v1256
        %v1269 = vadd.f32 %v1237, %v1265
        %v1270 = vadd.f32 %v1238, %v1266
        %v1271 = vadd.f32 %v1269, %v1267
        %v1272 = vadd.f32 %v1270, %v1268
        %v1273 = vmul.f32 %v1107, 0.11111111
        %v1274 = vmul.f32 %v1108, 0.11111111
        %v1275 = vmul.f32 %v1145, 0.11111111
        %v1276 = vmul.f32 %v1146, 0.11111111
        %v1277 = vmul.f32 %v1187, 0.11111111
        %v1278 = vmul.f32 %v1188, 0.11111111
        %v1279 = vmul.f32 %v1229, 0.11111111
        %v1280 = vmul.f32 %v1230, 0.11111111
        %v1281 = vmul.f32 %v1271, 0.11111111
        %v1282 = vmul.f32 %v1272, 0.11111111
        %v1283 = vmul.f32 %v1273, %v1273
        %v1284 = vmul.f32 %v1274, %v1274
        %v1285 = vmul.f32 %v1275, %v1275
        %v1286 = vmul.f32 %v1276, %v1276
        %v1287 = vmul.f32 %v1273, %v1275
        %v1288 = vmul.f32 %v1274, %v1276
        %v1289 = vsub.f32 %v1277, %v1283
        %v1290 = vsub.f32 %v1278, %v1284
        %v1291 = vsub.f32 %v1279, %v1285
        %v1292 = vsub.f32 %v1280, %v1286
        %v1293 = vsub.f32 %v1281, %v1287
        %v1294 = vsub.f32 %v1282, %v1288
        %v1295 = vmul.f32 %v1287, 2.0
        %v1296 = vmul.f32 %v1288, 2.0
        %v1297 = vadd.f32 %v1295, 0.0001
        %v1298 = vadd.f32 %v1296, 0.0001
        %v1299 = vmul.f32 %v1293, 2.0
        %v1300 = vmul.f32 %v1294, 2.0
        %v1301 = vadd.f32 %v1299, 0.0009
        %v1302 = vadd.f32 %v1300, 0.0009
        %v1303 = vmul.f32 %v1297, %v1301
        %v1304 = vmul.f32 %v1298, %v1302
        %v1305 = vadd.f32 %v1283, %v1285
        %v1306 = vadd.f32 %v1284, %v1286
        %v1307 = vadd.f32 %v1305, 0.0001
        %v1308 = vadd.f32 %v1306, 0.0001
        %v1309 = vadd.f32 %v1289, %v1291
        %v1310 = vadd.f32 %v1290, %v1292
        %v1311 = vadd.f32 %v1309, 0.0009
        %v1312 = vadd.f32 %v1310, 0.0009
        %v1313 = vmul.f32 %v1307, %v1311
        %v1314 = vmul.f32 %v1308, %v1312
        %v1315 = vrcp.pop %v1313
        %v1316 = vrcp.pop %v1314
        %v1317 = vmul.f32 %v1313, %v1315
        %v1318 = vmul.f32 %v1314, %v1316
        %v1319 = vsub.f32 2.0, %v1317
        %v1320 = vsub.f32 2.0, %v1318
        %v1321 = vmul.f32 %v1315, %v1319
        %v1322 = vmul.f32 %v1316, %v1320
        %v1323 = vmul.f32 %v1303, %v1321
        %v1324 = vmul.f32 %v1304, %v1322
        %v1325 = vsub.f32 1.0, %v1323
        %v1326 = vsub.f32 1.0, %v1324
        %v1327 = vmul.f32 %v1325, 0.5
        %v1328 = vmul.f32 %v1326, 0.5
        %v1329 = vmax.f32 %v1327, 0.0
        %v1330 = vmax.f32 %v1328, 0.0
        %v1331 = vmin.f32 %v1329, 1.0
        %v1332 = vmin.f32 %v1330, 1.0
        %1333 = vst.msk [vmem:[%s203 + $0xf] sm:$0x1] %vm1060, %v1331
        %1334 = vst.msk [vmem:[%s203 + $0x1f] sm:$0x1] %vm1060, %v1332
        %v1335 = vld [vmem:[%s169] sm:$0xff]
        %v1336 = vld [vmem:[%s169 + $0x8] sm:$0xff]
        %v1337 = vld [vmem:[%s169 + $0x10] sm:$0xff]
        %v1338 = vld [vmem:[%s169 + $0x18] sm:$0xff]
        %v1339 = vld [vmem:[%s178] sm:$0xff]
        %v1340 = vld [vmem:[%s178 + $0x8] sm:$0xff]
        %v1341 = vld [vmem:[%s178 + $0x10] sm:$0xff]
        %v1342 = vld [vmem:[%s178 + $0x18] sm:$0xff]
        %v1343 = vmul.f32 %v1335, 2.0
        %v1344 = vmul.f32 %v1336, 2.0
        %v1345 = vmul.f32 %v1337, 2.0
        %v1346 = vmul.f32 %v1338, 2.0
        %1351 = vrot.lane.b32.xlu0 %v1343, 127
        %v1352 = vpop.permute.xlu0 %1351
        %1353 = vrot.lane.b32.xlu0 %v1344, 127
        %v1354 = vpop.permute.xlu0 %1353
        %1355 = vrot.lane.b32.xlu0 %v1345, 127
        %v1356 = vpop.permute.xlu0 %1355
        %1357 = vrot.lane.b32.xlu0 %v1346, 127
        %v1358 = vpop.permute.xlu0 %1357
        %v1363 = vadd.f32 %v1335, %v1352
        %v1364 = vadd.f32 %v1336, %v1354
        %v1365 = vadd.f32 %v1337, %v1356
        %v1366 = vadd.f32 %v1338, %v1358
        %v1367 = vrot.slane %v1363, 7
        %v1368 = vrot.slane %v1365, 7
        %v1369 = vrot.slane %v1364, 7
        %v1370 = vrot.slane %v1366, 7
        %v1371 = vsel %vm282, %v1367, %v1369
        %v1372 = vsel %vm282, %v1368, %v1370
        %v1373 = vsel %vm282, %v1369, %v1367
        %v1374 = vsel %vm282, %v1370, %v1368
        %v1375 = vrot.slane %v1363, 1
        %v1376 = vrot.slane %v1365, 1
        %v1377 = vrot.slane %v1364, 1
        %v1378 = vrot.slane %v1366, 1
        %v1379 = vsel %vm295, %v1375, %v1377
        %v1380 = vsel %vm295, %v1376, %v1378
        %v1381 = vsel %vm295, %v1377, %v1375
        %v1382 = vsel %vm295, %v1378, %v1376
        %v1383 = vsel %vm782, 1, 0
        %v1384 = vsel %vm783, 1, 0
        %vm1385 = vcmp.eq.s32.totalorder %v1383, 1
        %vm1386 = vcmp.eq.s32.totalorder %v1384, 1
        %v1387 = vsel %vm1385, %v1379, %v1373
        %v1388 = vsel %vm1386, %v1381, %v1371
        %v1389 = vsel %vm1385, %v1380, %v1374
        %v1390 = vsel %vm1386, %v1382, %v1372
        %v1391 = vsel %vm784, 1, 0
        %v1392 = vsel %vm785, 1, 0
        %vm1393 = vcmp.eq.s32.totalorder %v1391, 1
        %vm1394 = vcmp.eq.s32.totalorder %v1392, 1
        %v1395 = vsel %vm1393, %v1373, %v1379
        %v1396 = vsel %vm1394, %v1371, %v1381
        %v1397 = vsel %vm1393, %v1374, %v1380
        %v1398 = vsel %vm1394, %v1372, %v1382
        %v1399 = vadd.f32 %v1363, %v1387
        %v1400 = vadd.f32 %v1364, %v1388
        %v1401 = vadd.f32 %v1365, %v1389
        %v1402 = vadd.f32 %v1366, %v1390
        %v1403 = vadd.f32 %v1399, %v1395
        %v1404 = vadd.f32 %v1400, %v1396
        %v1405 = vadd.f32 %v1401, %v1397
        %v1406 = vadd.f32 %v1402, %v1398
        %v1407 = vmul.f32 %v1339, 2.0
        %v1408 = vmul.f32 %v1340, 2.0
        %v1409 = vmul.f32 %v1341, 2.0
        %v1410 = vmul.f32 %v1342, 2.0
        %1415 = vrot.lane.b32.xlu0 %v1407, 127
        %v1416 = vpop.permute.xlu0 %1415
        %1417 = vrot.lane.b32.xlu0 %v1408, 127
        %v1418 = vpop.permute.xlu0 %1417
        %1419 = vrot.lane.b32.xlu0 %v1409, 127
        %v1420 = vpop.permute.xlu0 %1419
        %1421 = vrot.lane.b32.xlu0 %v1410, 127
        %v1422 = vpop.permute.xlu0 %1421
        %v1427 = vadd.f32 %v1339, %v1416
        %v1428 = vadd.f32 %v1340, %v1418
        %v1429 = vadd.f32 %v1341, %v1420
        %v1430 = vadd.f32 %v1342, %v1422
        %v1431 = vrot.slane %v1427, 7
        %v1432 = vrot.slane %v1429, 7
        %v1433 = vrot.slane %v1428, 7
        %v1434 = vrot.slane %v1430, 7
        %v1435 = vsel %vm282, %v1431, %v1433
        %v1436 = vsel %vm282, %v1432, %v1434
        %v1437 = vsel %vm282, %v1433, %v1431
        %v1438 = vsel %vm282, %v1434, %v1432
        %v1439 = vrot.slane %v1427, 1
        %v1440 = vrot.slane %v1429, 1
        %v1441 = vrot.slane %v1428, 1
        %v1442 = vrot.slane %v1430, 1
        %v1443 = vsel %vm295, %v1439, %v1441
        %v1444 = vsel %vm295, %v1440, %v1442
        %v1445 = vsel %vm295, %v1441, %v1439
        %v1446 = vsel %vm295, %v1442, %v1440
        %v1447 = vsel %vm1385, %v1443, %v1437
        %v1448 = vsel %vm1386, %v1445, %v1435
        %v1449 = vsel %vm1385, %v1444, %v1438
        %v1450 = vsel %vm1386, %v1446, %v1436
        %v1451 = vsel %vm1393, %v1437, %v1443
        %v1452 = vsel %vm1394, %v1435, %v1445
        %v1453 = vsel %vm1393, %v1438, %v1444
        %v1454 = vsel %vm1394, %v1436, %v1446
        %v1455 = vadd.f32 %v1427, %v1447
        %v1456 = vadd.f32 %v1428, %v1448
        %v1457 = vadd.f32 %v1429, %v1449
        %v1458 = vadd.f32 %v1430, %v1450
        %v1459 = vadd.f32 %v1455, %v1451
        %v1460 = vadd.f32 %v1456, %v1452
        %v1461 = vadd.f32 %v1457, %v1453
        %v1462 = vadd.f32 %v1458, %v1454
        %v1463 = vmul.f32 %v1335, %v1335
        %v1464 = vmul.f32 %v1336, %v1336
        %v1465 = vmul.f32 %v1337, %v1337
        %v1466 = vmul.f32 %v1338, %v1338
        %v1467 = vmul.f32 %v1463, 2.0
        %v1468 = vmul.f32 %v1464, 2.0
        %v1469 = vmul.f32 %v1465, 2.0
        %v1470 = vmul.f32 %v1466, 2.0
        %1475 = vrot.lane.b32.xlu0 %v1467, 127
        %v1476 = vpop.permute.xlu0 %1475
        %1477 = vrot.lane.b32.xlu0 %v1468, 127
        %v1478 = vpop.permute.xlu0 %1477
        %1479 = vrot.lane.b32.xlu0 %v1469, 127
        %v1480 = vpop.permute.xlu0 %1479
        %1481 = vrot.lane.b32.xlu0 %v1470, 127
        %v1482 = vpop.permute.xlu0 %1481
        %v1487 = vadd.f32 %v1463, %v1476
        %v1488 = vadd.f32 %v1464, %v1478
        %v1489 = vadd.f32 %v1465, %v1480
        %v1490 = vadd.f32 %v1466, %v1482
        %v1491 = vrot.slane %v1487, 7
        %v1492 = vrot.slane %v1489, 7
        %v1493 = vrot.slane %v1488, 7
        %v1494 = vrot.slane %v1490, 7
        %v1495 = vsel %vm282, %v1491, %v1493
        %v1496 = vsel %vm282, %v1492, %v1494
        %v1497 = vsel %vm282, %v1493, %v1491
        %v1498 = vsel %vm282, %v1494, %v1492
        %v1499 = vrot.slane %v1487, 1
        %v1500 = vrot.slane %v1489, 1
        %v1501 = vrot.slane %v1488, 1
        %v1502 = vrot.slane %v1490, 1
        %v1503 = vsel %vm295, %v1499, %v1501
        %v1504 = vsel %vm295, %v1500, %v1502
        %v1505 = vsel %vm295, %v1501, %v1499
        %v1506 = vsel %vm295, %v1502, %v1500
        %v1507 = vsel %vm1385, %v1503, %v1497
        %v1508 = vsel %vm1386, %v1505, %v1495
        %v1509 = vsel %vm1385, %v1504, %v1498
        %v1510 = vsel %vm1386, %v1506, %v1496
        %v1511 = vsel %vm1393, %v1497, %v1503
        %v1512 = vsel %vm1394, %v1495, %v1505
        %v1513 = vsel %vm1393, %v1498, %v1504
        %v1514 = vsel %vm1394, %v1496, %v1506
        %v1515 = vadd.f32 %v1487, %v1507
        %v1516 = vadd.f32 %v1488, %v1508
        %v1517 = vadd.f32 %v1489, %v1509
        %v1518 = vadd.f32 %v1490, %v1510
        %v1519 = vadd.f32 %v1515, %v1511
        %v1520 = vadd.f32 %v1516, %v1512
        %v1521 = vadd.f32 %v1517, %v1513
        %v1522 = vadd.f32 %v1518, %v1514
        %v1523 = vmul.f32 %v1339, %v1339
        %v1524 = vmul.f32 %v1340, %v1340
        %v1525 = vmul.f32 %v1341, %v1341
        %v1526 = vmul.f32 %v1342, %v1342
        %v1527 = vmul.f32 %v1523, 2.0
        %v1528 = vmul.f32 %v1524, 2.0
        %v1529 = vmul.f32 %v1525, 2.0
        %v1530 = vmul.f32 %v1526, 2.0
        %1535 = vrot.lane.b32.xlu0 %v1527, 127
        %v1536 = vpop.permute.xlu0 %1535
        %1537 = vrot.lane.b32.xlu0 %v1528, 127
        %v1538 = vpop.permute.xlu0 %1537
        %1539 = vrot.lane.b32.xlu0 %v1529, 127
        %v1540 = vpop.permute.xlu0 %1539
        %1541 = vrot.lane.b32.xlu0 %v1530, 127
        %v1542 = vpop.permute.xlu0 %1541
        %v1547 = vadd.f32 %v1523, %v1536
        %v1548 = vadd.f32 %v1524, %v1538
        %v1549 = vadd.f32 %v1525, %v1540
        %v1550 = vadd.f32 %v1526, %v1542
        %v1551 = vrot.slane %v1547, 7
        %v1552 = vrot.slane %v1549, 7
        %v1553 = vrot.slane %v1548, 7
        %v1554 = vrot.slane %v1550, 7
        %v1555 = vsel %vm282, %v1551, %v1553
        %v1556 = vsel %vm282, %v1552, %v1554
        %v1557 = vsel %vm282, %v1553, %v1551
        %v1558 = vsel %vm282, %v1554, %v1552
        %v1559 = vrot.slane %v1547, 1
        %v1560 = vrot.slane %v1549, 1
        %v1561 = vrot.slane %v1548, 1
        %v1562 = vrot.slane %v1550, 1
        %v1563 = vsel %vm295, %v1559, %v1561
        %v1564 = vsel %vm295, %v1560, %v1562
        %v1565 = vsel %vm295, %v1561, %v1559
        %v1566 = vsel %vm295, %v1562, %v1560
        %v1567 = vsel %vm1385, %v1563, %v1557
        %v1568 = vsel %vm1386, %v1565, %v1555
        %v1569 = vsel %vm1385, %v1564, %v1558
        %v1570 = vsel %vm1386, %v1566, %v1556
        %v1571 = vsel %vm1393, %v1557, %v1563
        %v1572 = vsel %vm1394, %v1555, %v1565
        %v1573 = vsel %vm1393, %v1558, %v1564
        %v1574 = vsel %vm1394, %v1556, %v1566
        %v1575 = vadd.f32 %v1547, %v1567
        %v1576 = vadd.f32 %v1548, %v1568
        %v1577 = vadd.f32 %v1549, %v1569
        %v1578 = vadd.f32 %v1550, %v1570
        %v1579 = vadd.f32 %v1575, %v1571
        %v1580 = vadd.f32 %v1576, %v1572
        %v1581 = vadd.f32 %v1577, %v1573
        %v1582 = vadd.f32 %v1578, %v1574
        %v1583 = vmul.f32 %v1335, %v1339
        %v1584 = vmul.f32 %v1336, %v1340
        %v1585 = vmul.f32 %v1337, %v1341
        %v1586 = vmul.f32 %v1338, %v1342
        %v1587 = vmul.f32 %v1583, 2.0
        %v1588 = vmul.f32 %v1584, 2.0
        %v1589 = vmul.f32 %v1585, 2.0
        %v1590 = vmul.f32 %v1586, 2.0
        %1595 = vrot.lane.b32.xlu0 %v1587, 127
        %v1596 = vpop.permute.xlu0 %1595
        %1597 = vrot.lane.b32.xlu0 %v1588, 127
        %v1598 = vpop.permute.xlu0 %1597
        %1599 = vrot.lane.b32.xlu0 %v1589, 127
        %v1600 = vpop.permute.xlu0 %1599
        %1601 = vrot.lane.b32.xlu0 %v1590, 127
        %v1602 = vpop.permute.xlu0 %1601
        %v1607 = vadd.f32 %v1583, %v1596
        %v1608 = vadd.f32 %v1584, %v1598
        %v1609 = vadd.f32 %v1585, %v1600
        %v1610 = vadd.f32 %v1586, %v1602
        %v1611 = vrot.slane %v1607, 7
        %v1612 = vrot.slane %v1609, 7
        %v1613 = vrot.slane %v1608, 7
        %v1614 = vrot.slane %v1610, 7
        %v1615 = vsel %vm282, %v1611, %v1613
        %v1616 = vsel %vm282, %v1612, %v1614
        %v1617 = vsel %vm282, %v1613, %v1611
        %v1618 = vsel %vm282, %v1614, %v1612
        %v1619 = vrot.slane %v1607, 1
        %v1620 = vrot.slane %v1609, 1
        %v1621 = vrot.slane %v1608, 1
        %v1622 = vrot.slane %v1610, 1
        %v1623 = vsel %vm295, %v1619, %v1621
        %v1624 = vsel %vm295, %v1620, %v1622
        %v1625 = vsel %vm295, %v1621, %v1619
        %v1626 = vsel %vm295, %v1622, %v1620
        %v1627 = vsel %vm1385, %v1623, %v1617
        %v1628 = vsel %vm1386, %v1625, %v1615
        %v1629 = vsel %vm1385, %v1624, %v1618
        %v1630 = vsel %vm1386, %v1626, %v1616
        %v1631 = vsel %vm1393, %v1617, %v1623
        %v1632 = vsel %vm1394, %v1615, %v1625
        %v1633 = vsel %vm1393, %v1618, %v1624
        %v1634 = vsel %vm1394, %v1616, %v1626
        %v1635 = vadd.f32 %v1607, %v1627
        %v1636 = vadd.f32 %v1608, %v1628
        %v1637 = vadd.f32 %v1609, %v1629
        %v1638 = vadd.f32 %v1610, %v1630
        %v1639 = vadd.f32 %v1635, %v1631
        %v1640 = vadd.f32 %v1636, %v1632
        %v1641 = vadd.f32 %v1637, %v1633
        %v1642 = vadd.f32 %v1638, %v1634
        %v1643 = vmul.f32 %v1403, 0.11111111
        %v1644 = vmul.f32 %v1404, 0.11111111
        %v1645 = vmul.f32 %v1405, 0.11111111
        %v1646 = vmul.f32 %v1406, 0.11111111
        %v1647 = vmul.f32 %v1459, 0.11111111
        %v1648 = vmul.f32 %v1460, 0.11111111
        %v1649 = vmul.f32 %v1461, 0.11111111
        %v1650 = vmul.f32 %v1462, 0.11111111
        %v1651 = vmul.f32 %v1519, 0.11111111
        %v1652 = vmul.f32 %v1520, 0.11111111
        %v1653 = vmul.f32 %v1521, 0.11111111
        %v1654 = vmul.f32 %v1522, 0.11111111
        %v1655 = vmul.f32 %v1579, 0.11111111
        %v1656 = vmul.f32 %v1580, 0.11111111
        %v1657 = vmul.f32 %v1581, 0.11111111
        %v1658 = vmul.f32 %v1582, 0.11111111
        %v1659 = vmul.f32 %v1639, 0.11111111
        %v1660 = vmul.f32 %v1640, 0.11111111
        %v1661 = vmul.f32 %v1641, 0.11111111
        %v1662 = vmul.f32 %v1642, 0.11111111
        %v1663 = vmul.f32 %v1643, %v1643
        %v1664 = vmul.f32 %v1644, %v1644
        %v1665 = vmul.f32 %v1645, %v1645
        %v1666 = vmul.f32 %v1646, %v1646
        %v1667 = vmul.f32 %v1647, %v1647
        %v1668 = vmul.f32 %v1648, %v1648
        %v1669 = vmul.f32 %v1649, %v1649
        %v1670 = vmul.f32 %v1650, %v1650
        %v1671 = vmul.f32 %v1643, %v1647
        %v1672 = vmul.f32 %v1644, %v1648
        %v1673 = vmul.f32 %v1645, %v1649
        %v1674 = vmul.f32 %v1646, %v1650
        %v1675 = vsub.f32 %v1651, %v1663
        %v1676 = vsub.f32 %v1652, %v1664
        %v1677 = vsub.f32 %v1653, %v1665
        %v1678 = vsub.f32 %v1654, %v1666
        %v1679 = vsub.f32 %v1655, %v1667
        %v1680 = vsub.f32 %v1656, %v1668
        %v1681 = vsub.f32 %v1657, %v1669
        %v1682 = vsub.f32 %v1658, %v1670
        %v1683 = vsub.f32 %v1659, %v1671
        %v1684 = vsub.f32 %v1660, %v1672
        %v1685 = vsub.f32 %v1661, %v1673
        %v1686 = vsub.f32 %v1662, %v1674
        %v1687 = vmul.f32 %v1671, 2.0
        %v1688 = vmul.f32 %v1672, 2.0
        %v1689 = vmul.f32 %v1673, 2.0
        %v1690 = vmul.f32 %v1674, 2.0
        %v1691 = vadd.f32 %v1687, 0.0001
        %v1692 = vadd.f32 %v1688, 0.0001
        %v1693 = vadd.f32 %v1689, 0.0001
        %v1694 = vadd.f32 %v1690, 0.0001
        %v1695 = vmul.f32 %v1683, 2.0
        %v1696 = vmul.f32 %v1684, 2.0
        %v1697 = vmul.f32 %v1685, 2.0
        %v1698 = vmul.f32 %v1686, 2.0
        %v1699 = vadd.f32 %v1695, 0.0009
        %v1700 = vadd.f32 %v1696, 0.0009
        %v1701 = vadd.f32 %v1697, 0.0009
        %v1702 = vadd.f32 %v1698, 0.0009
        %v1703 = vmul.f32 %v1691, %v1699
        %v1704 = vmul.f32 %v1692, %v1700
        %v1705 = vmul.f32 %v1693, %v1701
        %v1706 = vmul.f32 %v1694, %v1702
        %v1707 = vadd.f32 %v1663, %v1667
        %v1708 = vadd.f32 %v1664, %v1668
        %v1709 = vadd.f32 %v1665, %v1669
        %v1710 = vadd.f32 %v1666, %v1670
        %v1711 = vadd.f32 %v1707, 0.0001
        %v1712 = vadd.f32 %v1708, 0.0001
        %v1713 = vadd.f32 %v1709, 0.0001
        %v1714 = vadd.f32 %v1710, 0.0001
        %v1715 = vadd.f32 %v1675, %v1679
        %v1716 = vadd.f32 %v1676, %v1680
        %v1717 = vadd.f32 %v1677, %v1681
        %v1718 = vadd.f32 %v1678, %v1682
        %v1719 = vadd.f32 %v1715, 0.0009
        %v1720 = vadd.f32 %v1716, 0.0009
        %v1721 = vadd.f32 %v1717, 0.0009
        %v1722 = vadd.f32 %v1718, 0.0009
        %v1723 = vmul.f32 %v1711, %v1719
        %v1724 = vmul.f32 %v1712, %v1720
        %v1725 = vmul.f32 %v1713, %v1721
        %v1726 = vmul.f32 %v1714, %v1722
        %v1727 = vrcp.pop %v1723
        %v1728 = vrcp.pop %v1724
        %v1729 = vrcp.pop %v1725
        %v1730 = vrcp.pop %v1726
        %v1731 = vmul.f32 %v1723, %v1727
        %v1732 = vmul.f32 %v1724, %v1728
        %v1733 = vmul.f32 %v1725, %v1729
        %v1734 = vmul.f32 %v1726, %v1730
        %v1735 = vsub.f32 2.0, %v1731
        %v1736 = vsub.f32 2.0, %v1732
        %v1737 = vsub.f32 2.0, %v1733
        %v1738 = vsub.f32 2.0, %v1734
        %v1739 = vmul.f32 %v1727, %v1735
        %v1740 = vmul.f32 %v1728, %v1736
        %v1741 = vmul.f32 %v1729, %v1737
        %v1742 = vmul.f32 %v1730, %v1738
        %v1743 = vmul.f32 %v1703, %v1739
        %v1744 = vmul.f32 %v1704, %v1740
        %v1745 = vmul.f32 %v1705, %v1741
        %v1746 = vmul.f32 %v1706, %v1742
        %v1747 = vsub.f32 1.0, %v1743
        %v1748 = vsub.f32 1.0, %v1744
        %v1749 = vsub.f32 1.0, %v1745
        %v1750 = vsub.f32 1.0, %v1746
        %v1751 = vmul.f32 %v1747, 0.5
        %v1752 = vmul.f32 %v1748, 0.5
        %v1753 = vmul.f32 %v1749, 0.5
        %v1754 = vmul.f32 %v1750, 0.5
        %v1755 = vmax.f32 %v1751, 0.0
        %v1756 = vmax.f32 %v1752, 0.0
        %v1757 = vmax.f32 %v1753, 0.0
        %v1758 = vmax.f32 %v1754, 0.0
        %v1759 = vmin.f32 %v1755, 1.0
        %v1760 = vmin.f32 %v1756, 1.0
        %v1761 = vmin.f32 %v1757, 1.0
        %v1762 = vmin.f32 %v1758, 1.0
        %vm1763 = vcmask 7168
        %1764 = vst.msk [vmem:[%s203] sm:$0xff] %vm1763, %v1759
        %1765 = vst.msk [vmem:[%s203 + $0x8] sm:$0xff] %vm1763, %v1760
        %1766 = vst.msk [vmem:[%s203 + $0x10] sm:$0xff] %vm1763, %v1761
        %1767 = vst.msk [vmem:[%s203 + $0x18] sm:$0xff] %vm1763, %v1762
        %v1768 = vld [vmem:[%s169] sm:$0xff]
        %v1769 = vld [vmem:[%s169 + $0x8] sm:$0xff]
        %v1770 = vld [vmem:[%s169 + $0x10] sm:$0xff]
        %v1771 = vld [vmem:[%s169 + $0x18] sm:$0xff]
        %v1772 = vld [vmem:[%s178] sm:$0xff]
        %v1773 = vld [vmem:[%s178 + $0x8] sm:$0xff]
        %v1774 = vld [vmem:[%s178 + $0x10] sm:$0xff]
        %v1775 = vld [vmem:[%s178 + $0x18] sm:$0xff]
        %v1776 = vmul.f32 %v1768, 2.0
        %v1777 = vmul.f32 %v1769, 2.0
        %v1778 = vmul.f32 %v1770, 2.0
        %v1779 = vmul.f32 %v1771, 2.0
        %1784 = vrot.lane.b32.xlu0 %v1776, 1
        %v1785 = vpop.permute.xlu0 %1784
        %1786 = vrot.lane.b32.xlu0 %v1777, 1
        %v1787 = vpop.permute.xlu0 %1786
        %1788 = vrot.lane.b32.xlu0 %v1778, 1
        %v1789 = vpop.permute.xlu0 %1788
        %1790 = vrot.lane.b32.xlu0 %v1779, 1
        %v1791 = vpop.permute.xlu0 %1790
        %v1796 = vadd.f32 %v1768, %v1785
        %v1797 = vadd.f32 %v1769, %v1787
        %v1798 = vadd.f32 %v1770, %v1789
        %v1799 = vadd.f32 %v1771, %v1791
        %1804 = vrot.lane.b32.xlu0 %v1796, 113
        %v1805 = vpop.permute.xlu0 %1804
        %1806 = vrot.lane.b32.xlu0 %v1797, 113
        %v1807 = vpop.permute.xlu0 %1806
        %1808 = vrot.lane.b32.xlu0 %v1798, 113
        %v1809 = vpop.permute.xlu0 %1808
        %1810 = vrot.lane.b32.xlu0 %v1799, 113
        %v1811 = vpop.permute.xlu0 %1810
        %v1816 = vrot.slane %v1805, 7
        %v1817 = vrot.slane %v1809, 7
        %v1818 = vrot.slane %v1807, 7
        %v1819 = vrot.slane %v1811, 7
        %v1820 = vsel %vm282, %v1816, %v1818
        %v1821 = vsel %vm282, %v1817, %v1819
        %v1822 = vsel %vm282, %v1818, %v1816
        %v1823 = vsel %vm282, %v1819, %v1817
        %v1824 = vrot.slane %v1805, 1
        %v1825 = vrot.slane %v1809, 1
        %v1826 = vrot.slane %v1807, 1
        %v1827 = vrot.slane %v1811, 1
        %v1828 = vsel %vm295, %v1824, %v1826
        %v1829 = vsel %vm295, %v1825, %v1827
        %v1830 = vsel %vm295, %v1826, %v1824
        %v1831 = vsel %vm295, %v1827, %v1825
        %v1832 = vsel %vm1385, %v1828, %v1822
        %v1833 = vsel %vm1386, %v1830, %v1820
        %v1834 = vsel %vm1385, %v1829, %v1823
        %v1835 = vsel %vm1386, %v1831, %v1821
        %v1836 = vsel %vm1393, %v1822, %v1828
        %v1837 = vsel %vm1394, %v1820, %v1830
        %v1838 = vsel %vm1393, %v1823, %v1829
        %v1839 = vsel %vm1394, %v1821, %v1831
        %1844 = vrot.lane.b32.xlu0 %v1832, 15
        %v1845 = vpop.permute.xlu0 %1844
        %1846 = vrot.lane.b32.xlu0 %v1833, 15
        %v1847 = vpop.permute.xlu0 %1846
        %1848 = vrot.lane.b32.xlu0 %v1834, 15
        %v1849 = vpop.permute.xlu0 %1848
        %1850 = vrot.lane.b32.xlu0 %v1835, 15
        %v1851 = vpop.permute.xlu0 %1850
        %v1856 = vadd.f32 %v1796, %v1845
        %v1857 = vadd.f32 %v1797, %v1847
        %v1858 = vadd.f32 %v1798, %v1849
        %v1859 = vadd.f32 %v1799, %v1851
        %1864 = vrot.lane.b32.xlu0 %v1836, 15
        %v1865 = vpop.permute.xlu0 %1864
        %1866 = vrot.lane.b32.xlu0 %v1837, 15
        %v1867 = vpop.permute.xlu0 %1866
        %1868 = vrot.lane.b32.xlu0 %v1838, 15
        %v1869 = vpop.permute.xlu0 %1868
        %1870 = vrot.lane.b32.xlu0 %v1839, 15
        %v1871 = vpop.permute.xlu0 %1870
        %v1876 = vadd.f32 %v1856, %v1865
        %v1877 = vadd.f32 %v1857, %v1867
        %v1878 = vadd.f32 %v1858, %v1869
        %v1879 = vadd.f32 %v1859, %v1871
        %v1880 = vmul.f32 %v1772, 2.0
        %v1881 = vmul.f32 %v1773, 2.0
        %v1882 = vmul.f32 %v1774, 2.0
        %v1883 = vmul.f32 %v1775, 2.0
        %1888 = vrot.lane.b32.xlu0 %v1880, 1
        %v1889 = vpop.permute.xlu0 %1888
        %1890 = vrot.lane.b32.xlu0 %v1881, 1
        %v1891 = vpop.permute.xlu0 %1890
        %1892 = vrot.lane.b32.xlu0 %v1882, 1
        %v1893 = vpop.permute.xlu0 %1892
        %1894 = vrot.lane.b32.xlu0 %v1883, 1
        %v1895 = vpop.permute.xlu0 %1894
        %v1900 = vadd.f32 %v1772, %v1889
        %v1901 = vadd.f32 %v1773, %v1891
        %v1902 = vadd.f32 %v1774, %v1893
        %v1903 = vadd.f32 %v1775, %v1895
        %1908 = vrot.lane.b32.xlu0 %v1900, 113
        %v1909 = vpop.permute.xlu0 %1908
        %1910 = vrot.lane.b32.xlu0 %v1901, 113
        %v1911 = vpop.permute.xlu0 %1910
        %1912 = vrot.lane.b32.xlu0 %v1902, 113
        %v1913 = vpop.permute.xlu0 %1912
        %1914 = vrot.lane.b32.xlu0 %v1903, 113
        %v1915 = vpop.permute.xlu0 %1914
        %v1920 = vrot.slane %v1909, 7
        %v1921 = vrot.slane %v1913, 7
        %v1922 = vrot.slane %v1911, 7
        %v1923 = vrot.slane %v1915, 7
        %v1924 = vsel %vm282, %v1920, %v1922
        %v1925 = vsel %vm282, %v1921, %v1923
        %v1926 = vsel %vm282, %v1922, %v1920
        %v1927 = vsel %vm282, %v1923, %v1921
        %v1928 = vrot.slane %v1909, 1
        %v1929 = vrot.slane %v1913, 1
        %v1930 = vrot.slane %v1911, 1
        %v1931 = vrot.slane %v1915, 1
        %v1932 = vsel %vm295, %v1928, %v1930
        %v1933 = vsel %vm295, %v1929, %v1931
        %v1934 = vsel %vm295, %v1930, %v1928
        %v1935 = vsel %vm295, %v1931, %v1929
        %v1936 = vsel %vm1385, %v1932, %v1926
        %v1937 = vsel %vm1386, %v1934, %v1924
        %v1938 = vsel %vm1385, %v1933, %v1927
        %v1939 = vsel %vm1386, %v1935, %v1925
        %v1940 = vsel %vm1393, %v1926, %v1932
        %v1941 = vsel %vm1394, %v1924, %v1934
        %v1942 = vsel %vm1393, %v1927, %v1933
        %v1943 = vsel %vm1394, %v1925, %v1935
        %1948 = vrot.lane.b32.xlu0 %v1936, 15
        %v1949 = vpop.permute.xlu0 %1948
        %1950 = vrot.lane.b32.xlu0 %v1937, 15
        %v1951 = vpop.permute.xlu0 %1950
        %1952 = vrot.lane.b32.xlu0 %v1938, 15
        %v1953 = vpop.permute.xlu0 %1952
        %1954 = vrot.lane.b32.xlu0 %v1939, 15
        %v1955 = vpop.permute.xlu0 %1954
        %v1960 = vadd.f32 %v1900, %v1949
        %v1961 = vadd.f32 %v1901, %v1951
        %v1962 = vadd.f32 %v1902, %v1953
        %v1963 = vadd.f32 %v1903, %v1955
        %1968 = vrot.lane.b32.xlu0 %v1940, 15
        %v1969 = vpop.permute.xlu0 %1968
        %1970 = vrot.lane.b32.xlu0 %v1941, 15
        %v1971 = vpop.permute.xlu0 %1970
        %1972 = vrot.lane.b32.xlu0 %v1942, 15
        %v1973 = vpop.permute.xlu0 %1972
        %1974 = vrot.lane.b32.xlu0 %v1943, 15
        %v1975 = vpop.permute.xlu0 %1974
        %v1980 = vadd.f32 %v1960, %v1969
        %v1981 = vadd.f32 %v1961, %v1971
        %v1982 = vadd.f32 %v1962, %v1973
        %v1983 = vadd.f32 %v1963, %v1975
        %v1984 = vmul.f32 %v1768, %v1768
        %v1985 = vmul.f32 %v1769, %v1769
        %v1986 = vmul.f32 %v1770, %v1770
        %v1987 = vmul.f32 %v1771, %v1771
        %v1988 = vmul.f32 %v1984, 2.0
        %v1989 = vmul.f32 %v1985, 2.0
        %v1990 = vmul.f32 %v1986, 2.0
        %v1991 = vmul.f32 %v1987, 2.0
        %1996 = vrot.lane.b32.xlu0 %v1988, 1
        %v1997 = vpop.permute.xlu0 %1996
        %1998 = vrot.lane.b32.xlu0 %v1989, 1
        %v1999 = vpop.permute.xlu0 %1998
        %2000 = vrot.lane.b32.xlu0 %v1990, 1
        %v2001 = vpop.permute.xlu0 %2000
        %2002 = vrot.lane.b32.xlu0 %v1991, 1
        %v2003 = vpop.permute.xlu0 %2002
        %v2008 = vadd.f32 %v1984, %v1997
        %v2009 = vadd.f32 %v1985, %v1999
        %v2010 = vadd.f32 %v1986, %v2001
        %v2011 = vadd.f32 %v1987, %v2003
        %2016 = vrot.lane.b32.xlu0 %v2008, 113
        %v2017 = vpop.permute.xlu0 %2016
        %2018 = vrot.lane.b32.xlu0 %v2009, 113
        %v2019 = vpop.permute.xlu0 %2018
        %2020 = vrot.lane.b32.xlu0 %v2010, 113
        %v2021 = vpop.permute.xlu0 %2020
        %2022 = vrot.lane.b32.xlu0 %v2011, 113
        %v2023 = vpop.permute.xlu0 %2022
        %v2028 = vrot.slane %v2017, 7
        %v2029 = vrot.slane %v2021, 7
        %v2030 = vrot.slane %v2019, 7
        %v2031 = vrot.slane %v2023, 7
        %v2032 = vsel %vm282, %v2028, %v2030
        %v2033 = vsel %vm282, %v2029, %v2031
        %v2034 = vsel %vm282, %v2030, %v2028
        %v2035 = vsel %vm282, %v2031, %v2029
        %v2036 = vrot.slane %v2017, 1
        %v2037 = vrot.slane %v2021, 1
        %v2038 = vrot.slane %v2019, 1
        %v2039 = vrot.slane %v2023, 1
        %v2040 = vsel %vm295, %v2036, %v2038
        %v2041 = vsel %vm295, %v2037, %v2039
        %v2042 = vsel %vm295, %v2038, %v2036
        %v2043 = vsel %vm295, %v2039, %v2037
        %v2044 = vsel %vm1385, %v2040, %v2034
        %v2045 = vsel %vm1386, %v2042, %v2032
        %v2046 = vsel %vm1385, %v2041, %v2035
        %v2047 = vsel %vm1386, %v2043, %v2033
        %v2048 = vsel %vm1393, %v2034, %v2040
        %v2049 = vsel %vm1394, %v2032, %v2042
        %v2050 = vsel %vm1393, %v2035, %v2041
        %v2051 = vsel %vm1394, %v2033, %v2043
        %2056 = vrot.lane.b32.xlu0 %v2044, 15
        %v2057 = vpop.permute.xlu0 %2056
        %2058 = vrot.lane.b32.xlu0 %v2045, 15
        %v2059 = vpop.permute.xlu0 %2058
        %2060 = vrot.lane.b32.xlu0 %v2046, 15
        %v2061 = vpop.permute.xlu0 %2060
        %2062 = vrot.lane.b32.xlu0 %v2047, 15
        %v2063 = vpop.permute.xlu0 %2062
        %v2068 = vadd.f32 %v2008, %v2057
        %v2069 = vadd.f32 %v2009, %v2059
        %v2070 = vadd.f32 %v2010, %v2061
        %v2071 = vadd.f32 %v2011, %v2063
        %2076 = vrot.lane.b32.xlu0 %v2048, 15
        %v2077 = vpop.permute.xlu0 %2076
        %2078 = vrot.lane.b32.xlu0 %v2049, 15
        %v2079 = vpop.permute.xlu0 %2078
        %2080 = vrot.lane.b32.xlu0 %v2050, 15
        %v2081 = vpop.permute.xlu0 %2080
        %2082 = vrot.lane.b32.xlu0 %v2051, 15
        %v2083 = vpop.permute.xlu0 %2082
        %v2088 = vadd.f32 %v2068, %v2077
        %v2089 = vadd.f32 %v2069, %v2079
        %v2090 = vadd.f32 %v2070, %v2081
        %v2091 = vadd.f32 %v2071, %v2083
        %v2092 = vmul.f32 %v1772, %v1772
        %v2093 = vmul.f32 %v1773, %v1773
        %v2094 = vmul.f32 %v1774, %v1774
        %v2095 = vmul.f32 %v1775, %v1775
        %v2096 = vmul.f32 %v2092, 2.0
        %v2097 = vmul.f32 %v2093, 2.0
        %v2098 = vmul.f32 %v2094, 2.0
        %v2099 = vmul.f32 %v2095, 2.0
        %2104 = vrot.lane.b32.xlu0 %v2096, 1
        %v2105 = vpop.permute.xlu0 %2104
        %2106 = vrot.lane.b32.xlu0 %v2097, 1
        %v2107 = vpop.permute.xlu0 %2106
        %2108 = vrot.lane.b32.xlu0 %v2098, 1
        %v2109 = vpop.permute.xlu0 %2108
        %2110 = vrot.lane.b32.xlu0 %v2099, 1
        %v2111 = vpop.permute.xlu0 %2110
        %v2116 = vadd.f32 %v2092, %v2105
        %v2117 = vadd.f32 %v2093, %v2107
        %v2118 = vadd.f32 %v2094, %v2109
        %v2119 = vadd.f32 %v2095, %v2111
        %2124 = vrot.lane.b32.xlu0 %v2116, 113
        %v2125 = vpop.permute.xlu0 %2124
        %2126 = vrot.lane.b32.xlu0 %v2117, 113
        %v2127 = vpop.permute.xlu0 %2126
        %2128 = vrot.lane.b32.xlu0 %v2118, 113
        %v2129 = vpop.permute.xlu0 %2128
        %2130 = vrot.lane.b32.xlu0 %v2119, 113
        %v2131 = vpop.permute.xlu0 %2130
        %v2136 = vrot.slane %v2125, 7
        %v2137 = vrot.slane %v2129, 7
        %v2138 = vrot.slane %v2127, 7
        %v2139 = vrot.slane %v2131, 7
        %v2140 = vsel %vm282, %v2136, %v2138
        %v2141 = vsel %vm282, %v2137, %v2139
        %v2142 = vsel %vm282, %v2138, %v2136
        %v2143 = vsel %vm282, %v2139, %v2137
        %v2144 = vrot.slane %v2125, 1
        %v2145 = vrot.slane %v2129, 1
        %v2146 = vrot.slane %v2127, 1
        %v2147 = vrot.slane %v2131, 1
        %v2148 = vsel %vm295, %v2144, %v2146
        %v2149 = vsel %vm295, %v2145, %v2147
        %v2150 = vsel %vm295, %v2146, %v2144
        %v2151 = vsel %vm295, %v2147, %v2145
        %v2152 = vsel %vm1385, %v2148, %v2142
        %v2153 = vsel %vm1386, %v2150, %v2140
        %v2154 = vsel %vm1385, %v2149, %v2143
        %v2155 = vsel %vm1386, %v2151, %v2141
        %v2156 = vsel %vm1393, %v2142, %v2148
        %v2157 = vsel %vm1394, %v2140, %v2150
        %v2158 = vsel %vm1393, %v2143, %v2149
        %v2159 = vsel %vm1394, %v2141, %v2151
        %2164 = vrot.lane.b32.xlu0 %v2152, 15
        %v2165 = vpop.permute.xlu0 %2164
        %2166 = vrot.lane.b32.xlu0 %v2153, 15
        %v2167 = vpop.permute.xlu0 %2166
        %2168 = vrot.lane.b32.xlu0 %v2154, 15
        %v2169 = vpop.permute.xlu0 %2168
        %2170 = vrot.lane.b32.xlu0 %v2155, 15
        %v2171 = vpop.permute.xlu0 %2170
        %v2176 = vadd.f32 %v2116, %v2165
        %v2177 = vadd.f32 %v2117, %v2167
        %v2178 = vadd.f32 %v2118, %v2169
        %v2179 = vadd.f32 %v2119, %v2171
        %2184 = vrot.lane.b32.xlu0 %v2156, 15
        %v2185 = vpop.permute.xlu0 %2184
        %2186 = vrot.lane.b32.xlu0 %v2157, 15
        %v2187 = vpop.permute.xlu0 %2186
        %2188 = vrot.lane.b32.xlu0 %v2158, 15
        %v2189 = vpop.permute.xlu0 %2188
        %2190 = vrot.lane.b32.xlu0 %v2159, 15
        %v2191 = vpop.permute.xlu0 %2190
        %v2196 = vadd.f32 %v2176, %v2185
        %v2197 = vadd.f32 %v2177, %v2187
        %v2198 = vadd.f32 %v2178, %v2189
        %v2199 = vadd.f32 %v2179, %v2191
        %v2200 = vmul.f32 %v1768, %v1772
        %v2201 = vmul.f32 %v1769, %v1773
        %v2202 = vmul.f32 %v1770, %v1774
        %v2203 = vmul.f32 %v1771, %v1775
        %v2204 = vmul.f32 %v2200, 2.0
        %v2205 = vmul.f32 %v2201, 2.0
        %v2206 = vmul.f32 %v2202, 2.0
        %v2207 = vmul.f32 %v2203, 2.0
        %2212 = vrot.lane.b32.xlu0 %v2204, 1
        %v2213 = vpop.permute.xlu0 %2212
        %2214 = vrot.lane.b32.xlu0 %v2205, 1
        %v2215 = vpop.permute.xlu0 %2214
        %2216 = vrot.lane.b32.xlu0 %v2206, 1
        %v2217 = vpop.permute.xlu0 %2216
        %2218 = vrot.lane.b32.xlu0 %v2207, 1
        %v2219 = vpop.permute.xlu0 %2218
        %v2224 = vadd.f32 %v2200, %v2213
        %v2225 = vadd.f32 %v2201, %v2215
        %v2226 = vadd.f32 %v2202, %v2217
        %v2227 = vadd.f32 %v2203, %v2219
        %2232 = vrot.lane.b32.xlu0 %v2224, 113
        %v2233 = vpop.permute.xlu0 %2232
        %2234 = vrot.lane.b32.xlu0 %v2225, 113
        %v2235 = vpop.permute.xlu0 %2234
        %2236 = vrot.lane.b32.xlu0 %v2226, 113
        %v2237 = vpop.permute.xlu0 %2236
        %2238 = vrot.lane.b32.xlu0 %v2227, 113
        %v2239 = vpop.permute.xlu0 %2238
        %v2244 = vrot.slane %v2233, 7
        %v2245 = vrot.slane %v2237, 7
        %v2246 = vrot.slane %v2235, 7
        %v2247 = vrot.slane %v2239, 7
        %v2248 = vsel %vm282, %v2244, %v2246
        %v2249 = vsel %vm282, %v2245, %v2247
        %v2250 = vsel %vm282, %v2246, %v2244
        %v2251 = vsel %vm282, %v2247, %v2245
        %v2252 = vrot.slane %v2233, 1
        %v2253 = vrot.slane %v2237, 1
        %v2254 = vrot.slane %v2235, 1
        %v2255 = vrot.slane %v2239, 1
        %v2256 = vsel %vm295, %v2252, %v2254
        %v2257 = vsel %vm295, %v2253, %v2255
        %v2258 = vsel %vm295, %v2254, %v2252
        %v2259 = vsel %vm295, %v2255, %v2253
        %v2260 = vsel %vm1385, %v2256, %v2250
        %v2261 = vsel %vm1386, %v2258, %v2248
        %v2262 = vsel %vm1385, %v2257, %v2251
        %v2263 = vsel %vm1386, %v2259, %v2249
        %v2264 = vsel %vm1393, %v2250, %v2256
        %v2265 = vsel %vm1394, %v2248, %v2258
        %v2266 = vsel %vm1393, %v2251, %v2257
        %v2267 = vsel %vm1394, %v2249, %v2259
        %2272 = vrot.lane.b32.xlu0 %v2260, 15
        %v2273 = vpop.permute.xlu0 %2272
        %2274 = vrot.lane.b32.xlu0 %v2261, 15
        %v2275 = vpop.permute.xlu0 %2274
        %2276 = vrot.lane.b32.xlu0 %v2262, 15
        %v2277 = vpop.permute.xlu0 %2276
        %2278 = vrot.lane.b32.xlu0 %v2263, 15
        %v2279 = vpop.permute.xlu0 %2278
        %v2284 = vadd.f32 %v2224, %v2273
        %v2285 = vadd.f32 %v2225, %v2275
        %v2286 = vadd.f32 %v2226, %v2277
        %v2287 = vadd.f32 %v2227, %v2279
        %2292 = vrot.lane.b32.xlu0 %v2264, 15
        %v2293 = vpop.permute.xlu0 %2292
        %2294 = vrot.lane.b32.xlu0 %v2265, 15
        %v2295 = vpop.permute.xlu0 %2294
        %2296 = vrot.lane.b32.xlu0 %v2266, 15
        %v2297 = vpop.permute.xlu0 %2296
        %2298 = vrot.lane.b32.xlu0 %v2267, 15
        %v2299 = vpop.permute.xlu0 %2298
        %v2304 = vadd.f32 %v2284, %v2293
        %v2305 = vadd.f32 %v2285, %v2295
        %v2306 = vadd.f32 %v2286, %v2297
        %v2307 = vadd.f32 %v2287, %v2299
        %v2308 = vmul.f32 %v1876, 0.11111111
        %v2309 = vmul.f32 %v1877, 0.11111111
        %v2310 = vmul.f32 %v1878, 0.11111111
        %v2311 = vmul.f32 %v1879, 0.11111111
        %v2312 = vmul.f32 %v1980, 0.11111111
        %v2313 = vmul.f32 %v1981, 0.11111111
        %v2314 = vmul.f32 %v1982, 0.11111111
        %v2315 = vmul.f32 %v1983, 0.11111111
        %v2316 = vmul.f32 %v2088, 0.11111111
        %v2317 = vmul.f32 %v2089, 0.11111111
        %v2318 = vmul.f32 %v2090, 0.11111111
        %v2319 = vmul.f32 %v2091, 0.11111111
        %v2320 = vmul.f32 %v2196, 0.11111111
        %v2321 = vmul.f32 %v2197, 0.11111111
        %v2322 = vmul.f32 %v2198, 0.11111111
        %v2323 = vmul.f32 %v2199, 0.11111111
        %v2324 = vmul.f32 %v2304, 0.11111111
        %v2325 = vmul.f32 %v2305, 0.11111111
        %v2326 = vmul.f32 %v2306, 0.11111111
        %v2327 = vmul.f32 %v2307, 0.11111111
        %v2328 = vmul.f32 %v2308, %v2308
        %v2329 = vmul.f32 %v2309, %v2309
        %v2330 = vmul.f32 %v2310, %v2310
        %v2331 = vmul.f32 %v2311, %v2311
        %v2332 = vmul.f32 %v2312, %v2312
        %v2333 = vmul.f32 %v2313, %v2313
        %v2334 = vmul.f32 %v2314, %v2314
        %v2335 = vmul.f32 %v2315, %v2315
        %v2336 = vmul.f32 %v2308, %v2312
        %v2337 = vmul.f32 %v2309, %v2313
        %v2338 = vmul.f32 %v2310, %v2314
        %v2339 = vmul.f32 %v2311, %v2315
        %v2340 = vsub.f32 %v2316, %v2328
        %v2341 = vsub.f32 %v2317, %v2329
        %v2342 = vsub.f32 %v2318, %v2330
        %v2343 = vsub.f32 %v2319, %v2331
        %v2344 = vsub.f32 %v2320, %v2332
        %v2345 = vsub.f32 %v2321, %v2333
        %v2346 = vsub.f32 %v2322, %v2334
        %v2347 = vsub.f32 %v2323, %v2335
        %v2348 = vsub.f32 %v2324, %v2336
        %v2349 = vsub.f32 %v2325, %v2337
        %v2350 = vsub.f32 %v2326, %v2338
        %v2351 = vsub.f32 %v2327, %v2339
        %v2352 = vmul.f32 %v2336, 2.0
        %v2353 = vmul.f32 %v2337, 2.0
        %v2354 = vmul.f32 %v2338, 2.0
        %v2355 = vmul.f32 %v2339, 2.0
        %v2356 = vadd.f32 %v2352, 0.0001
        %v2357 = vadd.f32 %v2353, 0.0001
        %v2358 = vadd.f32 %v2354, 0.0001
        %v2359 = vadd.f32 %v2355, 0.0001
        %v2360 = vmul.f32 %v2348, 2.0
        %v2361 = vmul.f32 %v2349, 2.0
        %v2362 = vmul.f32 %v2350, 2.0
        %v2363 = vmul.f32 %v2351, 2.0
        %v2364 = vadd.f32 %v2360, 0.0009
        %v2365 = vadd.f32 %v2361, 0.0009
        %v2366 = vadd.f32 %v2362, 0.0009
        %v2367 = vadd.f32 %v2363, 0.0009
        %v2368 = vmul.f32 %v2356, %v2364
        %v2369 = vmul.f32 %v2357, %v2365
        %v2370 = vmul.f32 %v2358, %v2366
        %v2371 = vmul.f32 %v2359, %v2367
        %v2372 = vadd.f32 %v2328, %v2332
        %v2373 = vadd.f32 %v2329, %v2333
        %v2374 = vadd.f32 %v2330, %v2334
        %v2375 = vadd.f32 %v2331, %v2335
        %v2376 = vadd.f32 %v2372, 0.0001
        %v2377 = vadd.f32 %v2373, 0.0001
        %v2378 = vadd.f32 %v2374, 0.0001
        %v2379 = vadd.f32 %v2375, 0.0001
        %v2380 = vadd.f32 %v2340, %v2344
        %v2381 = vadd.f32 %v2341, %v2345
        %v2382 = vadd.f32 %v2342, %v2346
        %v2383 = vadd.f32 %v2343, %v2347
        %v2384 = vadd.f32 %v2380, 0.0009
        %v2385 = vadd.f32 %v2381, 0.0009
        %v2386 = vadd.f32 %v2382, 0.0009
        %v2387 = vadd.f32 %v2383, 0.0009
        %v2388 = vmul.f32 %v2376, %v2384
        %v2389 = vmul.f32 %v2377, %v2385
        %v2390 = vmul.f32 %v2378, %v2386
        %v2391 = vmul.f32 %v2379, %v2387
        %v2392 = vrcp.pop %v2388
        %v2393 = vrcp.pop %v2389
        %v2394 = vrcp.pop %v2390
        %v2395 = vrcp.pop %v2391
        %v2396 = vmul.f32 %v2388, %v2392
        %v2397 = vmul.f32 %v2389, %v2393
        %v2398 = vmul.f32 %v2390, %v2394
        %v2399 = vmul.f32 %v2391, %v2395
        %v2400 = vsub.f32 2.0, %v2396
        %v2401 = vsub.f32 2.0, %v2397
        %v2402 = vsub.f32 2.0, %v2398
        %v2403 = vsub.f32 2.0, %v2399
        %v2404 = vmul.f32 %v2392, %v2400
        %v2405 = vmul.f32 %v2393, %v2401
        %v2406 = vmul.f32 %v2394, %v2402
        %v2407 = vmul.f32 %v2395, %v2403
        %v2408 = vmul.f32 %v2368, %v2404
        %v2409 = vmul.f32 %v2369, %v2405
        %v2410 = vmul.f32 %v2370, %v2406
        %v2411 = vmul.f32 %v2371, %v2407
        %v2412 = vsub.f32 1.0, %v2408
        %v2413 = vsub.f32 1.0, %v2409
        %v2414 = vsub.f32 1.0, %v2410
        %v2415 = vsub.f32 1.0, %v2411
        %v2416 = vmul.f32 %v2412, 0.5
        %v2417 = vmul.f32 %v2413, 0.5
        %v2418 = vmul.f32 %v2414, 0.5
        %v2419 = vmul.f32 %v2415, 0.5
        %v2420 = vmax.f32 %v2416, 0.0
        %v2421 = vmax.f32 %v2417, 0.0
        %v2422 = vmax.f32 %v2418, 0.0
        %v2423 = vmax.f32 %v2419, 0.0
        %v2424 = vmin.f32 %v2420, 1.0
        %v2425 = vmin.f32 %v2421, 1.0
        %v2426 = vmin.f32 %v2422, 1.0
        %v2427 = vmin.f32 %v2423, 1.0
        %vm2428 = vcmask 130168
        %2429 = vst.msk [vmem:[%s203] sm:$0xff] %vm2428, %v2424
        %2430 = vst.msk [vmem:[%s203 + $0x8] sm:$0xff] %vm2428, %v2425
        %2431 = vst.msk [vmem:[%s203 + $0x10] sm:$0xff] %vm2428, %v2426
        %2432 = vst.msk [vmem:[%s203 + $0x18] sm:$0xff] %vm2428, %v2427
        %s2433 = sand.u32 %s82, 1
        %s2434 = scalar_lea.sflag [#allocation4], %s2433
        %s2435 = sand.u32 %s82, 1
        %s2436 = smul.addr %s2435, 32
        %s2437 = scalar_lea.vmem [#allocation7], %s2436
        // Predicated region
        $region37: #{tpu_custom_call.1} parent=27 // pred_check
          %p2438 = pneg %p92
        $region38: #{tpu_custom_call.1} parent=27 // pred_check_branch
          %2440 = sbr.rel (%p2438) target = $region40
        $region39: #{tpu_custom_call.1} parent=27 // pred_region
          %s2441 = smul.u32 2, %s22
          %s2443 = ssub.s32 512, 512
          %2444 = vsyncadd %s2434, %s2443
          %s2445 = smul.addr %s2441, 2
          %s2446 = smul.addr %s2445, 128
          %s2447 = scalar_lea.hbm %s2, %s2446
          %s2448 = sshll.u32 %s2437, 4
          %s2449 = int_to_ptr.vmem [resolvable:$true] %s2448
          %2454 = dma.vmem_to_hbm [thread:$0]  %s2449, 512, %s2447, %s2434, 128, 128, 8
        $region40: #{tpu_custom_call.1} parent=27 // pred_fallthru
          _
      $region28: #{tpu_custom_call.1} parent=5 // pred_fallthru
        _
      %p2455 = scmp.le.s32.totalorder 2, %s17
      // Predicated region
      $region41: #{tpu_custom_call.1} parent=5 // pred_check
        %p2456 = pneg %p2455
      $region42: #{tpu_custom_call.1} parent=5 // pred_check_branch
        %2458 = sbr.rel (%p2456) target = $region44
      $region43: #{tpu_custom_call.1} parent=5 // pred_region
        %s2459 = ssub.s32 %s17, 2
        // Predicated region
        $region45: #{tpu_custom_call.1} parent=43 // pred_check
          %p2460 = pneg %p98
        $region46: #{tpu_custom_call.1} parent=43 // pred_check_branch
          %2462 = sbr.rel (%p2460) target = $region48
        $region47: #{tpu_custom_call.1} parent=43 // pred_region
          %s2463 = sand.u32 %s83, 1
          %s2464 = scalar_lea.sflag [#allocation4], %s2463
          %s2465 = sand.u32 %s83, 1
          %s2466 = smul.addr %s2465, 32
          %s2467 = scalar_lea.vmem [#allocation7], %s2466
          %2468 = dma.done %s2464, 512
        $region48: #{tpu_custom_call.1} parent=43 // pred_fallthru
          _
      $region44: #{tpu_custom_call.1} parent=5 // pred_fallthru
        _
    $region6: #{tpu_custom_call.1} parent=1 // loop_footer
      %s21 = sadd.s32 1, %s17
    $region7: #{tpu_custom_call.1} parent=1 // loop_footer_branch
      %16 = sbr.rel target = $region3
    $region8: #{tpu_custom_call.1} parent=1 // loop_exit
      _
    %2469 = vsyncpa [#allocation3], 1
    %s2470 = scalar_lea.sflag [#allocation3], 1
    %2471 = vsyncpa %s2470, 1
    %2472 = vsyncpa [#allocation6], 1
    %s2473 = scalar_lea.sflag [#allocation6], 1
    %2474 = vsyncpa %s2473, 1
    %2475 = vsyncpa [#allocation4], 1
    %s2476 = scalar_lea.sflag [#allocation4], 1
    %2477 = vsyncpa %s2476, 1

</llo_original>
